<compile_context>
chip_gen: v7x
topology: tpu7x:2x2x1
jax: 0.10.0
libtpu: 0.0.40
codegen_flags: <defaults>
</compile_context>

<pallas_src>
import functools

import jax
import jax.numpy as jnp
from jax.experimental import pallas as pl
from jax.experimental.pallas import tpu as pltpu

EPS = 1e-5
VMEM_LIMIT_BYTES = 32 * 1024 * 1024   # fits v5e/v6e (128 MiB) and v7x (64 MiB)


# ----------------------------------------------------------------------------
# Pallas kernels
# ----------------------------------------------------------------------------
def conv3x3_s1_kernel(xh_ref, w_ref, y_ref, st_ref, patch_ref):
    """3x3 / stride-1 conv on one (rows+2, W+2, C) zero-padded halo tile.

    The 9 taps are gathered from the in-VMEM halo tile into an im2col scratch
    so the MXU sees a single (rows*W, 9*C) @ (9*C, D) matmul (no HBM im2col,
    no per-tap BN affine, no padding mask).  Per-tile channel sum / sum-of-
    squares are emitted (from the f32 accumulator) for the exact global-batch
    BN that follows; the pixel-major result is stored in y_ref.dtype.
    """
    tp2, wp2, c = xh_ref.shape
    t, w = tp2 - 2, wp2 - 2
    for k in range(9):
        kh, kw = divmod(k, 3)
        patch_ref[:, k * c:(k + 1) * c] = (
            xh_ref[kh:kh + t, kw:kw + w, :].reshape(t * w, c))
    acc = jnp.dot(patch_ref[...], w_ref[...],
                  preferred_element_type=jnp.float32)
    y_ref[...] = acc.astype(y_ref.dtype)
    st_ref[0:1, :] = jnp.sum(acc, axis=0, keepdims=True)
    st_ref[1:2, :] = jnp.sum(acc * acc, axis=0, keepdims=True)


def matmul_stats_kernel(x_ref, w_ref, y_ref, st_ref):
    """(rows, K) @ (K, D) MXU matmul + per-tile sum / sumsq for two-pass BN."""
    acc = jnp.dot(x_ref[...], w_ref[...], preferred_element_type=jnp.float32)
    y_ref[...] = acc.astype(y_ref.dtype)
    st_ref[0:1, :] = jnp.sum(acc, axis=0, keepdims=True)
    st_ref[1:2, :] = jnp.sum(acc * acc, axis=0, keepdims=True)


def bn_add_proj_kernel(y_ref, s_ref, p_ref, o_ref):
    """out = BN3(conv2) + BN_sc(1x1-conv shortcut).

    p_ref packs [scale_res; shift_res; scale_sc; shift_sc] as a (4, D) table.
    """
    o_ref[...] = (y_ref[...] * p_ref[0:1, :] + p_ref[1:2, :]
                  + s_ref[...] * p_ref[2:3, :] + p_ref[3:4, :])


def bn_add_id_kernel(y_ref, s_ref, p_ref, o_ref):
    """out = BN3(conv2) + identity shortcut (MaxPool2d(1, stride) path).

    p_ref packs [scale_res; shift_res] as a (2, D) table.
    """
    o_ref[...] = y_ref[...] * p_ref[0:1, :] + p_ref[1:2, :] + s_ref[...]


# ----------------------------------------------------------------------------
# pallas_call wrappers (grid / BlockSpecs / scratch / cost estimates)
# ----------------------------------------------------------------------------
def _conv3x3_s1(x_halo, w_flat, depth, out_dtype=jnp.float32):
    """x_halo: (NT, rows+2, W+2, C) halo tiles; w_flat: (9*C, depth)."""
    nt, tp2, wp2, c = x_halo.shape
    t, w = tp2 - 2, wp2 - 2
    itm = x_halo.dtype.itemsize
    oitm = jnp.dtype(out_dtype).itemsize
    cost = pl.CostEstimate(
        flops=2 * nt * t * w * 9 * c * depth,
        transcendentals=0,
        bytes_accessed=(x_halo.size * itm + w_flat.size * itm
                        + nt * t * w * depth * oitm + nt * 2 * depth * 4))
    return pl.pallas_call(
        conv3x3_s1_kernel,
        grid=(nt,),
        in_specs=[pl.BlockSpec((None, tp2, wp2, c), lambda i: (i, 0, 0, 0)),
                  pl.BlockSpec((9 * c, depth), lambda i: (0, 0))],
        out_specs=[pl.BlockSpec((None, t * w, depth), lambda i: (i, 0, 0)),
                   pl.BlockSpec((None, 2, depth), lambda i: (i, 0, 0))],
        out_shape=[jax.ShapeDtypeStruct((nt, t * w, depth), out_dtype),
                   jax.ShapeDtypeStruct((nt, 2, depth), jnp.float32)],
        scratch_shapes=[pltpu.VMEM((t * w, 9 * c), x_halo.dtype)],
        compiler_params=pltpu.CompilerParams(
            dimension_semantics=("parallel",),
            vmem_limit_bytes=VMEM_LIMIT_BYTES),
        cost_estimate=cost,
    )(x_halo, w_flat)


def _matmul_stats(x2d, w, block_rows, out_dtype=jnp.float32):
    """x2d: (P, K); w: (K, D); tiled over P rows."""
    p, k = x2d.shape
    d = w.shape[1]
    nt = p // block_rows
    itm = x2d.dtype.itemsize
    oitm = jnp.dtype(out_dtype).itemsize
    cost = pl.CostEstimate(
        flops=2 * p * k * d,
        transcendentals=0,
        bytes_accessed=p * k * itm + k * d * itm + p * d * oitm + nt * 2 * d * 4)
    return pl.pallas_call(
        matmul_stats_kernel,
        grid=(nt,),
        in_specs=[pl.BlockSpec((block_rows, k), lambda i: (i, 0)),
                  pl.BlockSpec((k, d), lambda i: (0, 0))],
        out_specs=[pl.BlockSpec((block_rows, d), lambda i: (i, 0)),
                   pl.BlockSpec((None, 2, d), lambda i: (i, 0, 0))],
        out_shape=[jax.ShapeDtypeStruct((p, d), out_dtype),
                   jax.ShapeDtypeStruct((nt, 2, d), jnp.float32)],
        compiler_params=pltpu.CompilerParams(
            dimension_semantics=("parallel",),
            vmem_limit_bytes=VMEM_LIMIT_BYTES),
        cost_estimate=cost,
    )(x2d, w)


def _bn_add(y2d, s2d, aff, block_rows):
    """Fused BN3 + shortcut(-BN) + residual add over (P, D) pixel rows.

    aff is a packed (4, D) table for the projection shortcut, or (2, D) for
    the identity shortcut (skips the shortcut affine entirely).
    """
    p, d = y2d.shape
    nt = p // block_rows
    kernel = bn_add_proj_kernel if aff.shape[0] == 4 else bn_add_id_kernel
    row_spec = pl.BlockSpec((block_rows, d), lambda i: (i, 0))
    par_spec = pl.BlockSpec(aff.shape, lambda i: (0, 0))
    return pl.pallas_call(
        kernel,
        grid=(nt,),
        in_specs=[row_spec, row_spec, par_spec],
        out_specs=row_spec,
        out_shape=jax.ShapeDtypeStruct((p, d), jnp.float32),
        compiler_params=pltpu.CompilerParams(
            dimension_semantics=("parallel",),
            vmem_limit_bytes=VMEM_LIMIT_BYTES),
    )(y2d, s2d, aff)


# ----------------------------------------------------------------------------
# JAX glue (cheap, fused-by-XLA reshuffles and tiny reductions)
# ----------------------------------------------------------------------------
def _row_halo_tiles(x_pad, rows):
    """(N, H+2, W+2, C) zero-padded -> (N*H//rows, rows+2, W+2, C) overlapping
    row tiles.  Only a 2-row halo is duplicated (vs. a 9x im2col)."""
    n, hp, wp, c = x_pad.shape
    h = hp - 2
    nt = h // rows
    idx = (jnp.arange(nt) * rows)[:, None] + jnp.arange(rows + 2)[None, :]
    tiles = x_pad[:, idx]                           # (N, nt, rows+2, Wp, C)
    return tiles.reshape(n * nt, rows + 2, wp, c)


def _im2col_strided(z_pad, ho, wo, stride):
    """Strided 3x3 patches packed along K (channel-minor) -> (N*Ho*Wo, 9*D)."""
    n = z_pad.shape[0]
    d = z_pad.shape[-1]
    taps = []
    for kh in range(3):
        for kw in range(3):
            taps.append(z_pad[:, kh:kh + (ho - 1) * stride + 1:stride,
                                 kw:kw + (wo - 1) * stride + 1:stride, :])
    return jnp.concatenate(taps, axis=-1).reshape(n * ho * wo, 9 * d)


def _bn_affine_from_tile_stats(st, count, gamma, beta):
    """Global (batch) BN scale/shift from per-tile [sum, sumsq] partials."""
    s = jnp.sum(st, axis=0)                                     # (2, D)
    mean = s[0] / count
    var = jnp.maximum(s[1] / count - mean * mean, 0.0)          # clamp
    scale = gamma * jax.lax.rsqrt(var + EPS)
    shift = beta - mean * scale
    return scale, shift


def _pick_row_tile(h, target):
    t = min(h, max(1, target if target else h))
    while h % t:
        t -= 1
    return t


def _pick_pixel_tile(total, target):
    t = min(total, max(8, target))
    while t > 1 and total % t:
        t -= 1
    if t % 8 != 0 and t != total:      # keep sublane alignment, else one block
        t = total
    return t


def basic_block_ir(x_nchw, params, in_channel, depth, stride, *,
                   block_rows=None, block_pix=512,
                   matmul_dtype=jnp.bfloat16):
    """Forward pass of BasicBlockIR (training-mode BatchNorm). NCHW in/out."""
    x = jnp.transpose(x_nchw, (0, 2, 3, 1)).astype(jnp.float32)  # NHWC
    n, h, w, cin = x.shape
    assert cin == in_channel
    ho = (h - 1) // stride + 1
    wo = (w - 1) // stride + 1
    p1 = n * h * w
    p2 = n * ho * wo
    rows = _pick_row_tile(h, block_rows)
    pix = _pick_pixel_tile(p2, block_pix)

    # --- BN1: stats + affine hoisted out of the conv taps (applied once,
    #     fused by XLA with the pad / halo gather; no mask needed) -----------
    mean1 = jnp.mean(x, axis=(0, 1, 2))
    var1 = jnp.var(x, axis=(0, 1, 2))
    scale1 = params["g1"] * jax.lax.rsqrt(var1 + EPS)
    shift1 = params["b1"] - mean1 * scale1
    xbn = (x * scale1 + shift1).astype(matmul_dtype)   # narrow before pad/gather
    xbn_pad = jnp.pad(xbn, ((0, 0), (1, 1), (1, 1), (0, 0)))

    # --- conv1 (3x3, stride 1): row-halo tiles, fused K=9*Cin MXU matmul.
    #     Result stored in matmul_dtype (largest intermediate -> half HBM). ---
    x_halo = _row_halo_tiles(xbn_pad, rows)
    w1 = params["w1"].reshape(9 * cin, depth).astype(matmul_dtype)
    y1, st1 = _conv3x3_s1(x_halo, w1, depth, out_dtype=matmul_dtype)

    # --- BN2 (global batch stats from per-tile partials) + PReLU ------------
    scale2, shift2 = _bn_affine_from_tile_stats(st1, float(p1),
                                                params["g2"], params["b2"])
    z = y1.reshape(n, h, w, depth).astype(jnp.float32) * scale2 + shift2
    z = jnp.maximum(z, 0.0) + params["a"] * jnp.minimum(z, 0.0)
    z = z.astype(matmul_dtype)                          # narrow before pad/gather
    z_pad = jnp.pad(z, ((0, 0), (1, 1), (1, 1), (0, 0)))

    # --- conv2 (3x3, stride) ------------------------------------------------
    w2 = params["w2"].reshape(9 * depth, depth).astype(matmul_dtype)
    if stride == 1:
        z_halo = _row_halo_tiles(z_pad, rows)
        y2, st2 = _conv3x3_s1(z_halo, w2, depth)        # f32: feeds final BN/add
        y2 = y2.reshape(p2, depth)
    else:
        # TODO(synk): replace the HBM-packed strided taps (~9/stride^2 dup)
        # with an in-kernel strided gather from a halo tile.
        patches = _im2col_strided(z_pad, ho, wo, stride)
        y2, st2 = _matmul_stats(patches, w2, pix)
    scale3, shift3 = _bn_affine_from_tile_stats(st2, float(p2),
                                                params["g3"], params["b3"])

    # --- shortcut ------------------------------------------------------------
    xs2d = x[:, ::stride, ::stride, :].reshape(p2, cin)
    if in_channel == depth:
        s2d = xs2d                              # MaxPool2d(1, stride) == subsample
        aff = jnp.stack([scale3, shift3])                       # (2, D)
    else:
        ws = params["ws"].astype(matmul_dtype)  # 1x1 conv == (Cin, D) matmul
        s2d, sts = _matmul_stats(xs2d.astype(matmul_dtype), ws, pix)
        scale_s, shift_s = _bn_affine_from_tile_stats(sts, float(p2),
                                                      params["gs"], params["bs"])
        aff = jnp.stack([scale3, shift3, scale_s, shift_s])     # (4, D)

    # --- BN3 + shortcut-BN + residual add (tiled elementwise kernel) --------
    out2d = _bn_add(y2, s2d, aff, pix)
    out = out2d.reshape(n, ho, wo, depth)
    return jnp.transpose(out, (0, 3, 1, 2))                      # NCHW


# ----------------------------------------------------------------------------
# Pure-JAX reference (same math, via lax.conv) for validation
# ----------------------------------------------------------------------------
def ref_forward(x_nchw, params, in_channel, depth, stride):
    x = jnp.transpose(x_nchw, (0, 2, 3, 1)).astype(jnp.float32)

    def bn(v, g, b):
        m = jnp.mean(v, axis=(0, 1, 2), keepdims=True)
        var = jnp.mean((v - m) ** 2, axis=(0, 1, 2), keepdims=True)
        return (v - m) / jnp.sqrt(var + EPS) * g.reshape(1, 1, 1, -1) \
            + b.reshape(1, 1, 1, -1)

    def conv(v, w, s, p):
        return jax.lax.conv_general_dilated(
            v, w, (s, s), ((p, p), (p, p)),
            dimension_numbers=("NHWC", "HWIO", "NHWC"))

    r = bn(x, params["g1"], params["b1"])
    r = conv(r, params["w1"], 1, 1)
    r = bn(r, params["g2"], params["b2"])
    a = params["a"].reshape(1, 1, 1, -1)
    r = jnp.maximum(r, 0.0) + a * jnp.minimum(r, 0.0)
    r = conv(r, params["w2"], stride, 1)
    r = bn(r, params["g3"], params["b3"])

    if in_channel == depth:
        sc = x[:, ::stride, ::stride, :]          # MaxPool2d(1, stride)
    else:
        sc = conv(x, params["ws"].reshape(1, 1, in_channel, depth), stride, 0)
        sc = bn(sc, params["gs"], params["bs"])

    return jnp.transpose(r + sc, (0, 3, 1, 2))


# ----------------------------------------------------------------------------
def make_params(key, in_channel, depth):
    ks = jax.random.split(key, 12)
    return {
        "g1": 1.0 + 0.1 * jax.random.normal(ks[0], (in_channel,), jnp.float32),
        "b1": 0.1 * jax.random.normal(ks[1], (in_channel,), jnp.float32),
        "w1": 0.1 * jax.random.normal(ks[2], (3, 3, in_channel, depth), jnp.float32),
        "g2": 1.0 + 0.1 * jax.random.normal(ks[3], (depth,), jnp.float32),
        "b2": 0.1 * jax.random.normal(ks[4], (depth,), jnp.float32),
        "a": 0.25 + 0.05 * jax.random.normal(ks[5], (depth,), jnp.float32),
        "w2": 0.1 * jax.random.normal(ks[6], (3, 3, depth, depth), jnp.float32),
        "g3": 1.0 + 0.1 * jax.random.normal(ks[7], (depth,), jnp.float32),
        "b3": 0.1 * jax.random.normal(ks[8], (depth,), jnp.float32),
        # shortcut 1x1 conv + BN (used only when in_channel != depth)
        "ws": 0.1 * jax.random.normal(ks[9], (in_channel, depth), jnp.float32),
        "gs": 1.0 + 0.1 * jax.random.normal(ks[10], (depth,), jnp.float32),
        "bs": 0.1 * jax.random.normal(ks[11], (depth,), jnp.float32),
    }


if __name__ == "__main__":
    key = jax.random.PRNGKey(0)
    N, H, W = 2, 16, 16

    # --- Config 1: projection shortcut (Conv1x1 + BN), stride 2, bf16 MXU ---
    in_channel, depth, stride = 4, 8, 2
    kx, kp, key = jax.random.split(key, 3)
    x = jax.random.normal(kx, (N, in_channel, H, W), jnp.float32)
    params = make_params(kp, in_channel, depth)
    run = jax.jit(functools.partial(
        basic_block_ir, in_channel=in_channel, depth=depth, stride=stride,
        block_rows=8, block_pix=64, matmul_dtype=jnp.bfloat16))
    out = jax.block_until_ready(run(x, params))
    ref = ref_forward(x, params, in_channel, depth, stride)
    assert out.shape == ref.shape == (N, depth, H // stride, W // stride)
    # bf16 MXU operands + bf16 storage of the conv1 intermediate
    if not jnp.allclose(out, ref, atol=4e-2, rtol=4e-2):
        err = float(jnp.max(jnp.abs(out - ref)))
        raise AssertionError(f"mismatch (projection shortcut): max err {err}")

    # --- Config 2: identity shortcut (MaxPool2d(1, 1)), stride 1, f32 MXU ---
    in_channel2, depth2, stride2 = 8, 8, 1
    kx2, kp2, key = jax.random.split(key, 3)
    x2 = jax.random.normal(kx2, (N, in_channel2, H, W), jnp.float32)
    params2 = make_params(kp2, in_channel2, depth2)
    run2 = jax.jit(functools.partial(
        basic_block_ir, in_channel=in_channel2, depth=depth2, stride=stride2,
        block_rows=8, block_pix=64, matmul_dtype=jnp.float32))
    out2 = jax.block_until_ready(run2(x2, params2))
    ref2 = ref_forward(x2, params2, in_channel2, depth2, stride2)
    assert out2.shape == ref2.shape == (N, depth2, H, W)
    if not jnp.allclose(out2, ref2, atol=2e-3, rtol=2e-3):
        err = float(jnp.max(jnp.abs(out2 - ref2)))
        raise AssertionError(f"mismatch (identity shortcut): max err {err}")

    print("KERNEL_OK")
</pallas_src>

<mosaic_0001>
module attributes {stable_mosaic.version = 11 : i64} {
  func.func @conv3x3_s1_kernel(%arg0: i32, %arg1: memref<1x10x18x4xbf16, #tpu.memory_space<vmem>>, %arg2: memref<36x8xbf16, #tpu.memory_space<vmem>>, %arg3: memref<1x128x8xbf16, #tpu.memory_space<vmem>>, %arg4: memref<1x2x8xf32, #tpu.memory_space<vmem>>, %arg5: memref<128x36xbf16, #tpu.memory_space<vmem>>) attributes {dimension_semantics = [#tpu.dimension_semantics<parallel>], iteration_bounds = array<i64: 4>, scalar_prefetch = 0 : i64, scratch_operands = 1 : i64, tpu.core_type = #tpu.core_type<tc>, window_params = [{transform_indices = @transform_0, window_bounds = array<i64: 1, 10, 18, 4>}, {pipeline_mode = #tpu.pipeline_mode<synchronous>, transform_indices = @transform_1, window_bounds = array<i64: 36, 8>}, {transform_indices = @transform_2, window_bounds = array<i64: 1, 128, 8>}, {transform_indices = @transform_3, window_bounds = array<i64: 1, 2, 8>}]} {
    %c0 = arith.constant 0 : index
    %c0_0 = arith.constant 0 : index
    %c0_1 = arith.constant 0 : index
    %c0_2 = arith.constant 0 : index
    %0 = vector.load %arg1[%c0, %c0_0, %c0_1, %c0_2] : memref<1x10x18x4xbf16, #tpu.memory_space<vmem>>, vector<1x8x16x4xbf16>
    %1 = vector.shape_cast %0 : vector<1x8x16x4xbf16> to vector<8x16x4xbf16>
    %2 = vector.shape_cast %1 : vector<8x16x4xbf16> to vector<128x4xbf16>
    %c0_3 = arith.constant 0 : index
    %c0_4 = arith.constant 0 : index
    %3 = vector.load %arg5[%c0_3, %c0_4] : memref<128x36xbf16, #tpu.memory_space<vmem>>, vector<128x4xbf16>
    tpu.vector_store %arg5[%c0_3, %c0_4], %2 {strides = array<i32>} : memref<128x36xbf16, #tpu.memory_space<vmem>>, vector<128x4xbf16>,
    %c0_5 = arith.constant 0 : index
    %c0_6 = arith.constant 0 : index
    %c1 = arith.constant 1 : index
    %c0_7 = arith.constant 0 : index
    %4 = vector.load %arg1[%c0_5, %c0_6, %c1, %c0_7] : memref<1x10x18x4xbf16, #tpu.memory_space<vmem>>, vector<1x8x16x4xbf16>
    %5 = vector.shape_cast %4 : vector<1x8x16x4xbf16> to vector<8x16x4xbf16>
    %6 = vector.shape_cast %5 : vector<8x16x4xbf16> to vector<128x4xbf16>
    %c0_8 = arith.constant 0 : index
    %c4 = arith.constant 4 : index
    %7 = vector.load %arg5[%c0_8, %c4] : memref<128x36xbf16, #tpu.memory_space<vmem>>, vector<128x4xbf16>
    tpu.vector_store %arg5[%c0_8, %c4], %6 {strides = array<i32>} : memref<128x36xbf16, #tpu.memory_space<vmem>>, vector<128x4xbf16>,
    %c0_9 = arith.constant 0 : index
    %c0_10 = arith.constant 0 : index
    %c2 = arith.constant 2 : index
    %c0_11 = arith.constant 0 : index
    %8 = vector.load %arg1[%c0_9, %c0_10, %c2, %c0_11] : memref<1x10x18x4xbf16, #tpu.memory_space<vmem>>, vector<1x8x16x4xbf16>
    %9 = vector.shape_cast %8 : vector<1x8x16x4xbf16> to vector<8x16x4xbf16>
    %10 = vector.shape_cast %9 : vector<8x16x4xbf16> to vector<128x4xbf16>
    %c0_12 = arith.constant 0 : index
    %c8 = arith.constant 8 : index
    %11 = vector.load %arg5[%c0_12, %c8] : memref<128x36xbf16, #tpu.memory_space<vmem>>, vector<128x4xbf16>
    tpu.vector_store %arg5[%c0_12, %c8], %10 {strides = array<i32>} : memref<128x36xbf16, #tpu.memory_space<vmem>>, vector<128x4xbf16>,
    %c0_13 = arith.constant 0 : index
    %c1_14 = arith.constant 1 : index
    %c0_15 = arith.constant 0 : index
    %c0_16 = arith.constant 0 : index
    %12 = vector.load %arg1[%c0_13, %c1_14, %c0_15, %c0_16] : memref<1x10x18x4xbf16, #tpu.memory_space<vmem>>, vector<1x8x16x4xbf16>
    %13 = vector.shape_cast %12 : vector<1x8x16x4xbf16> to vector<8x16x4xbf16>
    %14 = vector.shape_cast %13 : vector<8x16x4xbf16> to vector<128x4xbf16>
    %c0_17 = arith.constant 0 : index
    %c12 = arith.constant 12 : index
    %15 = vector.load %arg5[%c0_17, %c12] : memref<128x36xbf16, #tpu.memory_space<vmem>>, vector<128x4xbf16>
    tpu.vector_store %arg5[%c0_17, %c12], %14 {strides = array<i32>} : memref<128x36xbf16, #tpu.memory_space<vmem>>, vector<128x4xbf16>,
    %c0_18 = arith.constant 0 : index
    %c1_19 = arith.constant 1 : index
    %c1_20 = arith.constant 1 : index
    %c0_21 = arith.constant 0 : index
    %16 = vector.load %arg1[%c0_18, %c1_19, %c1_20, %c0_21] : memref<1x10x18x4xbf16, #tpu.memory_space<vmem>>, vector<1x8x16x4xbf16>
    %17 = vector.shape_cast %16 : vector<1x8x16x4xbf16> to vector<8x16x4xbf16>
    %18 = vector.shape_cast %17 : vector<8x16x4xbf16> to vector<128x4xbf16>
    %c0_22 = arith.constant 0 : index
    %c16 = arith.constant 16 : index
    %19 = vector.load %arg5[%c0_22, %c16] : memref<128x36xbf16, #tpu.memory_space<vmem>>, vector<128x4xbf16>
    tpu.vector_store %arg5[%c0_22, %c16], %18 {strides = array<i32>} : memref<128x36xbf16, #tpu.memory_space<vmem>>, vector<128x4xbf16>,
    %c0_23 = arith.constant 0 : index
    %c1_24 = arith.constant 1 : index
    %c2_25 = arith.constant 2 : index
    %c0_26 = arith.constant 0 : index
    %20 = vector.load %arg1[%c0_23, %c1_24, %c2_25, %c0_26] : memref<1x10x18x4xbf16, #tpu.memory_space<vmem>>, vector<1x8x16x4xbf16>
    %21 = vector.shape_cast %20 : vector<1x8x16x4xbf16> to vector<8x16x4xbf16>
    %22 = vector.shape_cast %21 : vector<8x16x4xbf16> to vector<128x4xbf16>
    %c0_27 = arith.constant 0 : index
    %c20 = arith.constant 20 : index
    %23 = vector.load %arg5[%c0_27, %c20] : memref<128x36xbf16, #tpu.memory_space<vmem>>, vector<128x4xbf16>
    tpu.vector_store %arg5[%c0_27, %c20], %22 {strides = array<i32>} : memref<128x36xbf16, #tpu.memory_space<vmem>>, vector<128x4xbf16>,
    %c0_28 = arith.constant 0 : index
    %c2_29 = arith.constant 2 : index
    %c0_30 = arith.constant 0 : index
    %c0_31 = arith.constant 0 : index
    %24 = vector.load %arg1[%c0_28, %c2_29, %c0_30, %c0_31] : memref<1x10x18x4xbf16, #tpu.memory_space<vmem>>, vector<1x8x16x4xbf16>
    %25 = vector.shape_cast %24 : vector<1x8x16x4xbf16> to vector<8x16x4xbf16>
    %26 = vector.shape_cast %25 : vector<8x16x4xbf16> to vector<128x4xbf16>
    %c0_32 = arith.constant 0 : index
    %c24 = arith.constant 24 : index
    %27 = vector.load %arg5[%c0_32, %c24] : memref<128x36xbf16, #tpu.memory_space<vmem>>, vector<128x4xbf16>
    tpu.vector_store %arg5[%c0_32, %c24], %26 {strides = array<i32>} : memref<128x36xbf16, #tpu.memory_space<vmem>>, vector<128x4xbf16>,
    %c0_33 = arith.constant 0 : index
    %c2_34 = arith.constant 2 : index
    %c1_35 = arith.constant 1 : index
    %c0_36 = arith.constant 0 : index
    %28 = vector.load %arg1[%c0_33, %c2_34, %c1_35, %c0_36] : memref<1x10x18x4xbf16, #tpu.memory_space<vmem>>, vector<1x8x16x4xbf16>
    %29 = vector.shape_cast %28 : vector<1x8x16x4xbf16> to vector<8x16x4xbf16>
    %30 = vector.shape_cast %29 : vector<8x16x4xbf16> to vector<128x4xbf16>
    %c0_37 = arith.constant 0 : index
    %c28 = arith.constant 28 : index
    %31 = vector.load %arg5[%c0_37, %c28] : memref<128x36xbf16, #tpu.memory_space<vmem>>, vector<128x4xbf16>
    tpu.vector_store %arg5[%c0_37, %c28], %30 {strides = array<i32>} : memref<128x36xbf16, #tpu.memory_space<vmem>>, vector<128x4xbf16>,
    %c0_38 = arith.constant 0 : index
    %c2_39 = arith.constant 2 : index
    %c2_40 = arith.constant 2 : index
    %c0_41 = arith.constant 0 : index
    %32 = vector.load %arg1[%c0_38, %c2_39, %c2_40, %c0_41] : memref<1x10x18x4xbf16, #tpu.memory_space<vmem>>, vector<1x8x16x4xbf16>
    %33 = vector.shape_cast %32 : vector<1x8x16x4xbf16> to vector<8x16x4xbf16>
    %34 = vector.shape_cast %33 : vector<8x16x4xbf16> to vector<128x4xbf16>
    %c0_42 = arith.constant 0 : index
    %c32 = arith.constant 32 : index
    %35 = vector.load %arg5[%c0_42, %c32] : memref<128x36xbf16, #tpu.memory_space<vmem>>, vector<128x4xbf16>
    tpu.vector_store %arg5[%c0_42, %c32], %34 {strides = array<i32>} : memref<128x36xbf16, #tpu.memory_space<vmem>>, vector<128x4xbf16>,
    %c0_43 = arith.constant 0 : index
    %c0_44 = arith.constant 0 : index
    %36 = vector.load %arg5[%c0_43, %c0_44] : memref<128x36xbf16, #tpu.memory_space<vmem>>, vector<128x36xbf16>
    %c0_45 = arith.constant 0 : index
    %c0_46 = arith.constant 0 : index
    %37 = vector.load %arg2[%c0_45, %c0_46] : memref<36x8xbf16, #tpu.memory_space<vmem>>, vector<36x8xbf16>
    %cst = arith.constant dense<0.000000e+00> : vector<128x8xf32>
    %38 = tpu.matmul %36, %37, %cst {dimension_numbers = #tpu.dot_dimension_numbers<[1], [0], [0], [1], [0, 0, 1, 1], [], []>} : vector<128x36xbf16>, vector<36x8xbf16>, vector<128x8xf32> -> vector<128x8xf32>
    %39 = arith.truncf %38 : vector<128x8xf32> to vector<128x8xbf16>
    %c0_47 = arith.constant 0 : index
    %c0_48 = arith.constant 0 : index
    %c0_49 = arith.constant 0 : index
    %40 = vector.load %arg3[%c0_47, %c0_48, %c0_49] : memref<1x128x8xbf16, #tpu.memory_space<vmem>>, vector<1x128x8xbf16>
    %41 = vector.shape_cast %40 : vector<1x128x8xbf16> to vector<128x8xbf16>
    %42 = vector.shape_cast %39 : vector<128x8xbf16> to vector<1x128x8xbf16>
    tpu.vector_store %arg3[%c0_47, %c0_48, %c0_49], %42 {strides = array<i32>} : memref<1x128x8xbf16, #tpu.memory_space<vmem>>, vector<1x128x8xbf16>,
    %cst_50 = arith.constant dense<0.000000e+00> : vector<8xf32>
    %43 = vector.multi_reduction <add>, %38, %cst_50 [0] : vector<128x8xf32> to vector<8xf32>
    %44 = vector.shape_cast %43 : vector<8xf32> to vector<1x8xf32>
    %c0_51 = arith.constant 0 : index
    %c0_52 = arith.constant 0 : index
    %c0_53 = arith.constant 0 : index
    %45 = vector.load %arg4[%c0_51, %c0_52, %c0_53] : memref<1x2x8xf32, #tpu.memory_space<vmem>>, vector<1x1x8xf32>
    %46 = vector.shape_cast %45 : vector<1x1x8xf32> to vector<1x8xf32>
    %47 = vector.shape_cast %44 : vector<1x8xf32> to vector<1x1x8xf32>
    tpu.vector_store %arg4[%c0_51, %c0_52, %c0_53], %47 {strides = array<i32>} : memref<1x2x8xf32, #tpu.memory_space<vmem>>, vector<1x1x8xf32>,
    %48 = arith.mulf %38, %38 : vector<128x8xf32>
    %cst_54 = arith.constant dense<0.000000e+00> : vector<8xf32>
    %49 = vector.multi_reduction <add>, %48, %cst_54 [0] : vector<128x8xf32> to vector<8xf32>
    %50 = vector.shape_cast %49 : vector<8xf32> to vector<1x8xf32>
    %c0_55 = arith.constant 0 : index
    %c1_56 = arith.constant 1 : index
    %c0_57 = arith.constant 0 : index
    %51 = vector.load %arg4[%c0_55, %c1_56, %c0_57] : memref<1x2x8xf32, #tpu.memory_space<vmem>>, vector<1x1x8xf32>
    %52 = vector.shape_cast %51 : vector<1x1x8xf32> to vector<1x8xf32>
    %53 = vector.shape_cast %50 : vector<1x8xf32> to vector<1x1x8xf32>
    tpu.vector_store %arg4[%c0_55, %c1_56, %c0_57], %53 {strides = array<i32>} : memref<1x2x8xf32, #tpu.memory_space<vmem>>, vector<1x1x8xf32>,
    return
  }
  func.func @transform_0(%arg0: i32) -> (i32, i32, i32, i32) {
    %c0_i32 = arith.constant 0 : i32
    %c0_i32_0 = arith.constant 0 : i32
    %c0_i32_1 = arith.constant 0 : i32
    %c0_i32_2 = arith.constant 0 : i32
    return %arg0, %c0_i32, %c0_i32_0, %c0_i32_1 : i32, i32, i32, i32
  }
  func.func @transform_1(%arg0: i32) -> (i32, i32) {
    %c0_i32 = arith.constant 0 : i32
    %c0_i32_0 = arith.constant 0 : i32
    %c0_i32_1 = arith.constant 0 : i32
    return %c0_i32, %c0_i32_0 : i32, i32
  }
  func.func @transform_2(%arg0: i32) -> (i32, i32, i32) {
    %c0_i32 = arith.constant 0 : i32
    %c0_i32_0 = arith.constant 0 : i32
    %c0_i32_1 = arith.constant 0 : i32
    return %arg0, %c0_i32, %c0_i32_0 : i32, i32, i32
  }
  func.func @transform_3(%arg0: i32) -> (i32, i32, i32) {
    %c0_i32 = arith.constant 0 : i32
    %c0_i32_0 = arith.constant 0 : i32
    %c0_i32_1 = arith.constant 0 : i32
    return %arg0, %c0_i32, %c0_i32_0 : i32, i32, i32
  }
}

module attributes {stable_mosaic.version = 11 : i64} {
  func.func @matmul_stats_kernel(%arg0: i32, %arg1: memref<64x72xbf16, #tpu.memory_space<vmem>>, %arg2: memref<72x8xbf16, #tpu.memory_space<vmem>>, %arg3: memref<64x8xf32, #tpu.memory_space<vmem>>, %arg4: memref<1x2x8xf32, #tpu.memory_space<vmem>>) attributes {dimension_semantics = [#tpu.dimension_semantics<parallel>], iteration_bounds = array<i64: 2>, scalar_prefetch = 0 : i64, scratch_operands = 0 : i64, tpu.core_type = #tpu.core_type<tc>, window_params = [{transform_indices = @transform_0, window_bounds = array<i64: 64, 72>}, {pipeline_mode = #tpu.pipeline_mode<synchronous>, transform_indices = @transform_1, window_bounds = array<i64: 72, 8>}, {transform_indices = @transform_2, window_bounds = array<i64: 64, 8>}, {transform_indices = @transform_3, window_bounds = array<i64: 1, 2, 8>}]} {
    %c0 = arith.constant 0 : index
    %c0_0 = arith.constant 0 : index
    %0 = vector.load %arg1[%c0, %c0_0] : memref<64x72xbf16, #tpu.memory_space<vmem>>, vector<64x72xbf16>
    %c0_1 = arith.constant 0 : index
    %c0_2 = arith.constant 0 : index
    %1 = vector.load %arg2[%c0_1, %c0_2] : memref<72x8xbf16, #tpu.memory_space<vmem>>, vector<72x8xbf16>
    %cst = arith.constant dense<0.000000e+00> : vector<64x8xf32>
    %2 = tpu.matmul %0, %1, %cst {dimension_numbers = #tpu.dot_dimension_numbers<[1], [0], [0], [1], [0, 0, 1, 1], [], []>} : vector<64x72xbf16>, vector<72x8xbf16>, vector<64x8xf32> -> vector<64x8xf32>
    %c0_3 = arith.constant 0 : index
    %c0_4 = arith.constant 0 : index
    %3 = vector.load %arg3[%c0_3, %c0_4] : memref<64x8xf32, #tpu.memory_space<vmem>>, vector<64x8xf32>
    tpu.vector_store %arg3[%c0_3, %c0_4], %2 {strides = array<i32>} : memref<64x8xf32, #tpu.memory_space<vmem>>, vector<64x8xf32>,
    %cst_5 = arith.constant dense<0.000000e+00> : vector<8xf32>
    %4 = vector.multi_reduction <add>, %2, %cst_5 [0] : vector<64x8xf32> to vector<8xf32>
    %5 = vector.shape_cast %4 : vector<8xf32> to vector<1x8xf32>
    %c0_6 = arith.constant 0 : index
    %c0_7 = arith.constant 0 : index
    %c0_8 = arith.constant 0 : index
    %6 = vector.load %arg4[%c0_6, %c0_7, %c0_8] : memref<1x2x8xf32, #tpu.memory_space<vmem>>, vector<1x1x8xf32>
    %7 = vector.shape_cast %6 : vector<1x1x8xf32> to vector<1x8xf32>
    %8 = vector.shape_cast %5 : vector<1x8xf32> to vector<1x1x8xf32>
    tpu.vector_store %arg4[%c0_6, %c0_7, %c0_8], %8 {strides = array<i32>} : memref<1x2x8xf32, #tpu.memory_space<vmem>>, vector<1x1x8xf32>,
    %9 = arith.mulf %2, %2 : vector<64x8xf32>
    %cst_9 = arith.constant dense<0.000000e+00> : vector<8xf32>
    %10 = vector.multi_reduction <add>, %9, %cst_9 [0] : vector<64x8xf32> to vector<8xf32>
    %11 = vector.shape_cast %10 : vector<8xf32> to vector<1x8xf32>
    %c0_10 = arith.constant 0 : index
    %c1 = arith.constant 1 : index
    %c0_11 = arith.constant 0 : index
    %12 = vector.load %arg4[%c0_10, %c1, %c0_11] : memref<1x2x8xf32, #tpu.memory_space<vmem>>, vector<1x1x8xf32>
    %13 = vector.shape_cast %12 : vector<1x1x8xf32> to vector<1x8xf32>
    %14 = vector.shape_cast %11 : vector<1x8xf32> to vector<1x1x8xf32>
    tpu.vector_store %arg4[%c0_10, %c1, %c0_11], %14 {strides = array<i32>} : memref<1x2x8xf32, #tpu.memory_space<vmem>>, vector<1x1x8xf32>,
    return
  }
  func.func @transform_0(%arg0: i32) -> (i32, i32) {
    %c0_i32 = arith.constant 0 : i32
    %c0_i32_0 = arith.constant 0 : i32
    return %arg0, %c0_i32 : i32, i32
  }
  func.func @transform_1(%arg0: i32) -> (i32, i32) {
    %c0_i32 = arith.constant 0 : i32
    %c0_i32_0 = arith.constant 0 : i32
    %c0_i32_1 = arith.constant 0 : i32
    return %c0_i32, %c0_i32_0 : i32, i32
  }
  func.func @transform_2(%arg0: i32) -> (i32, i32) {
    %c0_i32 = arith.constant 0 : i32
    %c0_i32_0 = arith.constant 0 : i32
    return %arg0, %c0_i32 : i32, i32
  }
  func.func @transform_3(%arg0: i32) -> (i32, i32, i32) {
    %c0_i32 = arith.constant 0 : i32
    %c0_i32_0 = arith.constant 0 : i32
    %c0_i32_1 = arith.constant 0 : i32
    return %arg0, %c0_i32, %c0_i32_0 : i32, i32, i32
  }
}

module attributes {stable_mosaic.version = 11 : i64} {
  func.func @matmul_stats_kernel(%arg0: i32, %arg1: memref<64x4xbf16, #tpu.memory_space<vmem>>, %arg2: memref<4x8xbf16, #tpu.memory_space<vmem>>, %arg3: memref<64x8xf32, #tpu.memory_space<vmem>>, %arg4: memref<1x2x8xf32, #tpu.memory_space<vmem>>) attributes {dimension_semantics = [#tpu.dimension_semantics<parallel>], iteration_bounds = array<i64: 2>, scalar_prefetch = 0 : i64, scratch_operands = 0 : i64, tpu.core_type = #tpu.core_type<tc>, window_params = [{transform_indices = @transform_0, window_bounds = array<i64: 64, 4>}, {pipeline_mode = #tpu.pipeline_mode<synchronous>, transform_indices = @transform_1, window_bounds = array<i64: 4, 8>}, {transform_indices = @transform_2, window_bounds = array<i64: 64, 8>}, {transform_indices = @transform_3, window_bounds = array<i64: 1, 2, 8>}]} {
    %c0 = arith.constant 0 : index
    %c0_0 = arith.constant 0 : index
    %0 = vector.load %arg1[%c0, %c0_0] : memref<64x4xbf16, #tpu.memory_space<vmem>>, vector<64x4xbf16>
    %c0_1 = arith.constant 0 : index
    %c0_2 = arith.constant 0 : index
    %1 = vector.load %arg2[%c0_1, %c0_2] : memref<4x8xbf16, #tpu.memory_space<vmem>>, vector<4x8xbf16>
    %cst = arith.constant dense<0.000000e+00> : vector<64x8xf32>
    %2 = tpu.matmul %0, %1, %cst {dimension_numbers = #tpu.dot_dimension_numbers<[1], [0], [0], [1], [0, 0, 1, 1], [], []>} : vector<64x4xbf16>, vector<4x8xbf16>, vector<64x8xf32> -> vector<64x8xf32>
    %c0_3 = arith.constant 0 : index
    %c0_4 = arith.constant 0 : index
    %3 = vector.load %arg3[%c0_3, %c0_4] : memref<64x8xf32, #tpu.memory_space<vmem>>, vector<64x8xf32>
    tpu.vector_store %arg3[%c0_3, %c0_4], %2 {strides = array<i32>} : memref<64x8xf32, #tpu.memory_space<vmem>>, vector<64x8xf32>,
    %cst_5 = arith.constant dense<0.000000e+00> : vector<8xf32>
    %4 = vector.multi_reduction <add>, %2, %cst_5 [0] : vector<64x8xf32> to vector<8xf32>
    %5 = vector.shape_cast %4 : vector<8xf32> to vector<1x8xf32>
    %c0_6 = arith.constant 0 : index
    %c0_7 = arith.constant 0 : index
    %c0_8 = arith.constant 0 : index
    %6 = vector.load %arg4[%c0_6, %c0_7, %c0_8] : memref<1x2x8xf32, #tpu.memory_space<vmem>>, vector<1x1x8xf32>
    %7 = vector.shape_cast %6 : vector<1x1x8xf32> to vector<1x8xf32>
    %8 = vector.shape_cast %5 : vector<1x8xf32> to vector<1x1x8xf32>
    tpu.vector_store %arg4[%c0_6, %c0_7, %c0_8], %8 {strides = array<i32>} : memref<1x2x8xf32, #tpu.memory_space<vmem>>, vector<1x1x8xf32>,
    %9 = arith.mulf %2, %2 : vector<64x8xf32>
    %cst_9 = arith.constant dense<0.000000e+00> : vector<8xf32>
    %10 = vector.multi_reduction <add>, %9, %cst_9 [0] : vector<64x8xf32> to vector<8xf32>
    %11 = vector.shape_cast %10 : vector<8xf32> to vector<1x8xf32>
    %c0_10 = arith.constant 0 : index
    %c1 = arith.constant 1 : index
    %c0_11 = arith.constant 0 : index
    %12 = vector.load %arg4[%c0_10, %c1, %c0_11] : memref<1x2x8xf32, #tpu.memory_space<vmem>>, vector<1x1x8xf32>
    %13 = vector.shape_cast %12 : vector<1x1x8xf32> to vector<1x8xf32>
    %14 = vector.shape_cast %11 : vector<1x8xf32> to vector<1x1x8xf32>
    tpu.vector_store %arg4[%c0_10, %c1, %c0_11], %14 {strides = array<i32>} : memref<1x2x8xf32, #tpu.memory_space<vmem>>, vector<1x1x8xf32>,
    return
  }
  func.func @transform_0(%arg0: i32) -> (i32, i32) {
    %c0_i32 = arith.constant 0 : i32
    %c0_i32_0 = arith.constant 0 : i32
    return %arg0, %c0_i32 : i32, i32
  }
  func.func @transform_1(%arg0: i32) -> (i32, i32) {
    %c0_i32 = arith.constant 0 : i32
    %c0_i32_0 = arith.constant 0 : i32
    %c0_i32_1 = arith.constant 0 : i32
    return %c0_i32, %c0_i32_0 : i32, i32
  }
  func.func @transform_2(%arg0: i32) -> (i32, i32) {
    %c0_i32 = arith.constant 0 : i32
    %c0_i32_0 = arith.constant 0 : i32
    return %arg0, %c0_i32 : i32, i32
  }
  func.func @transform_3(%arg0: i32) -> (i32, i32, i32) {
    %c0_i32 = arith.constant 0 : i32
    %c0_i32_0 = arith.constant 0 : i32
    %c0_i32_1 = arith.constant 0 : i32
    return %arg0, %c0_i32, %c0_i32_0 : i32, i32, i32
  }
}

module attributes {stable_mosaic.version = 11 : i64} {
  func.func @bn_add_proj_kernel(%arg0: i32, %arg1: memref<64x8xf32, #tpu.memory_space<vmem>>, %arg2: memref<64x8xf32, #tpu.memory_space<vmem>>, %arg3: memref<4x8xf32, #tpu.memory_space<vmem>>, %arg4: memref<64x8xf32, #tpu.memory_space<vmem>>) attributes {dimension_semantics = [#tpu.dimension_semantics<parallel>], iteration_bounds = array<i64: 2>, scalar_prefetch = 0 : i64, scratch_operands = 0 : i64, tpu.core_type = #tpu.core_type<tc>, window_params = [{transform_indices = @transform_0, window_bounds = array<i64: 64, 8>}, {transform_indices = @transform_1, window_bounds = array<i64: 64, 8>}, {pipeline_mode = #tpu.pipeline_mode<synchronous>, transform_indices = @transform_2, window_bounds = array<i64: 4, 8>}, {transform_indices = @transform_3, window_bounds = array<i64: 64, 8>}]} {
    %c0 = arith.constant 0 : index
    %c0_0 = arith.constant 0 : index
    %0 = vector.load %arg1[%c0, %c0_0] : memref<64x8xf32, #tpu.memory_space<vmem>>, vector<64x8xf32>
    %c0_1 = arith.constant 0 : index
    %c0_2 = arith.constant 0 : index
    %1 = vector.load %arg3[%c0_1, %c0_2] : memref<4x8xf32, #tpu.memory_space<vmem>>, vector<1x8xf32>
    %2 = vector.broadcast %1 : vector<1x8xf32> to vector<64x8xf32>
    %3 = arith.mulf %0, %2 : vector<64x8xf32>
    %c1 = arith.constant 1 : index
    %c0_3 = arith.constant 0 : index
    %4 = vector.load %arg3[%c1, %c0_3] : memref<4x8xf32, #tpu.memory_space<vmem>>, vector<1x8xf32>
    %5 = vector.broadcast %4 : vector<1x8xf32> to vector<64x8xf32>
    %6 = arith.addf %3, %5 : vector<64x8xf32>
    %c0_4 = arith.constant 0 : index
    %c0_5 = arith.constant 0 : index
    %7 = vector.load %arg2[%c0_4, %c0_5] : memref<64x8xf32, #tpu.memory_space<vmem>>, vector<64x8xf32>
    %c2 = arith.constant 2 : index
    %c0_6 = arith.constant 0 : index
    %8 = vector.load %arg3[%c2, %c0_6] : memref<4x8xf32, #tpu.memory_space<vmem>>, vector<1x8xf32>
    %9 = vector.broadcast %8 : vector<1x8xf32> to vector<64x8xf32>
    %10 = arith.mulf %7, %9 : vector<64x8xf32>
    %11 = arith.addf %6, %10 : vector<64x8xf32>
    %c3 = arith.constant 3 : index
    %c0_7 = arith.constant 0 : index
    %12 = vector.load %arg3[%c3, %c0_7] : memref<4x8xf32, #tpu.memory_space<vmem>>, vector<1x8xf32>
    %13 = vector.broadcast %12 : vector<1x8xf32> to vector<64x8xf32>
    %14 = arith.addf %11, %13 : vector<64x8xf32>
    %c0_8 = arith.constant 0 : index
    %c0_9 = arith.constant 0 : index
    %15 = vector.load %arg4[%c0_8, %c0_9] : memref<64x8xf32, #tpu.memory_space<vmem>>, vector<64x8xf32>
    tpu.vector_store %arg4[%c0_8, %c0_9], %14 {strides = array<i32>} : memref<64x8xf32, #tpu.memory_space<vmem>>, vector<64x8xf32>,
    return
  }
  func.func @transform_0(%arg0: i32) -> (i32, i32) {
    %c0_i32 = arith.constant 0 : i32
    %c0_i32_0 = arith.constant 0 : i32
    return %arg0, %c0_i32 : i32, i32
  }
  func.func @transform_1(%arg0: i32) -> (i32, i32) {
    %c0_i32 = arith.constant 0 : i32
    %c0_i32_0 = arith.constant 0 : i32
    return %arg0, %c0_i32 : i32, i32
  }
  func.func @transform_2(%arg0: i32) -> (i32, i32) {
    %c0_i32 = arith.constant 0 : i32
    %c0_i32_0 = arith.constant 0 : i32
    %c0_i32_1 = arith.constant 0 : i32
    return %c0_i32, %c0_i32_0 : i32, i32
  }
  func.func @transform_3(%arg0: i32) -> (i32, i32) {
    %c0_i32 = arith.constant 0 : i32
    %c0_i32_0 = arith.constant 0 : i32
    return %arg0, %c0_i32 : i32, i32
  }
}

</mosaic_0001>

<llo_original>
// kernel: basic_block_ir.5
$region0: #{basic_block_ir.5}
  #allocation0 [shape = 'u32[]', space=smem, size = 0x4, offset = 0x4, fixed_abs, tag = 'smem constant byte address 0x4 - core index']
  #allocation1 [shape = 'u32[144,128]{1,0:T(1,128)}', space=vmem, size = 0x12000, scoped, tag = 'internal scratch']
  %s0 = inlined_call_operand.vmem [shape: bf16[128,72], index: 0, kind: input, shape index: {}]
  %s1 = inlined_call_operand.vmem [shape: bf16[72,8], index: 1, kind: input, shape index: {}]
  %s2 = inlined_call_operand.vmem [shape: f32[128,8], index: 2, kind: output, shape index: {0}]
  %s3 = inlined_call_operand.vmem [shape: f32[2,2,8], index: 3, kind: output, shape index: {1}]
  %4 = xla_tuple %s2, %s3
  %s5 = sld [smem:[#allocation0]]
  $region49: #{basic_block_ir.5} parent=0
    _
  %s7 = ssub.s32 1, %s5
  %s8 = scalar_select 0, %s7, %s5
  loop: start=0, step=1, limit=4
  $region2: #{basic_block_ir.5} parent=0 // loop_pre_header
    _
  $region3: #{basic_block_ir.5} parent=0 // loop_header
    %s10 = sphi 0, %s14
    %p11 = scmp.ge.s32.totalorder %s10, 4
    %s20 = sphi 0, %s22
    %s23 = sphi 0, %s20
    %s24 = sphi 0, %s23
    %s40 = sphi 0, %s24
    %s44 = sphi 0, %s44
    %s46 = sphi 0, %s44
    %s47 = sphi 0, %s46
    %s61 = sphi 0, %s47
    %s67 = sphi 0, %s69
    %s70 = sphi 0, %s67
    %s71 = sphi 0, %s70
    %s87 = sphi 0, %s71
    %s93 = sphi 0, %s95
    %s96 = sphi 0, %s93
    %s97 = sphi 0, %s96
    %s113 = sphi 0, %s97
  $region4: #{basic_block_ir.5} parent=0 // loop_header_branch
    %13 = sbr.rel (%p11) target = $region8
  $region5: #{basic_block_ir.5} parent=0 // loop_body
    %s15 = ssub.s32 %s10, 1
    %s16 = ssub.s32 %s10, 2
    %s17 = sadd.s32 %s10, 1
    %s18 = ssub.s32 %s10, %s17
    %p19 = scmp.eq.s32.totalorder %s18, 0
    %s21 = sadd.s32 %s20, 1
    %s22 = scalar_select %p19, %s20, %s21
    %p25 = pneg %p19
    %p26 = scmp.eq.s32.totalorder %s10, 1
    %p27 = por %p25, %p26
    %p28 = scmp.ne.s32.totalorder %s20, %s23
    %p29 = scmp.eq.s32.totalorder %s10, 0
    %p30 = por %p28, %p29
    %p31 = scmp.ne.s32.totalorder %s20, %s23
    %p32 = scmp.eq.s32.totalorder %s15, 1
    %p33 = por %p31, %p32
    %p34 = scmp.ne.s32.totalorder %s23, %s24
    %p35 = scmp.eq.s32.totalorder %s15, 0
    %p36 = por %p34, %p35
    %p37 = scmp.ne.s32.totalorder %s23, %s24
    %p38 = scmp.eq.s32.totalorder %s16, 1
    %p39 = por %p37, %p38
    %p41 = scmp.ne.s32.totalorder %s24, %s40
    %p42 = scmp.eq.s32.totalorder %s16, 0
    %p43 = por %p41, %p42
    %s45 = sadd.s32 %s44, 1
    %p48 = scmp.eq.s32.totalorder %s10, 1
    %p49 = scmp.ne.s32.totalorder %s44, %s46
    %p50 = scmp.eq.s32.totalorder %s10, 0
    %p51 = por %p49, %p50
    %p52 = scmp.ne.s32.totalorder %s44, %s46
    %p53 = scmp.eq.s32.totalorder %s15, 1
    %p54 = por %p52, %p53
    %p55 = scmp.ne.s32.totalorder %s46, %s47
    %p56 = scmp.eq.s32.totalorder %s15, 0
    %p57 = por %p55, %p56
    %p58 = scmp.ne.s32.totalorder %s46, %s47
    %p59 = scmp.eq.s32.totalorder %s16, 1
    %p60 = por %p58, %p59
    %p62 = scmp.ne.s32.totalorder %s47, %s61
    %p63 = scmp.eq.s32.totalorder %s16, 0
    %p64 = por %p62, %p63
    %s65 = ssub.s32 %s10, %s17
    %p66 = scmp.eq.s32.totalorder %s65, 0
    %s68 = sadd.s32 %s67, 1
    %s69 = scalar_select %p66, %s67, %s68
    %p72 = pneg %p66
    %p73 = scmp.eq.s32.totalorder %s10, 1
    %p74 = por %p72, %p73
    %p75 = scmp.ne.s32.totalorder %s67, %s70
    %p76 = scmp.eq.s32.totalorder %s10, 0
    %p77 = por %p75, %p76
    %p78 = scmp.ne.s32.totalorder %s67, %s70
    %p79 = scmp.eq.s32.totalorder %s15, 1
    %p80 = por %p78, %p79
    %p81 = scmp.ne.s32.totalorder %s70, %s71
    %p82 = scmp.eq.s32.totalorder %s15, 0
    %p83 = por %p81, %p82
    %p84 = scmp.ne.s32.totalorder %s70, %s71
    %p85 = scmp.eq.s32.totalorder %s16, 1
    %p86 = por %p84, %p85
    %p88 = scmp.ne.s32.totalorder %s71, %s87
    %p89 = scmp.eq.s32.totalorder %s16, 0
    %p90 = por %p88, %p89
    %s91 = ssub.s32 %s10, %s17
    %p92 = scmp.eq.s32.totalorder %s91, 0
    %s94 = sadd.s32 %s93, 1
    %s95 = scalar_select %p92, %s93, %s94
    %p98 = pneg %p92
    %p99 = scmp.eq.s32.totalorder %s10, 1
    %p100 = por %p98, %p99
    %p101 = scmp.ne.s32.totalorder %s93, %s96
    %p102 = scmp.eq.s32.totalorder %s10, 0
    %p103 = por %p101, %p102
    %p104 = scmp.ne.s32.totalorder %s93, %s96
    %p105 = scmp.eq.s32.totalorder %s15, 1
    %p106 = por %p104, %p105
    %p107 = scmp.ne.s32.totalorder %s96, %s97
    %p108 = scmp.eq.s32.totalorder %s15, 0
    %p109 = por %p107, %p108
    %p110 = scmp.ne.s32.totalorder %s96, %s97
    %p111 = scmp.eq.s32.totalorder %s16, 1
    %p112 = por %p110, %p111
    %p114 = scmp.ne.s32.totalorder %s97, %s113
    %p115 = scmp.eq.s32.totalorder %s16, 0
    %p116 = por %p114, %p115
    %p117 = scmp.le.s32.totalorder 1, %s10
    %p118 = scmp.lt.s32.totalorder %s10, 3
    %p119 = pnand %p117, %p118
    %p120 = pneg %p119
    // Predicated region
    $region9: #{basic_block_ir.5} parent=5 // pred_check
      _
    $region10: #{basic_block_ir.5} parent=5 // pred_check_branch
      %122 = sbr.rel (%p119) target = $region12
    $region11: #{basic_block_ir.5} parent=5 // pred_region
      %s123 = ssub.s32 %s10, 1
      // Predicated region
      $region13: #{basic_block_ir.5} parent=11 // pred_check
        %p124 = pneg %p57
      $region14: #{basic_block_ir.5} parent=11 // pred_check_branch
        %126 = sbr.rel (%p124) target = $region16
      $region15: #{basic_block_ir.5} parent=11 // pred_region
        _
      $region16: #{basic_block_ir.5} parent=11 // pred_fallthru
        _
    $region12: #{basic_block_ir.5} parent=5 // pred_fallthru
      _
    %p127 = scmp.lt.s32.totalorder %s10, 2
    // Predicated region
    $region17: #{basic_block_ir.5} parent=5 // pred_check
      %p128 = pneg %p127
    $region18: #{basic_block_ir.5} parent=5 // pred_check_branch
      %130 = sbr.rel (%p128) target = $region20
    $region19: #{basic_block_ir.5} parent=5 // pred_region
      // Predicated region
      $region21: #{basic_block_ir.5} parent=19 // pred_check
        %p131 = pneg %p30
      $region22: #{basic_block_ir.5} parent=19 // pred_check_branch
        %133 = sbr.rel (%p131) target = $region24
      $region23: #{basic_block_ir.5} parent=19 // pred_region
        %s134 = smul.u32 8, %s10
        %p135 = scmp.lt.s32.totalorder %s134, 15
        %s136 = scalar_select %p135, %s134, 15
        %s137 = smul.addr %s136, 4
        %s138 = scalar_lea.vmem %s0, %s137
        %s139 = smul.u32 8, %s10
      $region24: #{basic_block_ir.5} parent=19 // pred_fallthru
        _
    $region20: #{basic_block_ir.5} parent=5 // pred_fallthru
      _
    %p140 = scmp.le.s32.totalorder 1, %s10
    %p141 = scmp.lt.s32.totalorder %s10, 3
    %p142 = pnand %p140, %p141
    %p143 = pneg %p142
    // Predicated region
    $region25: #{basic_block_ir.5} parent=5 // pred_check
      _
    $region26: #{basic_block_ir.5} parent=5 // pred_check_branch
      %145 = sbr.rel (%p142) target = $region28
    $region27: #{basic_block_ir.5} parent=5 // pred_region
      %s146 = ssub.s32 %s10, 1
      %s147 = smul.u32 8, %s15
      %p148 = scmp.lt.s32.totalorder %s147, 15
      %s149 = scalar_select %p148, %s147, 15
      %s150 = smul.addr %s149, 4
      %s151 = scalar_lea.vmem %s0, %s150
      %p152 = pneg %p36
      %p153 = pneg %p33
      %p154 = pneg %p57
      %p155 = pneg %p54
      %p156 = pneg %p83
      %p157 = pneg %p80
      %s158 = smul.u32 8, %s15
      %p159 = scmp.lt.s32.totalorder %s158, 15
      %s160 = scalar_select %p159, %s158, 15
      %s161 = smul.addr %s160, 8
      %s162 = scalar_lea.vmem %s2, %s161
      %p163 = pneg %p109
      %p164 = pneg %p106
      %p165 = scmp.lt.s32.totalorder %s15, 1
      %s166 = scalar_select %p165, %s15, 1
      %s167 = smul.addr %s166, 2
      %s168 = scalar_lea.vmem %s3, %s167
      %s169 = smul.u32 8, %s15
      %p170 = scmp.lt.s32.totalorder %s169, 15
      %s171 = scalar_select %p170, %s169, 15
      %s172 = smul.addr %s171, 4
      %s173 = scalar_lea.vmem %s0, %s172
      %s174 = smul.u32 8, %s15
      %s175 = smul.u32 8, %s15
      %p176 = scmp.lt.s32.totalorder %s175, 15
      %s177 = scalar_select %p176, %s175, 15
      %s178 = smul.addr %s177, 8
      %s179 = scalar_lea.vmem %s2, %s178
      %s180 = smul.u32 8, %s15
      %p181 = scmp.lt.s32.totalorder %s15, 1
      %s182 = scalar_select %p181, %s15, 1
      %s183 = smul.addr %s182, 2
      %s184 = scalar_lea.vmem %s3, %s183
      %v186 = vld [vmem:[%s173] sm:$0xf]
      %v187 = vld [vmem:[%s173 + $0x4] sm:$0xf]
      %v188 = vld [vmem:[%s173 + $0x8] sm:$0xf]
      %v189 = vld [vmem:[%s173 + $0xc] sm:$0xf]
      %v190 = vld [vmem:[%s173 + $0x10] sm:$0xf]
      %v191 = vld [vmem:[%s173 + $0x14] sm:$0xf]
      %v192 = vld [vmem:[%s173 + $0x18] sm:$0xf]
      %v193 = vld [vmem:[%s173 + $0x1c] sm:$0xf]
      %v194 = vld [vmem:[%s1] sm:$0xf]
      %v195 = vld [vmem:[%s1 + $0x4] sm:$0xf]
      %v196 = vld [vmem:[%s1 + $0x8] sm:$0xf]
      %v197 = vld [vmem:[%s1 + $0xc] sm:$0xf]
      %v198 = vld [vmem:[%s1 + $0x10] sm:$0xf]
      %v199 = vld [vmem:[%s1 + $0x14] sm:$0xf]
      %v200 = vld [vmem:[%s1 + $0x18] sm:$0xf]
      %v201 = vld [vmem:[%s1 + $0x1c] sm:$0xf]
      %v202 = vld [vmem:[%s1 + $0x20] sm:$0xf]
      %v211 = vunpack.c.l.b16 %v186
      %v212 = vunpack.c.l.b16 %v187
      %v213 = vunpack.c.l.b16 %v188
      %v214 = vunpack.c.l.b16 %v189
      %v215 = vunpack.c.l.b16 %v190
      %v216 = vunpack.c.l.b16 %v191
      %v217 = vunpack.c.l.b16 %v192
      %v218 = vunpack.c.l.b16 %v193
      %v219 = vpack.c.b16 %v212, %v211
      %v220 = vpack.c.b16 %v214, %v213
      %v221 = vpack.c.b16 %v216, %v215
      %v222 = vpack.c.b16 %v218, %v217
      %v232 = vunpack.c.l.b16 %v194
      %v233 = vunpack.c.l.b16 %v195
      %v234 = vunpack.c.l.b16 %v196
      %v235 = vunpack.c.l.b16 %v197
      %v236 = vunpack.c.l.b16 %v198
      %v237 = vunpack.c.l.b16 %v199
      %v238 = vunpack.c.l.b16 %v200
      %v239 = vunpack.c.l.b16 %v201
      %v240 = vunpack.c.l.b16 %v202
      %v241 = vpack.c.b16 %v233, %v232
      %v242 = vpack.c.b16 %v235, %v234
      %v243 = vpack.c.b16 %v237, %v236
      %v244 = vpack.c.b16 %v239, %v238
      %v245 = vpack.c.b16 %v240, %v240
      %vm250 = vcmask 588800
      %v252 = vsel %vm250, %v219, 0
      %v255 = vsel %vm250, %v220, 0
      %v258 = vsel %vm250, %v221, 0
      %v261 = vsel %vm250, %v222, 0
      %vm263 = vcmask 1043456
      %v265 = vsel %vm263, %v245, 0
      %267 = vmatprep.subr.bf16.mxu0 0
      %268 = vmatpush1.bf16.msra.mxu0 %v241
      %269 = vmatprep.subr.bf16.mxu0 0
      %270 = vmatpush1.bf16.msra.mxu0 %v242
      %271 = vmatprep.subr.bf16.mxu0 0
      %272 = vmatpush1.bf16.msra.mxu0 %v243
      %273 = vmatprep.subr.bf16.mxu0 0
      %274 = vmatpush1.bf16.msra.mxu0 %v244
      %275 = vmatprep.subr.bf16.mxu0 0
      %276 = vmatpush1.bf16.msra.mxu0 %v265
      %277 = vmatprep.subr.bf16.mxu0 0
      %278 = vmatpush1.bf16.msra.mxu0 0
      %279 = vmatprep.subr.bf16.mxu0 0
      %280 = vmatpush1.bf16.msra.mxu0 0
      %281 = vmatprep.subr.bf16.mxu0 0
      %282 = vmatpush1.bf16.msra.mxu0 0
      %283 = vmatprep.subr.bf16.mxu0 0
      %284 = vmatpush1.bf16.msra.mxu0 0
      %285 = vmatprep.subr.bf16.mxu0 0
      %286 = vmatpush1.bf16.msra.mxu0 0
      %287 = vmatprep.subr.bf16.mxu0 0
      %288 = vmatpush1.bf16.msra.mxu0 0
      %289 = vmatprep.subr.bf16.mxu0 0
      %290 = vmatpush1.bf16.msra.mxu0 0
      %291 = vmatprep.subr.bf16.mxu0 0
      %292 = vmatpush1.bf16.msra.mxu0 0
      %293 = vmatprep.subr.bf16.mxu0 0
      %294 = vmatpush1.bf16.msra.mxu0 0
      %295 = vmatprep.subr.bf16.mxu0 0
      %296 = vmatpush1.bf16.msra.mxu0 0
      %297 = vmatprep.subr.bf16.mxu0 0
      %298 = vmatpush1.bf16.msra.mxu0 0
      %299 = vmatprep.mubr.bf16.mxu0 0
      %300 = vmatmul.mubr.bf16.gmra.mrb[0].mxu0 %v252
      %v301 = vpop.f32.mrb[0].mxu0
      %v302 = vadd.f32 0.0, %v301
      %v303 = vpop.f32.mrb[0].mxu0
      %v304 = vpop.f32.mrb[0].mxu0
      %v305 = vadd.f32 0.0, %v304
      %v306 = vpop.f32.mrb[0].mxu0
      %307 = vmatprep.mubr.bf16.mxu0 0
      %308 = vmatmul.mubr.bf16.gmra.mrb[0].mxu0 %v255
      %v309 = vpop.f32.mrb[0].mxu0
      %v310 = vadd.f32 0.0, %v309
      %v311 = vpop.f32.mrb[0].mxu0
      %v312 = vpop.f32.mrb[0].mxu0
      %v313 = vadd.f32 0.0, %v312
      %v314 = vpop.f32.mrb[0].mxu0
      %315 = vmatprep.mubr.bf16.mxu0 0
      %316 = vmatmul.mubr.bf16.gmra.mrb[0].mxu0 %v258
      %v317 = vpop.f32.mrb[0].mxu0
      %v318 = vadd.f32 0.0, %v317
      %v319 = vpop.f32.mrb[0].mxu0
      %v320 = vpop.f32.mrb[0].mxu0
      %v321 = vadd.f32 0.0, %v320
      %v322 = vpop.f32.mrb[0].mxu0
      %323 = vmatprep.mubr.bf16.mxu0 0
      %324 = vmatmul.mubr.bf16.gmra.mrb[0].mxu0 %v261
      %v325 = vpop.f32.mrb[0].mxu0
      %v326 = vadd.f32 0.0, %v325
      %v327 = vpop.f32.mrb[0].mxu0
      %v328 = vpop.f32.mrb[0].mxu0
      %v329 = vadd.f32 0.0, %v328
      %v330 = vpop.f32.mrb[0].mxu0
      %331 = vdwg.mxu0
      %vm332 = vcmask 64512
      %333 = vst.msk [vmem:[%s179] sm:$0xff] %vm332, %v302
      %334 = vst.msk [vmem:[%s179 + $0x8] sm:$0xff] %vm332, %v305
      %335 = vst.msk [vmem:[%s179 + $0x10] sm:$0xff] %vm332, %v310
      %336 = vst.msk [vmem:[%s179 + $0x18] sm:$0xff] %vm332, %v313
      %337 = vst.msk [vmem:[%s179 + $0x20] sm:$0xff] %vm332, %v318
      %338 = vst.msk [vmem:[%s179 + $0x28] sm:$0xff] %vm332, %v321
      %339 = vst.msk [vmem:[%s179 + $0x30] sm:$0xff] %vm332, %v326
      %340 = vst.msk [vmem:[%s179 + $0x38] sm:$0xff] %vm332, %v329
      %v341 = vsel %vm332, %v302, 0.0
      %v342 = vsel %vm332, %v305, 0.0
      %v343 = vadd.f32 %v341, %v342
      %v344 = vsel %vm332, %v310, 0.0
      %v345 = vadd.f32 %v343, %v344
      %v346 = vsel %vm332, %v313, 0.0
      %v347 = vadd.f32 %v345, %v346
      %v348 = vsel %vm332, %v318, 0.0
      %v349 = vadd.f32 %v347, %v348
      %v350 = vsel %vm332, %v321, 0.0
      %v351 = vadd.f32 %v349, %v350
      %v352 = vsel %vm332, %v326, 0.0
      %v353 = vadd.f32 %v351, %v352
      %v354 = vsel %vm332, %v329, 0.0
      %v355 = vadd.f32 %v353, %v354
      %v356 = vrot.slane %v355, 4
      %v357 = vadd.f32 %v355, %v356
      %v358 = vrot.slane %v357, 2
      %v359 = vadd.f32 %v357, %v358
      %v360 = vrot.slane %v359, 1
      %v361 = vadd.f32 %v359, %v360
      %vm362 = vcmask 57344
      %363 = vst.msk [vmem:[%s184] sm:$0x1] %vm362, %v361
      %v364 = vmul.f32 %v302, %v302
      %v365 = vmul.f32 %v305, %v305
      %v366 = vmul.f32 %v310, %v310
      %v367 = vmul.f32 %v313, %v313
      %v368 = vmul.f32 %v318, %v318
      %v369 = vmul.f32 %v321, %v321
      %v370 = vmul.f32 %v326, %v326
      %v371 = vmul.f32 %v329, %v329
      %v372 = vsel %vm332, %v364, 0.0
      %v373 = vsel %vm332, %v365, 0.0
      %v374 = vadd.f32 %v372, %v373
      %v375 = vsel %vm332, %v366, 0.0
      %v376 = vadd.f32 %v374, %v375
      %v377 = vsel %vm332, %v367, 0.0
      %v378 = vadd.f32 %v376, %v377
      %v379 = vsel %vm332, %v368, 0.0
      %v380 = vadd.f32 %v378, %v379
      %v381 = vsel %vm332, %v369, 0.0
      %v382 = vadd.f32 %v380, %v381
      %v383 = vsel %vm332, %v370, 0.0
      %v384 = vadd.f32 %v382, %v383
      %v385 = vsel %vm332, %v371, 0.0
      %v386 = vadd.f32 %v384, %v385
      %v387 = vrot.slane %v386, 4
      %v388 = vadd.f32 %v386, %v387
      %v389 = vrot.slane %v388, 2
      %v390 = vadd.f32 %v388, %v389
      %v391 = vrot.slane %v390, 1
      %v392 = vadd.f32 %v390, %v391
      %393 = vst.msk [vmem:[%s184 + $0x1] sm:$0x1] %vm362, %v392
      %s394 = smul.u32 8, %s15
      %p395 = scmp.lt.s32.totalorder %s394, 15
      %s396 = scalar_select %p395, %s394, 15
      %s397 = smul.addr %s396, 8
      %s398 = scalar_lea.vmem %s2, %s397
      %p399 = scmp.lt.s32.totalorder %s15, 1
      %s400 = scalar_select %p399, %s15, 1
      %s401 = smul.addr %s400, 2
      %s402 = scalar_lea.vmem %s3, %s401
      // Predicated region
      $region29: #{basic_block_ir.5} parent=27 // pred_check
        %p403 = pneg %p80
      $region30: #{basic_block_ir.5} parent=27 // pred_check_branch
        %405 = sbr.rel (%p403) target = $region32
      $region31: #{basic_block_ir.5} parent=27 // pred_region
        %s406 = smul.u32 8, %s15
      $region32: #{basic_block_ir.5} parent=27 // pred_fallthru
        _
      // Predicated region
      $region33: #{basic_block_ir.5} parent=27 // pred_check
        %p407 = pneg %p106
      $region34: #{basic_block_ir.5} parent=27 // pred_check_branch
        %409 = sbr.rel (%p407) target = $region36
      $region35: #{basic_block_ir.5} parent=27 // pred_region
        _
      $region36: #{basic_block_ir.5} parent=27 // pred_fallthru
        _
    $region28: #{basic_block_ir.5} parent=5 // pred_fallthru
      _
    %p410 = scmp.le.s32.totalorder 2, %s10
    // Predicated region
    $region37: #{basic_block_ir.5} parent=5 // pred_check
      %p411 = pneg %p410
    $region38: #{basic_block_ir.5} parent=5 // pred_check_branch
      %413 = sbr.rel (%p411) target = $region40
    $region39: #{basic_block_ir.5} parent=5 // pred_region
      %s414 = ssub.s32 %s10, 2
      // Predicated region
      $region41: #{basic_block_ir.5} parent=39 // pred_check
        %p415 = pneg %p86
      $region42: #{basic_block_ir.5} parent=39 // pred_check_branch
        %417 = sbr.rel (%p415) target = $region44
      $region43: #{basic_block_ir.5} parent=39 // pred_region
        %s418 = smul.u32 8, %s16
        %p419 = scmp.lt.s32.totalorder %s418, 15
        %s420 = scalar_select %p419, %s418, 15
        %s421 = smul.addr %s420, 8
        %s422 = scalar_lea.vmem %s2, %s421
      $region44: #{basic_block_ir.5} parent=39 // pred_fallthru
        _
      // Predicated region
      $region45: #{basic_block_ir.5} parent=39 // pred_check
        %p423 = pneg %p112
      $region46: #{basic_block_ir.5} parent=39 // pred_check_branch
        %425 = sbr.rel (%p423) target = $region48
      $region47: #{basic_block_ir.5} parent=39 // pred_region
        %p426 = scmp.lt.s32.totalorder %s16, 1
        %s427 = scalar_select %p426, %s16, 1
        %s428 = smul.addr %s427, 2
        %s429 = scalar_lea.vmem %s3, %s428
      $region48: #{basic_block_ir.5} parent=39 // pred_fallthru
        _
    $region40: #{basic_block_ir.5} parent=5 // pred_fallthru
      _
  $region6: #{basic_block_ir.5} parent=0 // loop_footer
    %s14 = sadd.s32 1, %s10
  $region7: #{basic_block_ir.5} parent=0 // loop_footer_branch
    %9 = sbr.rel target = $region3
  $region8: #{basic_block_ir.5} parent=0 // loop_exit
    _

// kernel: basic_block_ir.4
$region0: #{basic_block_ir.4}
  #allocation0 [shape = 'u32[]', space=smem, size = 0x4, offset = 0x4, fixed_abs, tag = 'smem constant byte address 0x4 - core index']
  #allocation1 [shape = 'u32[144,128]{1,0:T(1,128)}', space=vmem, size = 0x12000, scoped, tag = 'internal scratch']
  #allocation2 [shape = 'bf16[128,36]{1,0:T(16,128)(2,1)}', space=vmem, size = 0x8000, scoped, tag = 'scratch operand']
  %s0 = inlined_call_operand.vmem [shape: bf16[4,10,18,4], index: 0, kind: input, shape index: {}]
  %s1 = inlined_call_operand.vmem [shape: bf16[36,8], index: 1, kind: input, shape index: {}]
  %s2 = inlined_call_operand.vmem [shape: bf16[4,128,8], index: 2, kind: output, shape index: {0}]
  %s3 = inlined_call_operand.vmem [shape: f32[4,2,8], index: 3, kind: output, shape index: {1}]
  %4 = xla_tuple %s2, %s3
  %s5 = sld [smem:[#allocation0]]
  $region49: #{basic_block_ir.4} parent=0
    _
  %s7 = ssub.s32 1, %s5
  %s8 = scalar_select 0, %s7, %s5
  loop: start=0, step=1, limit=6
  $region2: #{basic_block_ir.4} parent=0 // loop_pre_header
    _
  $region3: #{basic_block_ir.4} parent=0 // loop_header
    %s10 = sphi 0, %s14
    %p11 = scmp.ge.s32.totalorder %s10, 6
    %s20 = sphi 0, %s22
    %s23 = sphi 0, %s20
    %s24 = sphi 0, %s23
    %s40 = sphi 0, %s24
    %s44 = sphi 0, %s44
    %s46 = sphi 0, %s44
    %s47 = sphi 0, %s46
    %s61 = sphi 0, %s47
    %s67 = sphi 0, %s69
    %s70 = sphi 0, %s67
    %s71 = sphi 0, %s70
    %s87 = sphi 0, %s71
    %s93 = sphi 0, %s95
    %s96 = sphi 0, %s93
    %s97 = sphi 0, %s96
    %s113 = sphi 0, %s97
  $region4: #{basic_block_ir.4} parent=0 // loop_header_branch
    %13 = sbr.rel (%p11) target = $region8
  $region5: #{basic_block_ir.4} parent=0 // loop_body
    %s15 = ssub.s32 %s10, 1
    %s16 = ssub.s32 %s10, 2
    %s17 = sadd.s32 %s10, 1
    %s18 = ssub.s32 %s10, %s17
    %p19 = scmp.eq.s32.totalorder %s18, 0
    %s21 = sadd.s32 %s20, 1
    %s22 = scalar_select %p19, %s20, %s21
    %p25 = pneg %p19
    %p26 = scmp.eq.s32.totalorder %s10, 3
    %p27 = por %p25, %p26
    %p28 = scmp.ne.s32.totalorder %s20, %s23
    %p29 = scmp.eq.s32.totalorder %s10, 0
    %p30 = por %p28, %p29
    %p31 = scmp.ne.s32.totalorder %s20, %s23
    %p32 = scmp.eq.s32.totalorder %s15, 3
    %p33 = por %p31, %p32
    %p34 = scmp.ne.s32.totalorder %s23, %s24
    %p35 = scmp.eq.s32.totalorder %s15, 0
    %p36 = por %p34, %p35
    %p37 = scmp.ne.s32.totalorder %s23, %s24
    %p38 = scmp.eq.s32.totalorder %s16, 3
    %p39 = por %p37, %p38
    %p41 = scmp.ne.s32.totalorder %s24, %s40
    %p42 = scmp.eq.s32.totalorder %s16, 0
    %p43 = por %p41, %p42
    %s45 = sadd.s32 %s44, 1
    %p48 = scmp.eq.s32.totalorder %s10, 3
    %p49 = scmp.ne.s32.totalorder %s44, %s46
    %p50 = scmp.eq.s32.totalorder %s10, 0
    %p51 = por %p49, %p50
    %p52 = scmp.ne.s32.totalorder %s44, %s46
    %p53 = scmp.eq.s32.totalorder %s15, 3
    %p54 = por %p52, %p53
    %p55 = scmp.ne.s32.totalorder %s46, %s47
    %p56 = scmp.eq.s32.totalorder %s15, 0
    %p57 = por %p55, %p56
    %p58 = scmp.ne.s32.totalorder %s46, %s47
    %p59 = scmp.eq.s32.totalorder %s16, 3
    %p60 = por %p58, %p59
    %p62 = scmp.ne.s32.totalorder %s47, %s61
    %p63 = scmp.eq.s32.totalorder %s16, 0
    %p64 = por %p62, %p63
    %s65 = ssub.s32 %s10, %s17
    %p66 = scmp.eq.s32.totalorder %s65, 0
    %s68 = sadd.s32 %s67, 1
    %s69 = scalar_select %p66, %s67, %s68
    %p72 = pneg %p66
    %p73 = scmp.eq.s32.totalorder %s10, 3
    %p74 = por %p72, %p73
    %p75 = scmp.ne.s32.totalorder %s67, %s70
    %p76 = scmp.eq.s32.totalorder %s10, 0
    %p77 = por %p75, %p76
    %p78 = scmp.ne.s32.totalorder %s67, %s70
    %p79 = scmp.eq.s32.totalorder %s15, 3
    %p80 = por %p78, %p79
    %p81 = scmp.ne.s32.totalorder %s70, %s71
    %p82 = scmp.eq.s32.totalorder %s15, 0
    %p83 = por %p81, %p82
    %p84 = scmp.ne.s32.totalorder %s70, %s71
    %p85 = scmp.eq.s32.totalorder %s16, 3
    %p86 = por %p84, %p85
    %p88 = scmp.ne.s32.totalorder %s71, %s87
    %p89 = scmp.eq.s32.totalorder %s16, 0
    %p90 = por %p88, %p89
    %s91 = ssub.s32 %s10, %s17
    %p92 = scmp.eq.s32.totalorder %s91, 0
    %s94 = sadd.s32 %s93, 1
    %s95 = scalar_select %p92, %s93, %s94
    %p98 = pneg %p92
    %p99 = scmp.eq.s32.totalorder %s10, 3
    %p100 = por %p98, %p99
    %p101 = scmp.ne.s32.totalorder %s93, %s96
    %p102 = scmp.eq.s32.totalorder %s10, 0
    %p103 = por %p101, %p102
    %p104 = scmp.ne.s32.totalorder %s93, %s96
    %p105 = scmp.eq.s32.totalorder %s15, 3
    %p106 = por %p104, %p105
    %p107 = scmp.ne.s32.totalorder %s96, %s97
    %p108 = scmp.eq.s32.totalorder %s15, 0
    %p109 = por %p107, %p108
    %p110 = scmp.ne.s32.totalorder %s96, %s97
    %p111 = scmp.eq.s32.totalorder %s16, 3
    %p112 = por %p110, %p111
    %p114 = scmp.ne.s32.totalorder %s97, %s113
    %p115 = scmp.eq.s32.totalorder %s16, 0
    %p116 = por %p114, %p115
    %p117 = scmp.le.s32.totalorder 1, %s10
    %p118 = scmp.lt.s32.totalorder %s10, 5
    %p119 = pnand %p117, %p118
    %p120 = pneg %p119
    // Predicated region
    $region9: #{basic_block_ir.4} parent=5 // pred_check
      _
    $region10: #{basic_block_ir.4} parent=5 // pred_check_branch
      %122 = sbr.rel (%p119) target = $region12
    $region11: #{basic_block_ir.4} parent=5 // pred_region
      %s123 = ssub.s32 %s10, 1
      // Predicated region
      $region13: #{basic_block_ir.4} parent=11 // pred_check
        %p124 = pneg %p57
      $region14: #{basic_block_ir.4} parent=11 // pred_check_branch
        %126 = sbr.rel (%p124) target = $region16
      $region15: #{basic_block_ir.4} parent=11 // pred_region
        _
      $region16: #{basic_block_ir.4} parent=11 // pred_fallthru
        _
    $region12: #{basic_block_ir.4} parent=5 // pred_fallthru
      _
    %p127 = scmp.lt.s32.totalorder %s10, 4
    // Predicated region
    $region17: #{basic_block_ir.4} parent=5 // pred_check
      %p128 = pneg %p127
    $region18: #{basic_block_ir.4} parent=5 // pred_check_branch
      %130 = sbr.rel (%p128) target = $region20
    $region19: #{basic_block_ir.4} parent=5 // pred_region
      // Predicated region
      $region21: #{basic_block_ir.4} parent=19 // pred_check
        %p131 = pneg %p30
      $region22: #{basic_block_ir.4} parent=19 // pred_check_branch
        %133 = sbr.rel (%p131) target = $region24
      $region23: #{basic_block_ir.4} parent=19 // pred_region
        %p134 = scmp.lt.s32.totalorder %s10, 3
        %s135 = scalar_select %p134, %s10, 3
        %s136 = smul.addr %s135, 30
        %s137 = smul.addr %s136, 4
        %s138 = scalar_lea.vmem %s0, %s137
      $region24: #{basic_block_ir.4} parent=19 // pred_fallthru
        _
    $region20: #{basic_block_ir.4} parent=5 // pred_fallthru
      _
    %p139 = scmp.le.s32.totalorder 1, %s10
    %p140 = scmp.lt.s32.totalorder %s10, 5
    %p141 = pnand %p139, %p140
    %p142 = pneg %p141
    // Predicated region
    $region25: #{basic_block_ir.4} parent=5 // pred_check
      _
    $region26: #{basic_block_ir.4} parent=5 // pred_check_branch
      %144 = sbr.rel (%p141) target = $region28
    $region27: #{basic_block_ir.4} parent=5 // pred_region
      %s145 = ssub.s32 %s10, 1
      %p146 = scmp.lt.s32.totalorder %s15, 3
      %s147 = scalar_select %p146, %s15, 3
      %s148 = smul.addr %s147, 30
      %s149 = smul.addr %s148, 4
      %s150 = scalar_lea.vmem %s0, %s149
      %p151 = pneg %p36
      %p152 = pneg %p33
      %p153 = pneg %p57
      %p154 = pneg %p54
      %p155 = pneg %p83
      %p156 = pneg %p80
      %p157 = scmp.lt.s32.totalorder %s15, 3
      %s158 = scalar_select %p157, %s15, 3
      %s159 = smul.addr %s158, 16
      %s160 = smul.addr %s159, 4
      %s161 = scalar_lea.vmem %s2, %s160
      %p162 = pneg %p109
      %p163 = pneg %p106
      %p164 = scmp.lt.s32.totalorder %s15, 3
      %s165 = scalar_select %p164, %s15, 3
      %s166 = smul.addr %s165, 2
      %s167 = scalar_lea.vmem %s3, %s166
      %p168 = scmp.lt.s32.totalorder %s15, 3
      %s169 = scalar_select %p168, %s15, 3
      %s170 = smul.addr %s169, 30
      %s171 = smul.addr %s170, 4
      %s172 = scalar_lea.vmem %s0, %s171
      %p173 = scmp.lt.s32.totalorder %s15, 3
      %s174 = scalar_select %p173, %s15, 3
      %s175 = smul.addr %s174, 16
      %s176 = smul.addr %s175, 4
      %s177 = scalar_lea.vmem %s2, %s176
      %p178 = scmp.lt.s32.totalorder %s15, 3
      %s179 = scalar_select %p178, %s15, 3
      %s180 = smul.addr %s179, 2
      %s181 = scalar_lea.vmem %s3, %s180
      %v183 = vld [vmem:[%s172] sm:$0xf]
      %v184 = vld [vmem:[%s172 + $0x4] sm:$0xf]
      %v185 = vld [vmem:[%s172 + $0xc] sm:$0xf]
      %v186 = vld [vmem:[%s172 + $0x10] sm:$0xf]
      %v187 = vld [vmem:[%s172 + $0x18] sm:$0xf]
      %v188 = vld [vmem:[%s172 + $0x1c] sm:$0xf]
      %v189 = vld [vmem:[%s172 + $0x24] sm:$0xf]
      %v190 = vld [vmem:[%s172 + $0x28] sm:$0xf]
      %v191 = vld [vmem:[%s172 + $0x30] sm:$0xf]
      %v192 = vld [vmem:[%s172 + $0x34] sm:$0xf]
      %v193 = vld [vmem:[%s172 + $0x3c] sm:$0xf]
      %v194 = vld [vmem:[%s172 + $0x40] sm:$0xf]
      %v195 = vld [vmem:[%s172 + $0x48] sm:$0xf]
      %v196 = vld [vmem:[%s172 + $0x4c] sm:$0xf]
      %v197 = vld [vmem:[%s172 + $0x54] sm:$0xf]
      %v198 = vld [vmem:[%s172 + $0x58] sm:$0xf]
      %v215 = vunpack.c.l.b16 %v183
      %v216 = vunpack.c.l.b16 %v184
      %v217 = vunpack.c.l.b16 %v185
      %v218 = vunpack.c.l.b16 %v186
      %v219 = vunpack.c.l.b16 %v187
      %v220 = vunpack.c.l.b16 %v188
      %v221 = vunpack.c.l.b16 %v189
      %v222 = vunpack.c.l.b16 %v190
      %v223 = vunpack.c.l.b16 %v191
      %v224 = vunpack.c.l.b16 %v192
      %v225 = vunpack.c.l.b16 %v193
      %v226 = vunpack.c.l.b16 %v194
      %v227 = vunpack.c.l.b16 %v195
      %v228 = vunpack.c.l.b16 %v196
      %v229 = vunpack.c.l.b16 %v197
      %v230 = vunpack.c.l.b16 %v198
      %v231 = vpack.c.b16 %v216, %v215
      %v232 = vpack.c.b16 %v218, %v217
      %v233 = vpack.c.b16 %v220, %v219
      %v234 = vpack.c.b16 %v222, %v221
      %v235 = vpack.c.b16 %v224, %v223
      %v236 = vpack.c.b16 %v226, %v225
      %v237 = vpack.c.b16 %v228, %v227
      %v238 = vpack.c.b16 %v230, %v229
      %vm247 = vcmask 31744
      %248 = vst.msk [vmem:[#allocation2] sm:$0xff] %vm247, %v231
      %249 = vst.msk [vmem:[#allocation2 + $0x8] sm:$0xff] %vm247, %v232
      %250 = vst.msk [vmem:[#allocation2 + $0x10] sm:$0xff] %vm247, %v233
      %251 = vst.msk [vmem:[#allocation2 + $0x18] sm:$0xff] %vm247, %v234
      %252 = vst.msk [vmem:[#allocation2 + $0x20] sm:$0xff] %vm247, %v235
      %253 = vst.msk [vmem:[#allocation2 + $0x28] sm:$0xff] %vm247, %v236
      %254 = vst.msk [vmem:[#allocation2 + $0x30] sm:$0xff] %vm247, %v237
      %255 = vst.msk [vmem:[#allocation2 + $0x38] sm:$0xff] %vm247, %v238
      %v256 = vld [vmem:[%s172] sm:$0xf]
      %v257 = vld [vmem:[%s172 + $0x4] sm:$0xf]
      %v258 = vld [vmem:[%s172 + $0x8] sm:$0x1]
      %v259 = vld [vmem:[%s172 + $0xc] sm:$0xf]
      %v260 = vld [vmem:[%s172 + $0x10] sm:$0xf]
      %v261 = vld [vmem:[%s172 + $0x14] sm:$0x1]
      %v262 = vld [vmem:[%s172 + $0x18] sm:$0xf]
      %v263 = vld [vmem:[%s172 + $0x1c] sm:$0xf]
      %v264 = vld [vmem:[%s172 + $0x20] sm:$0x1]
      %v265 = vld [vmem:[%s172 + $0x24] sm:$0xf]
      %v266 = vld [vmem:[%s172 + $0x28] sm:$0xf]
      %v267 = vld [vmem:[%s172 + $0x2c] sm:$0x1]
      %v268 = vld [vmem:[%s172 + $0x30] sm:$0xf]
      %v269 = vld [vmem:[%s172 + $0x34] sm:$0xf]
      %v270 = vld [vmem:[%s172 + $0x38] sm:$0x1]
      %v271 = vld [vmem:[%s172 + $0x3c] sm:$0xf]
      %v272 = vld [vmem:[%s172 + $0x40] sm:$0xf]
      %v273 = vld [vmem:[%s172 + $0x44] sm:$0x1]
      %v274 = vld [vmem:[%s172 + $0x48] sm:$0xf]
      %v275 = vld [vmem:[%s172 + $0x4c] sm:$0xf]
      %v276 = vld [vmem:[%s172 + $0x50] sm:$0x1]
      %v277 = vld [vmem:[%s172 + $0x54] sm:$0xf]
      %v278 = vld [vmem:[%s172 + $0x58] sm:$0xf]
      %v279 = vld [vmem:[%s172 + $0x5c] sm:$0x1]
      %vm280 = vsmask.f32 3328
      %vm281 = vsmask.f32 7440
      %vm282 = vmor %vm280, %vm281
      %v284 = vshrl.u32 %v256, 16
      %v286 = vrot.slane %v284, 4
      %v287 = vshll.u32 %v256, 16
      %v289 = vrot.slane %v287, 5
      %v290 = vor.u32 %v286, %v289
      %v291 = vrot.slane %v290, 4
      %v293 = vshll.u32 %v257, 16
      %v295 = vrot.slane %v293, 5
      %v296 = vsel %vm282, %v291, %v295
      %v297 = vshrl.u32 %v257, 16
      %v299 = vrot.slane %v297, 4
      %v300 = vor.u32 %v299, %v295
      %v301 = vrot.slane %v300, 4
      %v303 = vshll.u32 %v258, 16
      %v305 = vrot.slane %v303, 5
      %v306 = vsel %vm282, %v301, %v305
      %v308 = vshrl.u32 %v259, 16
      %v310 = vrot.slane %v308, 4
      %v311 = vshll.u32 %v259, 16
      %v313 = vrot.slane %v311, 5
      %v314 = vor.u32 %v310, %v313
      %v315 = vrot.slane %v314, 4
      %v317 = vshll.u32 %v260, 16
      %v319 = vrot.slane %v317, 5
      %v320 = vsel %vm282, %v315, %v319
      %v321 = vshrl.u32 %v260, 16
      %v323 = vrot.slane %v321, 4
      %v324 = vor.u32 %v323, %v319
      %v325 = vrot.slane %v324, 4
      %v327 = vshll.u32 %v261, 16
      %v329 = vrot.slane %v327, 5
      %v330 = vsel %vm282, %v325, %v329
      %v332 = vshrl.u32 %v262, 16
      %v334 = vrot.slane %v332, 4
      %v335 = vshll.u32 %v262, 16
      %v337 = vrot.slane %v335, 5
      %v338 = vor.u32 %v334, %v337
      %v339 = vrot.slane %v338, 4
      %v341 = vshll.u32 %v263, 16
      %v343 = vrot.slane %v341, 5
      %v344 = vsel %vm282, %v339, %v343
      %v345 = vshrl.u32 %v263, 16
      %v347 = vrot.slane %v345, 4
      %v348 = vor.u32 %v347, %v343
      %v349 = vrot.slane %v348, 4
      %v351 = vshll.u32 %v264, 16
      %v353 = vrot.slane %v351, 5
      %v354 = vsel %vm282, %v349, %v353
      %v356 = vshrl.u32 %v265, 16
      %v358 = vrot.slane %v356, 4
      %v359 = vshll.u32 %v265, 16
      %v361 = vrot.slane %v359, 5
      %v362 = vor.u32 %v358, %v361
      %v363 = vrot.slane %v362, 4
      %v365 = vshll.u32 %v266, 16
      %v367 = vrot.slane %v365, 5
      %v368 = vsel %vm282, %v363, %v367
      %v369 = vshrl.u32 %v266, 16
      %v371 = vrot.slane %v369, 4
      %v372 = vor.u32 %v371, %v367
      %v373 = vrot.slane %v372, 4
      %v375 = vshll.u32 %v267, 16
      %v377 = vrot.slane %v375, 5
      %v378 = vsel %vm282, %v373, %v377
      %v380 = vshrl.u32 %v268, 16
      %v382 = vrot.slane %v380, 4
      %v383 = vshll.u32 %v268, 16
      %v385 = vrot.slane %v383, 5
      %v386 = vor.u32 %v382, %v385
      %v387 = vrot.slane %v386, 4
      %v389 = vshll.u32 %v269, 16
      %v391 = vrot.slane %v389, 5
      %v392 = vsel %vm282, %v387, %v391
      %v393 = vshrl.u32 %v269, 16
      %v395 = vrot.slane %v393, 4
      %v396 = vor.u32 %v395, %v391
      %v397 = vrot.slane %v396, 4
      %v399 = vshll.u32 %v270, 16
      %v401 = vrot.slane %v399, 5
      %v402 = vsel %vm282, %v397, %v401
      %v404 = vshrl.u32 %v271, 16
      %v406 = vrot.slane %v404, 4
      %v407 = vshll.u32 %v271, 16
      %v409 = vrot.slane %v407, 5
      %v410 = vor.u32 %v406, %v409
      %v411 = vrot.slane %v410, 4
      %v413 = vshll.u32 %v272, 16
      %v415 = vrot.slane %v413, 5
      %v416 = vsel %vm282, %v411, %v415
      %v417 = vshrl.u32 %v272, 16
      %v419 = vrot.slane %v417, 4
      %v420 = vor.u32 %v419, %v415
      %v421 = vrot.slane %v420, 4
      %v423 = vshll.u32 %v273, 16
      %v425 = vrot.slane %v423, 5
      %v426 = vsel %vm282, %v421, %v425
      %v428 = vshrl.u32 %v274, 16
      %v430 = vrot.slane %v428, 4
      %v431 = vshll.u32 %v274, 16
      %v433 = vrot.slane %v431, 5
      %v434 = vor.u32 %v430, %v433
      %v435 = vrot.slane %v434, 4
      %v437 = vshll.u32 %v275, 16
      %v439 = vrot.slane %v437, 5
      %v440 = vsel %vm282, %v435, %v439
      %v441 = vshrl.u32 %v275, 16
      %v443 = vrot.slane %v441, 4
      %v444 = vor.u32 %v443, %v439
      %v445 = vrot.slane %v444, 4
      %v447 = vshll.u32 %v276, 16
      %v449 = vrot.slane %v447, 5
      %v450 = vsel %vm282, %v445, %v449
      %v452 = vshrl.u32 %v277, 16
      %v454 = vrot.slane %v452, 4
      %v455 = vshll.u32 %v277, 16
      %v457 = vrot.slane %v455, 5
      %v458 = vor.u32 %v454, %v457
      %v459 = vrot.slane %v458, 4
      %v461 = vshll.u32 %v278, 16
      %v463 = vrot.slane %v461, 5
      %v464 = vsel %vm282, %v459, %v463
      %v465 = vshrl.u32 %v278, 16
      %v467 = vrot.slane %v465, 4
      %v468 = vor.u32 %v467, %v463
      %v469 = vrot.slane %v468, 4
      %v471 = vshll.u32 %v279, 16
      %v473 = vrot.slane %v471, 5
      %v474 = vsel %vm282, %v469, %v473
      %v475 = vunpack.c.l.b16 %v296
      %v476 = vunpack.c.l.b16 %v306
      %v477 = vunpack.c.l.b16 %v320
      %v478 = vunpack.c.l.b16 %v330
      %v479 = vunpack.c.l.b16 %v344
      %v480 = vunpack.c.l.b16 %v354
      %v481 = vunpack.c.l.b16 %v368
      %v482 = vunpack.c.l.b16 %v378
      %v483 = vunpack.c.l.b16 %v392
      %v484 = vunpack.c.l.b16 %v402
      %v485 = vunpack.c.l.b16 %v416
      %v486 = vunpack.c.l.b16 %v426
      %v487 = vunpack.c.l.b16 %v440
      %v488 = vunpack.c.l.b16 %v450
      %v489 = vunpack.c.l.b16 %v464
      %v490 = vunpack.c.l.b16 %v474
      %v491 = vpack.c.b16 %v476, %v475
      %v492 = vpack.c.b16 %v478, %v477
      %v493 = vpack.c.b16 %v480, %v479
      %v494 = vpack.c.b16 %v482, %v481
      %v495 = vpack.c.b16 %v484, %v483
      %v496 = vpack.c.b16 %v486, %v485
      %v497 = vpack.c.b16 %v488, %v487
      %v498 = vpack.c.b16 %v490, %v489
      %499 = vrot.lane.b32.xlu0 %v491, 4
      %v500 = vpop.permute.xlu0 %499
      %501 = vrot.lane.b32.xlu0 %v492, 4
      %v502 = vpop.permute.xlu0 %501
      %503 = vrot.lane.b32.xlu0 %v493, 4
      %v504 = vpop.permute.xlu0 %503
      %505 = vrot.lane.b32.xlu0 %v494, 4
      %v506 = vpop.permute.xlu0 %505
      %507 = vrot.lane.b32.xlu0 %v495, 4
      %v508 = vpop.permute.xlu0 %507
      %509 = vrot.lane.b32.xlu0 %v496, 4
      %v510 = vpop.permute.xlu0 %509
      %511 = vrot.lane.b32.xlu0 %v497, 4
      %v512 = vpop.permute.xlu0 %511
      %513 = vrot.lane.b32.xlu0 %v498, 4
      %v514 = vpop.permute.xlu0 %513
      %vm523 = vcmask 64544
      %524 = vst.msk [vmem:[#allocation2] sm:$0xff] %vm523, %v500
      %525 = vst.msk [vmem:[#allocation2 + $0x8] sm:$0xff] %vm523, %v502
      %526 = vst.msk [vmem:[#allocation2 + $0x10] sm:$0xff] %vm523, %v504
      %527 = vst.msk [vmem:[#allocation2 + $0x18] sm:$0xff] %vm523, %v506
      %528 = vst.msk [vmem:[#allocation2 + $0x20] sm:$0xff] %vm523, %v508
      %529 = vst.msk [vmem:[#allocation2 + $0x28] sm:$0xff] %vm523, %v510
      %530 = vst.msk [vmem:[#allocation2 + $0x30] sm:$0xff] %vm523, %v512
      %531 = vst.msk [vmem:[#allocation2 + $0x38] sm:$0xff] %vm523, %v514
      %v532 = vld [vmem:[%s172] sm:$0xe]
      %v533 = vld [vmem:[%s172 + $0x4] sm:$0xf]
      %v534 = vld [vmem:[%s172 + $0x8] sm:$0x1]
      %v535 = vld [vmem:[%s172 + $0xc] sm:$0xe]
      %v536 = vld [vmem:[%s172 + $0x10] sm:$0xf]
      %v537 = vld [vmem:[%s172 + $0x14] sm:$0x1]
      %v538 = vld [vmem:[%s172 + $0x18] sm:$0xe]
      %v539 = vld [vmem:[%s172 + $0x1c] sm:$0xf]
      %v540 = vld [vmem:[%s172 + $0x20] sm:$0x1]
      %v541 = vld [vmem:[%s172 + $0x24] sm:$0xe]
      %v542 = vld [vmem:[%s172 + $0x28] sm:$0xf]
      %v543 = vld [vmem:[%s172 + $0x2c] sm:$0x1]
      %v544 = vld [vmem:[%s172 + $0x30] sm:$0xe]
      %v545 = vld [vmem:[%s172 + $0x34] sm:$0xf]
      %v546 = vld [vmem:[%s172 + $0x38] sm:$0x1]
      %v547 = vld [vmem:[%s172 + $0x3c] sm:$0xe]
      %v548 = vld [vmem:[%s172 + $0x40] sm:$0xf]
      %v549 = vld [vmem:[%s172 + $0x44] sm:$0x1]
      %v550 = vld [vmem:[%s172 + $0x48] sm:$0xe]
      %v551 = vld [vmem:[%s172 + $0x4c] sm:$0xf]
      %v552 = vld [vmem:[%s172 + $0x50] sm:$0x1]
      %v553 = vld [vmem:[%s172 + $0x54] sm:$0xe]
      %v554 = vld [vmem:[%s172 + $0x58] sm:$0xf]
      %v555 = vld [vmem:[%s172 + $0x5c] sm:$0x1]
      %vm580 = vcmask 1042432
      %vm581 = vcmask 1046532
      %vm582 = vmor %vm580, %vm581
      %v583 = vrot.slane %v532, 5
      %v584 = vrot.slane %v583, 4
      %v585 = vrot.slane %v533, 5
      %v586 = vsel %vm582, %v584, %v585
      %v587 = vrot.slane %v585, 4
      %v588 = vrot.slane %v534, 5
      %v589 = vsel %vm582, %v587, %v588
      %v590 = vrot.slane %v535, 5
      %v591 = vrot.slane %v590, 4
      %v592 = vrot.slane %v536, 5
      %v593 = vsel %vm582, %v591, %v592
      %v594 = vrot.slane %v592, 4
      %v595 = vrot.slane %v537, 5
      %v596 = vsel %vm582, %v594, %v595
      %v597 = vrot.slane %v538, 5
      %v598 = vrot.slane %v597, 4
      %v599 = vrot.slane %v539, 5
      %v600 = vsel %vm582, %v598, %v599
      %v601 = vrot.slane %v599, 4
      %v602 = vrot.slane %v540, 5
      %v603 = vsel %vm582, %v601, %v602
      %v604 = vrot.slane %v541, 5
      %v605 = vrot.slane %v604, 4
      %v606 = vrot.slane %v542, 5
      %v607 = vsel %vm582, %v605, %v606
      %v608 = vrot.slane %v606, 4
      %v609 = vrot.slane %v543, 5
      %v610 = vsel %vm582, %v608, %v609
      %v611 = vrot.slane %v544, 5
      %v612 = vrot.slane %v611, 4
      %v613 = vrot.slane %v545, 5
      %v614 = vsel %vm582, %v612, %v613
      %v615 = vrot.slane %v613, 4
      %v616 = vrot.slane %v546, 5
      %v617 = vsel %vm582, %v615, %v616
      %v618 = vrot.slane %v547, 5
      %v619 = vrot.slane %v618, 4
      %v620 = vrot.slane %v548, 5
      %v621 = vsel %vm582, %v619, %v620
      %v622 = vrot.slane %v620, 4
      %v623 = vrot.slane %v549, 5
      %v624 = vsel %vm582, %v622, %v623
      %v625 = vrot.slane %v550, 5
      %v626 = vrot.slane %v625, 4
      %v627 = vrot.slane %v551, 5
      %v628 = vsel %vm582, %v626, %v627
      %v629 = vrot.slane %v627, 4
      %v630 = vrot.slane %v552, 5
      %v631 = vsel %vm582, %v629, %v630
      %v632 = vrot.slane %v553, 5
      %v633 = vrot.slane %v632, 4
      %v634 = vrot.slane %v554, 5
      %v635 = vsel %vm582, %v633, %v634
      %v636 = vrot.slane %v634, 4
      %v637 = vrot.slane %v555, 5
      %v638 = vsel %vm582, %v636, %v637
      %v639 = vunpack.c.l.b16 %v586
      %v640 = vunpack.c.l.b16 %v589
      %v641 = vunpack.c.l.b16 %v593
      %v642 = vunpack.c.l.b16 %v596
      %v643 = vunpack.c.l.b16 %v600
      %v644 = vunpack.c.l.b16 %v603
      %v645 = vunpack.c.l.b16 %v607
      %v646 = vunpack.c.l.b16 %v610
      %v647 = vunpack.c.l.b16 %v614
      %v648 = vunpack.c.l.b16 %v617
      %v649 = vunpack.c.l.b16 %v621
      %v650 = vunpack.c.l.b16 %v624
      %v651 = vunpack.c.l.b16 %v628
      %v652 = vunpack.c.l.b16 %v631
      %v653 = vunpack.c.l.b16 %v635
      %v654 = vunpack.c.l.b16 %v638
      %v655 = vpack.c.b16 %v640, %v639
      %v656 = vpack.c.b16 %v642, %v641
      %v657 = vpack.c.b16 %v644, %v643
      %v658 = vpack.c.b16 %v646, %v645
      %v659 = vpack.c.b16 %v648, %v647
      %v660 = vpack.c.b16 %v650, %v649
      %v661 = vpack.c.b16 %v652, %v651
      %v662 = vpack.c.b16 %v654, %v653
      %663 = vrot.lane.b32.xlu0 %v655, 8
      %v664 = vpop.permute.xlu0 %663
      %665 = vrot.lane.b32.xlu0 %v656, 8
      %v666 = vpop.permute.xlu0 %665
      %667 = vrot.lane.b32.xlu0 %v657, 8
      %v668 = vpop.permute.xlu0 %667
      %669 = vrot.lane.b32.xlu0 %v658, 8
      %v670 = vpop.permute.xlu0 %669
      %671 = vrot.lane.b32.xlu0 %v659, 8
      %v672 = vpop.permute.xlu0 %671
      %673 = vrot.lane.b32.xlu0 %v660, 8
      %v674 = vpop.permute.xlu0 %673
      %675 = vrot.lane.b32.xlu0 %v661, 8
      %v676 = vpop.permute.xlu0 %675
      %677 = vrot.lane.b32.xlu0 %v662, 8
      %v678 = vpop.permute.xlu0 %677
      %vm687 = vcmask 97344
      %688 = vst.msk [vmem:[#allocation2] sm:$0xff] %vm687, %v664
      %689 = vst.msk [vmem:[#allocation2 + $0x8] sm:$0xff] %vm687, %v666
      %690 = vst.msk [vmem:[#allocation2 + $0x10] sm:$0xff] %vm687, %v668
      %691 = vst.msk [vmem:[#allocation2 + $0x18] sm:$0xff] %vm687, %v670
      %692 = vst.msk [vmem:[#allocation2 + $0x20] sm:$0xff] %vm687, %v672
      %693 = vst.msk [vmem:[#allocation2 + $0x28] sm:$0xff] %vm687, %v674
      %694 = vst.msk [vmem:[#allocation2 + $0x30] sm:$0xff] %vm687, %v676
      %695 = vst.msk [vmem:[#allocation2 + $0x38] sm:$0xff] %vm687, %v678
      %s696 = scalar_lea.vmem %s172, 12
      %v697 = vld [vmem:[%s696] sm:$0xf]
      %v698 = vld [vmem:[%s696 + $0x4] sm:$0xf]
      %v699 = vld [vmem:[%s696 + $0xc] sm:$0xf]
      %v700 = vld [vmem:[%s696 + $0x10] sm:$0xf]
      %v701 = vld [vmem:[%s696 + $0x18] sm:$0xf]
      %v702 = vld [vmem:[%s696 + $0x1c] sm:$0xf]
      %v703 = vld [vmem:[%s696 + $0x24] sm:$0xf]
      %v704 = vld [vmem:[%s696 + $0x28] sm:$0xf]
      %v705 = vld [vmem:[%s696 + $0x30] sm:$0xf]
      %v706 = vld [vmem:[%s696 + $0x34] sm:$0xf]
      %v707 = vld [vmem:[%s696 + $0x3c] sm:$0xf]
      %v708 = vld [vmem:[%s696 + $0x40] sm:$0xf]
      %v709 = vld [vmem:[%s696 + $0x48] sm:$0xf]
      %v710 = vld [vmem:[%s696 + $0x4c] sm:$0xf]
      %v711 = vld [vmem:[%s696 + $0x54] sm:$0xf]
      %v712 = vld [vmem:[%s696 + $0x58] sm:$0xf]
      %v729 = vunpack.c.l.b16 %v697
      %v730 = vunpack.c.l.b16 %v698
      %v731 = vunpack.c.l.b16 %v699
      %v732 = vunpack.c.l.b16 %v700
      %v733 = vunpack.c.l.b16 %v701
      %v734 = vunpack.c.l.b16 %v702
      %v735 = vunpack.c.l.b16 %v703
      %v736 = vunpack.c.l.b16 %v704
      %v737 = vunpack.c.l.b16 %v705
      %v738 = vunpack.c.l.b16 %v706
      %v739 = vunpack.c.l.b16 %v707
      %v740 = vunpack.c.l.b16 %v708
      %v741 = vunpack.c.l.b16 %v709
      %v742 = vunpack.c.l.b16 %v710
      %v743 = vunpack.c.l.b16 %v711
      %v744 = vunpack.c.l.b16 %v712
      %v745 = vpack.c.b16 %v730, %v729
      %v746 = vpack.c.b16 %v732, %v731
      %v747 = vpack.c.b16 %v734, %v733
      %v748 = vpack.c.b16 %v736, %v735
      %v749 = vpack.c.b16 %v738, %v737
      %v750 = vpack.c.b16 %v740, %v739
      %v751 = vpack.c.b16 %v742, %v741
      %v752 = vpack.c.b16 %v744, %v743
      %753 = vrot.lane.b32.xlu0 %v745, 12
      %v754 = vpop.permute.xlu0 %753
      %755 = vrot.lane.b32.xlu0 %v746, 12
      %v756 = vpop.permute.xlu0 %755
      %757 = vrot.lane.b32.xlu0 %v747, 12
      %v758 = vpop.permute.xlu0 %757
      %759 = vrot.lane.b32.xlu0 %v748, 12
      %v760 = vpop.permute.xlu0 %759
      %761 = vrot.lane.b32.xlu0 %v749, 12
      %v762 = vpop.permute.xlu0 %761
      %763 = vrot.lane.b32.xlu0 %v750, 12
      %v764 = vpop.permute.xlu0 %763
      %765 = vrot.lane.b32.xlu0 %v751, 12
      %v766 = vpop.permute.xlu0 %765
      %767 = vrot.lane.b32.xlu0 %v752, 12
      %v768 = vpop.permute.xlu0 %767
      %vm777 = vcmask 130144
      %778 = vst.msk [vmem:[#allocation2] sm:$0xff] %vm777, %v754
      %779 = vst.msk [vmem:[#allocation2 + $0x8] sm:$0xff] %vm777, %v756
      %780 = vst.msk [vmem:[#allocation2 + $0x10] sm:$0xff] %vm777, %v758
      %781 = vst.msk [vmem:[#allocation2 + $0x18] sm:$0xff] %vm777, %v760
      %782 = vst.msk [vmem:[#allocation2 + $0x20] sm:$0xff] %vm777, %v762
      %783 = vst.msk [vmem:[#allocation2 + $0x28] sm:$0xff] %vm777, %v764
      %784 = vst.msk [vmem:[#allocation2 + $0x30] sm:$0xff] %vm777, %v766
      %785 = vst.msk [vmem:[#allocation2 + $0x38] sm:$0xff] %vm777, %v768
      %v786 = vld [vmem:[%s696] sm:$0xf]
      %v787 = vld [vmem:[%s696 + $0x4] sm:$0xf]
      %v788 = vld [vmem:[%s696 + $0x8] sm:$0x1]
      %v789 = vld [vmem:[%s696 + $0xc] sm:$0xf]
      %v790 = vld [vmem:[%s696 + $0x10] sm:$0xf]
      %v791 = vld [vmem:[%s696 + $0x14] sm:$0x1]
      %v792 = vld [vmem:[%s696 + $0x18] sm:$0xf]
      %v793 = vld [vmem:[%s696 + $0x1c] sm:$0xf]
      %v794 = vld [vmem:[%s696 + $0x20] sm:$0x1]
      %v795 = vld [vmem:[%s696 + $0x24] sm:$0xf]
      %v796 = vld [vmem:[%s696 + $0x28] sm:$0xf]
      %v797 = vld [vmem:[%s696 + $0x2c] sm:$0x1]
      %v798 = vld [vmem:[%s696 + $0x30] sm:$0xf]
      %v799 = vld [vmem:[%s696 + $0x34] sm:$0xf]
      %v800 = vld [vmem:[%s696 + $0x38] sm:$0x1]
      %v801 = vld [vmem:[%s696 + $0x3c] sm:$0xf]
      %v802 = vld [vmem:[%s696 + $0x40] sm:$0xf]
      %v803 = vld [vmem:[%s696 + $0x44] sm:$0x1]
      %v804 = vld [vmem:[%s696 + $0x48] sm:$0xf]
      %v805 = vld [vmem:[%s696 + $0x4c] sm:$0xf]
      %v806 = vld [vmem:[%s696 + $0x50] sm:$0x1]
      %v807 = vld [vmem:[%s696 + $0x54] sm:$0xf]
      %v808 = vld [vmem:[%s696 + $0x58] sm:$0xf]
      %v809 = vld [vmem:[%s696 + $0x5c] sm:$0x1]
      %v811 = vshrl.u32 %v786, 16
      %v813 = vrot.slane %v811, 4
      %v814 = vshll.u32 %v786, 16
      %v816 = vrot.slane %v814, 5
      %v817 = vor.u32 %v813, %v816
      %v818 = vrot.slane %v817, 4
      %v820 = vshll.u32 %v787, 16
      %v822 = vrot.slane %v820, 5
      %v823 = vsel %vm282, %v818, %v822
      %v824 = vshrl.u32 %v787, 16
      %v826 = vrot.slane %v824, 4
      %v827 = vor.u32 %v826, %v822
      %v828 = vrot.slane %v827, 4
      %v830 = vshll.u32 %v788, 16
      %v832 = vrot.slane %v830, 5
      %v833 = vsel %vm282, %v828, %v832
      %v835 = vshrl.u32 %v789, 16
      %v837 = vrot.slane %v835, 4
      %v838 = vshll.u32 %v789, 16
      %v840 = vrot.slane %v838, 5
      %v841 = vor.u32 %v837, %v840
      %v842 = vrot.slane %v841, 4
      %v844 = vshll.u32 %v790, 16
      %v846 = vrot.slane %v844, 5
      %v847 = vsel %vm282, %v842, %v846
      %v848 = vshrl.u32 %v790, 16
      %v850 = vrot.slane %v848, 4
      %v851 = vor.u32 %v850, %v846
      %v852 = vrot.slane %v851, 4
      %v854 = vshll.u32 %v791, 16
      %v856 = vrot.slane %v854, 5
      %v857 = vsel %vm282, %v852, %v856
      %v859 = vshrl.u32 %v792, 16
      %v861 = vrot.slane %v859, 4
      %v862 = vshll.u32 %v792, 16
      %v864 = vrot.slane %v862, 5
      %v865 = vor.u32 %v861, %v864
      %v866 = vrot.slane %v865, 4
      %v868 = vshll.u32 %v793, 16
      %v870 = vrot.slane %v868, 5
      %v871 = vsel %vm282, %v866, %v870
      %v872 = vshrl.u32 %v793, 16
      %v874 = vrot.slane %v872, 4
      %v875 = vor.u32 %v874, %v870
      %v876 = vrot.slane %v875, 4
      %v878 = vshll.u32 %v794, 16
      %v880 = vrot.slane %v878, 5
      %v881 = vsel %vm282, %v876, %v880
      %v883 = vshrl.u32 %v795, 16
      %v885 = vrot.slane %v883, 4
      %v886 = vshll.u32 %v795, 16
      %v888 = vrot.slane %v886, 5
      %v889 = vor.u32 %v885, %v888
      %v890 = vrot.slane %v889, 4
      %v892 = vshll.u32 %v796, 16
      %v894 = vrot.slane %v892, 5
      %v895 = vsel %vm282, %v890, %v894
      %v896 = vshrl.u32 %v796, 16
      %v898 = vrot.slane %v896, 4
      %v899 = vor.u32 %v898, %v894
      %v900 = vrot.slane %v899, 4
      %v902 = vshll.u32 %v797, 16
      %v904 = vrot.slane %v902, 5
      %v905 = vsel %vm282, %v900, %v904
      %v907 = vshrl.u32 %v798, 16
      %v909 = vrot.slane %v907, 4
      %v910 = vshll.u32 %v798, 16
      %v912 = vrot.slane %v910, 5
      %v913 = vor.u32 %v909, %v912
      %v914 = vrot.slane %v913, 4
      %v916 = vshll.u32 %v799, 16
      %v918 = vrot.slane %v916, 5
      %v919 = vsel %vm282, %v914, %v918
      %v920 = vshrl.u32 %v799, 16
      %v922 = vrot.slane %v920, 4
      %v923 = vor.u32 %v922, %v918
      %v924 = vrot.slane %v923, 4
      %v926 = vshll.u32 %v800, 16
      %v928 = vrot.slane %v926, 5
      %v929 = vsel %vm282, %v924, %v928
      %v931 = vshrl.u32 %v801, 16
      %v933 = vrot.slane %v931, 4
      %v934 = vshll.u32 %v801, 16
      %v936 = vrot.slane %v934, 5
      %v937 = vor.u32 %v933, %v936
      %v938 = vrot.slane %v937, 4
      %v940 = vshll.u32 %v802, 16
      %v942 = vrot.slane %v940, 5
      %v943 = vsel %vm282, %v938, %v942
      %v944 = vshrl.u32 %v802, 16
      %v946 = vrot.slane %v944, 4
      %v947 = vor.u32 %v946, %v942
      %v948 = vrot.slane %v947, 4
      %v950 = vshll.u32 %v803, 16
      %v952 = vrot.slane %v950, 5
      %v953 = vsel %vm282, %v948, %v952
      %v955 = vshrl.u32 %v804, 16
      %v957 = vrot.slane %v955, 4
      %v958 = vshll.u32 %v804, 16
      %v960 = vrot.slane %v958, 5
      %v961 = vor.u32 %v957, %v960
      %v962 = vrot.slane %v961, 4
      %v964 = vshll.u32 %v805, 16
      %v966 = vrot.slane %v964, 5
      %v967 = vsel %vm282, %v962, %v966
      %v968 = vshrl.u32 %v805, 16
      %v970 = vrot.slane %v968, 4
      %v971 = vor.u32 %v970, %v966
      %v972 = vrot.slane %v971, 4
      %v974 = vshll.u32 %v806, 16
      %v976 = vrot.slane %v974, 5
      %v977 = vsel %vm282, %v972, %v976
      %v979 = vshrl.u32 %v807, 16
      %v981 = vrot.slane %v979, 4
      %v982 = vshll.u32 %v807, 16
      %v984 = vrot.slane %v982, 5
      %v985 = vor.u32 %v981, %v984
      %v986 = vrot.slane %v985, 4
      %v988 = vshll.u32 %v808, 16
      %v990 = vrot.slane %v988, 5
      %v991 = vsel %vm282, %v986, %v990
      %v992 = vshrl.u32 %v808, 16
      %v994 = vrot.slane %v992, 4
      %v995 = vor.u32 %v994, %v990
      %v996 = vrot.slane %v995, 4
      %v998 = vshll.u32 %v809, 16
      %v1000 = vrot.slane %v998, 5
      %v1001 = vsel %vm282, %v996, %v1000
      %v1002 = vunpack.c.l.b16 %v823
      %v1003 = vunpack.c.l.b16 %v833
      %v1004 = vunpack.c.l.b16 %v847
      %v1005 = vunpack.c.l.b16 %v857
      %v1006 = vunpack.c.l.b16 %v871
      %v1007 = vunpack.c.l.b16 %v881
      %v1008 = vunpack.c.l.b16 %v895
      %v1009 = vunpack.c.l.b16 %v905
      %v1010 = vunpack.c.l.b16 %v919
      %v1011 = vunpack.c.l.b16 %v929
      %v1012 = vunpack.c.l.b16 %v943
      %v1013 = vunpack.c.l.b16 %v953
      %v1014 = vunpack.c.l.b16 %v967
      %v1015 = vunpack.c.l.b16 %v977
      %v1016 = vunpack.c.l.b16 %v991
      %v1017 = vunpack.c.l.b16 %v1001
      %v1018 = vpack.c.b16 %v1003, %v1002
      %v1019 = vpack.c.b16 %v1005, %v1004
      %v1020 = vpack.c.b16 %v1007, %v1006
      %v1021 = vpack.c.b16 %v1009, %v1008
      %v1022 = vpack.c.b16 %v1011, %v1010
      %v1023 = vpack.c.b16 %v1013, %v1012
      %v1024 = vpack.c.b16 %v1015, %v1014
      %v1025 = vpack.c.b16 %v1017, %v1016
      %1026 = vrot.lane.b32.xlu0 %v1018, 16
      %v1027 = vpop.permute.xlu0 %1026
      %1028 = vrot.lane.b32.xlu0 %v1019, 16
      %v1029 = vpop.permute.xlu0 %1028
      %1030 = vrot.lane.b32.xlu0 %v1020, 16
      %v1031 = vpop.permute.xlu0 %1030
      %1032 = vrot.lane.b32.xlu0 %v1021, 16
      %v1033 = vpop.permute.xlu0 %1032
      %1034 = vrot.lane.b32.xlu0 %v1022, 16
      %v1035 = vpop.permute.xlu0 %1034
      %1036 = vrot.lane.b32.xlu0 %v1023, 16
      %v1037 = vpop.permute.xlu0 %1036
      %1038 = vrot.lane.b32.xlu0 %v1024, 16
      %v1039 = vpop.permute.xlu0 %1038
      %1040 = vrot.lane.b32.xlu0 %v1025, 16
      %v1041 = vpop.permute.xlu0 %1040
      %vm1050 = vcmask 162944
      %1051 = vst.msk [vmem:[#allocation2] sm:$0xff] %vm1050, %v1027
      %1052 = vst.msk [vmem:[#allocation2 + $0x8] sm:$0xff] %vm1050, %v1029
      %1053 = vst.msk [vmem:[#allocation2 + $0x10] sm:$0xff] %vm1050, %v1031
      %1054 = vst.msk [vmem:[#allocation2 + $0x18] sm:$0xff] %vm1050, %v1033
      %1055 = vst.msk [vmem:[#allocation2 + $0x20] sm:$0xff] %vm1050, %v1035
      %1056 = vst.msk [vmem:[#allocation2 + $0x28] sm:$0xff] %vm1050, %v1037
      %1057 = vst.msk [vmem:[#allocation2 + $0x30] sm:$0xff] %vm1050, %v1039
      %1058 = vst.msk [vmem:[#allocation2 + $0x38] sm:$0xff] %vm1050, %v1041
      %v1059 = vld [vmem:[%s696] sm:$0xe]
      %v1060 = vld [vmem:[%s696 + $0x4] sm:$0xf]
      %v1061 = vld [vmem:[%s696 + $0x8] sm:$0x1]
      %v1062 = vld [vmem:[%s696 + $0xc] sm:$0xe]
      %v1063 = vld [vmem:[%s696 + $0x10] sm:$0xf]
      %v1064 = vld [vmem:[%s696 + $0x14] sm:$0x1]
      %v1065 = vld [vmem:[%s696 + $0x18] sm:$0xe]
      %v1066 = vld [vmem:[%s696 + $0x1c] sm:$0xf]
      %v1067 = vld [vmem:[%s696 + $0x20] sm:$0x1]
      %v1068 = vld [vmem:[%s696 + $0x24] sm:$0xe]
      %v1069 = vld [vmem:[%s696 + $0x28] sm:$0xf]
      %v1070 = vld [vmem:[%s696 + $0x2c] sm:$0x1]
      %v1071 = vld [vmem:[%s696 + $0x30] sm:$0xe]
      %v1072 = vld [vmem:[%s696 + $0x34] sm:$0xf]
      %v1073 = vld [vmem:[%s696 + $0x38] sm:$0x1]
      %v1074 = vld [vmem:[%s696 + $0x3c] sm:$0xe]
      %v1075 = vld [vmem:[%s696 + $0x40] sm:$0xf]
      %v1076 = vld [vmem:[%s696 + $0x44] sm:$0x1]
      %v1077 = vld [vmem:[%s696 + $0x48] sm:$0xe]
      %v1078 = vld [vmem:[%s696 + $0x4c] sm:$0xf]
      %v1079 = vld [vmem:[%s696 + $0x50] sm:$0x1]
      %v1080 = vld [vmem:[%s696 + $0x54] sm:$0xe]
      %v1081 = vld [vmem:[%s696 + $0x58] sm:$0xf]
      %v1082 = vld [vmem:[%s696 + $0x5c] sm:$0x1]
      %v1107 = vrot.slane %v1059, 5
      %v1108 = vrot.slane %v1107, 4
      %v1109 = vrot.slane %v1060, 5
      %v1110 = vsel %vm582, %v1108, %v1109
      %v1111 = vrot.slane %v1109, 4
      %v1112 = vrot.slane %v1061, 5
      %v1113 = vsel %vm582, %v1111, %v1112
      %v1114 = vrot.slane %v1062, 5
      %v1115 = vrot.slane %v1114, 4
      %v1116 = vrot.slane %v1063, 5
      %v1117 = vsel %vm582, %v1115, %v1116
      %v1118 = vrot.slane %v1116, 4
      %v1119 = vrot.slane %v1064, 5
      %v1120 = vsel %vm582, %v1118, %v1119
      %v1121 = vrot.slane %v1065, 5
      %v1122 = vrot.slane %v1121, 4
      %v1123 = vrot.slane %v1066, 5
      %v1124 = vsel %vm582, %v1122, %v1123
      %v1125 = vrot.slane %v1123, 4
      %v1126 = vrot.slane %v1067, 5
      %v1127 = vsel %vm582, %v1125, %v1126
      %v1128 = vrot.slane %v1068, 5
      %v1129 = vrot.slane %v1128, 4
      %v1130 = vrot.slane %v1069, 5
      %v1131 = vsel %vm582, %v1129, %v1130
      %v1132 = vrot.slane %v1130, 4
      %v1133 = vrot.slane %v1070, 5
      %v1134 = vsel %vm582, %v1132, %v1133
      %v1135 = vrot.slane %v1071, 5
      %v1136 = vrot.slane %v1135, 4
      %v1137 = vrot.slane %v1072, 5
      %v1138 = vsel %vm582, %v1136, %v1137
      %v1139 = vrot.slane %v1137, 4
      %v1140 = vrot.slane %v1073, 5
      %v1141 = vsel %vm582, %v1139, %v1140
      %v1142 = vrot.slane %v1074, 5
      %v1143 = vrot.slane %v1142, 4
      %v1144 = vrot.slane %v1075, 5
      %v1145 = vsel %vm582, %v1143, %v1144
      %v1146 = vrot.slane %v1144, 4
      %v1147 = vrot.slane %v1076, 5
      %v1148 = vsel %vm582, %v1146, %v1147
      %v1149 = vrot.slane %v1077, 5
      %v1150 = vrot.slane %v1149, 4
      %v1151 = vrot.slane %v1078, 5
      %v1152 = vsel %vm582, %v1150, %v1151
      %v1153 = vrot.slane %v1151, 4
      %v1154 = vrot.slane %v1079, 5
      %v1155 = vsel %vm582, %v1153, %v1154
      %v1156 = vrot.slane %v1080, 5
      %v1157 = vrot.slane %v1156, 4
      %v1158 = vrot.slane %v1081, 5
      %v1159 = vsel %vm582, %v1157, %v1158
      %v1160 = vrot.slane %v1158, 4
      %v1161 = vrot.slane %v1082, 5
      %v1162 = vsel %vm582, %v1160, %v1161
      %v1163 = vunpack.c.l.b16 %v1110
      %v1164 = vunpack.c.l.b16 %v1113
      %v1165 = vunpack.c.l.b16 %v1117
      %v1166 = vunpack.c.l.b16 %v1120
      %v1167 = vunpack.c.l.b16 %v1124
      %v1168 = vunpack.c.l.b16 %v1127
      %v1169 = vunpack.c.l.b16 %v1131
      %v1170 = vunpack.c.l.b16 %v1134
      %v1171 = vunpack.c.l.b16 %v1138
      %v1172 = vunpack.c.l.b16 %v1141
      %v1173 = vunpack.c.l.b16 %v1145
      %v1174 = vunpack.c.l.b16 %v1148
      %v1175 = vunpack.c.l.b16 %v1152
      %v1176 = vunpack.c.l.b16 %v1155
      %v1177 = vunpack.c.l.b16 %v1159
      %v1178 = vunpack.c.l.b16 %v1162
      %v1179 = vpack.c.b16 %v1164, %v1163
      %v1180 = vpack.c.b16 %v1166, %v1165
      %v1181 = vpack.c.b16 %v1168, %v1167
      %v1182 = vpack.c.b16 %v1170, %v1169
      %v1183 = vpack.c.b16 %v1172, %v1171
      %v1184 = vpack.c.b16 %v1174, %v1173
      %v1185 = vpack.c.b16 %v1176, %v1175
      %v1186 = vpack.c.b16 %v1178, %v1177
      %1187 = vrot.lane.b32.xlu0 %v1179, 20
      %v1188 = vpop.permute.xlu0 %1187
      %1189 = vrot.lane.b32.xlu0 %v1180, 20
      %v1190 = vpop.permute.xlu0 %1189
      %1191 = vrot.lane.b32.xlu0 %v1181, 20
      %v1192 = vpop.permute.xlu0 %1191
      %1193 = vrot.lane.b32.xlu0 %v1182, 20
      %v1194 = vpop.permute.xlu0 %1193
      %1195 = vrot.lane.b32.xlu0 %v1183, 20
      %v1196 = vpop.permute.xlu0 %1195
      %1197 = vrot.lane.b32.xlu0 %v1184, 20
      %v1198 = vpop.permute.xlu0 %1197
      %1199 = vrot.lane.b32.xlu0 %v1185, 20
      %v1200 = vpop.permute.xlu0 %1199
      %1201 = vrot.lane.b32.xlu0 %v1186, 20
      %v1202 = vpop.permute.xlu0 %1201
      %vm1211 = vcmask 195744
      %1212 = vst.msk [vmem:[#allocation2] sm:$0xff] %vm1211, %v1188
      %1213 = vst.msk [vmem:[#allocation2 + $0x8] sm:$0xff] %vm1211, %v1190
      %1214 = vst.msk [vmem:[#allocation2 + $0x10] sm:$0xff] %vm1211, %v1192
      %1215 = vst.msk [vmem:[#allocation2 + $0x18] sm:$0xff] %vm1211, %v1194
      %1216 = vst.msk [vmem:[#allocation2 + $0x20] sm:$0xff] %vm1211, %v1196
      %1217 = vst.msk [vmem:[#allocation2 + $0x28] sm:$0xff] %vm1211, %v1198
      %1218 = vst.msk [vmem:[#allocation2 + $0x30] sm:$0xff] %vm1211, %v1200
      %1219 = vst.msk [vmem:[#allocation2 + $0x38] sm:$0xff] %vm1211, %v1202
      %s1220 = scalar_lea.vmem %s172, 24
      %v1221 = vld [vmem:[%s1220] sm:$0xf]
      %v1222 = vld [vmem:[%s1220 + $0x4] sm:$0xf]
      %v1223 = vld [vmem:[%s1220 + $0xc] sm:$0xf]
      %v1224 = vld [vmem:[%s1220 + $0x10] sm:$0xf]
      %v1225 = vld [vmem:[%s1220 + $0x18] sm:$0xf]
      %v1226 = vld [vmem:[%s1220 + $0x1c] sm:$0xf]
      %v1227 = vld [vmem:[%s1220 + $0x24] sm:$0xf]
      %v1228 = vld [vmem:[%s1220 + $0x28] sm:$0xf]
      %v1229 = vld [vmem:[%s1220 + $0x30] sm:$0xf]
      %v1230 = vld [vmem:[%s1220 + $0x34] sm:$0xf]
      %v1231 = vld [vmem:[%s1220 + $0x3c] sm:$0xf]
      %v1232 = vld [vmem:[%s1220 + $0x40] sm:$0xf]
      %v1233 = vld [vmem:[%s1220 + $0x48] sm:$0xf]
      %v1234 = vld [vmem:[%s1220 + $0x4c] sm:$0xf]
      %v1235 = vld [vmem:[%s1220 + $0x54] sm:$0xf]
      %v1236 = vld [vmem:[%s1220 + $0x58] sm:$0xf]
      %v1253 = vunpack.c.l.b16 %v1221
      %v1254 = vunpack.c.l.b16 %v1222
      %v1255 = vunpack.c.l.b16 %v1223
      %v1256 = vunpack.c.l.b16 %v1224
      %v1257 = vunpack.c.l.b16 %v1225
      %v1258 = vunpack.c.l.b16 %v1226
      %v1259 = vunpack.c.l.b16 %v1227
      %v1260 = vunpack.c.l.b16 %v1228
      %v1261 = vunpack.c.l.b16 %v1229
      %v1262 = vunpack.c.l.b16 %v1230
      %v1263 = vunpack.c.l.b16 %v1231
      %v1264 = vunpack.c.l.b16 %v1232
      %v1265 = vunpack.c.l.b16 %v1233
      %v1266 = vunpack.c.l.b16 %v1234
      %v1267 = vunpack.c.l.b16 %v1235
      %v1268 = vunpack.c.l.b16 %v1236
      %v1269 = vpack.c.b16 %v1254, %v1253
      %v1270 = vpack.c.b16 %v1256, %v1255
      %v1271 = vpack.c.b16 %v1258, %v1257
      %v1272 = vpack.c.b16 %v1260, %v1259
      %v1273 = vpack.c.b16 %v1262, %v1261
      %v1274 = vpack.c.b16 %v1264, %v1263
      %v1275 = vpack.c.b16 %v1266, %v1265
      %v1276 = vpack.c.b16 %v1268, %v1267
      %1277 = vrot.lane.b32.xlu0 %v1269, 24
      %v1278 = vpop.permute.xlu0 %1277
      %1279 = vrot.lane.b32.xlu0 %v1270, 24
      %v1280 = vpop.permute.xlu0 %1279
      %1281 = vrot.lane.b32.xlu0 %v1271, 24
      %v1282 = vpop.permute.xlu0 %1281
      %1283 = vrot.lane.b32.xlu0 %v1272, 24
      %v1284 = vpop.permute.xlu0 %1283
      %1285 = vrot.lane.b32.xlu0 %v1273, 24
      %v1286 = vpop.permute.xlu0 %1285
      %1287 = vrot.lane.b32.xlu0 %v1274, 24
      %v1288 = vpop.permute.xlu0 %1287
      %1289 = vrot.lane.b32.xlu0 %v1275, 24
      %v1290 = vpop.permute.xlu0 %1289
      %1291 = vrot.lane.b32.xlu0 %v1276, 24
      %v1292 = vpop.permute.xlu0 %1291
      %vm1301 = vcmask 228544
      %1302 = vst.msk [vmem:[#allocation2] sm:$0xff] %vm1301, %v1278
      %1303 = vst.msk [vmem:[#allocation2 + $0x8] sm:$0xff] %vm1301, %v1280
      %1304 = vst.msk [vmem:[#allocation2 + $0x10] sm:$0xff] %vm1301, %v1282
      %1305 = vst.msk [vmem:[#allocation2 + $0x18] sm:$0xff] %vm1301, %v1284
      %1306 = vst.msk [vmem:[#allocation2 + $0x20] sm:$0xff] %vm1301, %v1286
      %1307 = vst.msk [vmem:[#allocation2 + $0x28] sm:$0xff] %vm1301, %v1288
      %1308 = vst.msk [vmem:[#allocation2 + $0x30] sm:$0xff] %vm1301, %v1290
      %1309 = vst.msk [vmem:[#allocation2 + $0x38] sm:$0xff] %vm1301, %v1292
      %v1310 = vld [vmem:[%s1220] sm:$0xf]
      %v1311 = vld [vmem:[%s1220 + $0x4] sm:$0xf]
      %v1312 = vld [vmem:[%s1220 + $0x8] sm:$0x1]
      %v1313 = vld [vmem:[%s1220 + $0xc] sm:$0xf]
      %v1314 = vld [vmem:[%s1220 + $0x10] sm:$0xf]
      %v1315 = vld [vmem:[%s1220 + $0x14] sm:$0x1]
      %v1316 = vld [vmem:[%s1220 + $0x18] sm:$0xf]
      %v1317 = vld [vmem:[%s1220 + $0x1c] sm:$0xf]
      %v1318 = vld [vmem:[%s1220 + $0x20] sm:$0x1]
      %v1319 = vld [vmem:[%s1220 + $0x24] sm:$0xf]
      %v1320 = vld [vmem:[%s1220 + $0x28] sm:$0xf]
      %v1321 = vld [vmem:[%s1220 + $0x2c] sm:$0x1]
      %v1322 = vld [vmem:[%s1220 + $0x30] sm:$0xf]
      %v1323 = vld [vmem:[%s1220 + $0x34] sm:$0xf]
      %v1324 = vld [vmem:[%s1220 + $0x38] sm:$0x1]
      %v1325 = vld [vmem:[%s1220 + $0x3c] sm:$0xf]
      %v1326 = vld [vmem:[%s1220 + $0x40] sm:$0xf]
      %v1327 = vld [vmem:[%s1220 + $0x44] sm:$0x1]
      %v1328 = vld [vmem:[%s1220 + $0x48] sm:$0xf]
      %v1329 = vld [vmem:[%s1220 + $0x4c] sm:$0xf]
      %v1330 = vld [vmem:[%s1220 + $0x50] sm:$0x1]
      %v1331 = vld [vmem:[%s1220 + $0x54] sm:$0xf]
      %v1332 = vld [vmem:[%s1220 + $0x58] sm:$0xf]
      %v1333 = vld [vmem:[%s1220 + $0x5c] sm:$0x1]
      %v1335 = vshrl.u32 %v1310, 16
      %v1337 = vrot.slane %v1335, 4
      %v1338 = vshll.u32 %v1310, 16
      %v1340 = vrot.slane %v1338, 5
      %v1341 = vor.u32 %v1337, %v1340
      %v1342 = vrot.slane %v1341, 4
      %v1344 = vshll.u32 %v1311, 16
      %v1346 = vrot.slane %v1344, 5
      %v1347 = vsel %vm282, %v1342, %v1346
      %v1348 = vshrl.u32 %v1311, 16
      %v1350 = vrot.slane %v1348, 4
      %v1351 = vor.u32 %v1350, %v1346
      %v1352 = vrot.slane %v1351, 4
      %v1354 = vshll.u32 %v1312, 16
      %v1356 = vrot.slane %v1354, 5
      %v1357 = vsel %vm282, %v1352, %v1356
      %v1359 = vshrl.u32 %v1313, 16
      %v1361 = vrot.slane %v1359, 4
      %v1362 = vshll.u32 %v1313, 16
      %v1364 = vrot.slane %v1362, 5
      %v1365 = vor.u32 %v1361, %v1364
      %v1366 = vrot.slane %v1365, 4
      %v1368 = vshll.u32 %v1314, 16
      %v1370 = vrot.slane %v1368, 5
      %v1371 = vsel %vm282, %v1366, %v1370
      %v1372 = vshrl.u32 %v1314, 16
      %v1374 = vrot.slane %v1372, 4
      %v1375 = vor.u32 %v1374, %v1370
      %v1376 = vrot.slane %v1375, 4
      %v1378 = vshll.u32 %v1315, 16
      %v1380 = vrot.slane %v1378, 5
      %v1381 = vsel %vm282, %v1376, %v1380
      %v1383 = vshrl.u32 %v1316, 16
      %v1385 = vrot.slane %v1383, 4
      %v1386 = vshll.u32 %v1316, 16
      %v1388 = vrot.slane %v1386, 5
      %v1389 = vor.u32 %v1385, %v1388
      %v1390 = vrot.slane %v1389, 4
      %v1392 = vshll.u32 %v1317, 16
      %v1394 = vrot.slane %v1392, 5
      %v1395 = vsel %vm282, %v1390, %v1394
      %v1396 = vshrl.u32 %v1317, 16
      %v1398 = vrot.slane %v1396, 4
      %v1399 = vor.u32 %v1398, %v1394
      %v1400 = vrot.slane %v1399, 4
      %v1402 = vshll.u32 %v1318, 16
      %v1404 = vrot.slane %v1402, 5
      %v1405 = vsel %vm282, %v1400, %v1404
      %v1407 = vshrl.u32 %v1319, 16
      %v1409 = vrot.slane %v1407, 4
      %v1410 = vshll.u32 %v1319, 16
      %v1412 = vrot.slane %v1410, 5
      %v1413 = vor.u32 %v1409, %v1412
      %v1414 = vrot.slane %v1413, 4
      %v1416 = vshll.u32 %v1320, 16
      %v1418 = vrot.slane %v1416, 5
      %v1419 = vsel %vm282, %v1414, %v1418
      %v1420 = vshrl.u32 %v1320, 16
      %v1422 = vrot.slane %v1420, 4
      %v1423 = vor.u32 %v1422, %v1418
      %v1424 = vrot.slane %v1423, 4
      %v1426 = vshll.u32 %v1321, 16
      %v1428 = vrot.slane %v1426, 5
      %v1429 = vsel %vm282, %v1424, %v1428
      %v1431 = vshrl.u32 %v1322, 16
      %v1433 = vrot.slane %v1431, 4
      %v1434 = vshll.u32 %v1322, 16
      %v1436 = vrot.slane %v1434, 5
      %v1437 = vor.u32 %v1433, %v1436
      %v1438 = vrot.slane %v1437, 4
      %v1440 = vshll.u32 %v1323, 16
      %v1442 = vrot.slane %v1440, 5
      %v1443 = vsel %vm282, %v1438, %v1442
      %v1444 = vshrl.u32 %v1323, 16
      %v1446 = vrot.slane %v1444, 4
      %v1447 = vor.u32 %v1446, %v1442
      %v1448 = vrot.slane %v1447, 4
      %v1450 = vshll.u32 %v1324, 16
      %v1452 = vrot.slane %v1450, 5
      %v1453 = vsel %vm282, %v1448, %v1452
      %v1455 = vshrl.u32 %v1325, 16
      %v1457 = vrot.slane %v1455, 4
      %v1458 = vshll.u32 %v1325, 16
      %v1460 = vrot.slane %v1458, 5
      %v1461 = vor.u32 %v1457, %v1460
      %v1462 = vrot.slane %v1461, 4
      %v1464 = vshll.u32 %v1326, 16
      %v1466 = vrot.slane %v1464, 5
      %v1467 = vsel %vm282, %v1462, %v1466
      %v1468 = vshrl.u32 %v1326, 16
      %v1470 = vrot.slane %v1468, 4
      %v1471 = vor.u32 %v1470, %v1466
      %v1472 = vrot.slane %v1471, 4
      %v1474 = vshll.u32 %v1327, 16
      %v1476 = vrot.slane %v1474, 5
      %v1477 = vsel %vm282, %v1472, %v1476
      %v1479 = vshrl.u32 %v1328, 16
      %v1481 = vrot.slane %v1479, 4
      %v1482 = vshll.u32 %v1328, 16
      %v1484 = vrot.slane %v1482, 5
      %v1485 = vor.u32 %v1481, %v1484
      %v1486 = vrot.slane %v1485, 4
      %v1488 = vshll.u32 %v1329, 16
      %v1490 = vrot.slane %v1488, 5
      %v1491 = vsel %vm282, %v1486, %v1490
      %v1492 = vshrl.u32 %v1329, 16
      %v1494 = vrot.slane %v1492, 4
      %v1495 = vor.u32 %v1494, %v1490
      %v1496 = vrot.slane %v1495, 4
      %v1498 = vshll.u32 %v1330, 16
      %v1500 = vrot.slane %v1498, 5
      %v1501 = vsel %vm282, %v1496, %v1500
      %v1503 = vshrl.u32 %v1331, 16
      %v1505 = vrot.slane %v1503, 4
      %v1506 = vshll.u32 %v1331, 16
      %v1508 = vrot.slane %v1506, 5
      %v1509 = vor.u32 %v1505, %v1508
      %v1510 = vrot.slane %v1509, 4
      %v1512 = vshll.u32 %v1332, 16
      %v1514 = vrot.slane %v1512, 5
      %v1515 = vsel %vm282, %v1510, %v1514
      %v1516 = vshrl.u32 %v1332, 16
      %v1518 = vrot.slane %v1516, 4
      %v1519 = vor.u32 %v1518, %v1514
      %v1520 = vrot.slane %v1519, 4
      %v1522 = vshll.u32 %v1333, 16
      %v1524 = vrot.slane %v1522, 5
      %v1525 = vsel %vm282, %v1520, %v1524
      %v1526 = vunpack.c.l.b16 %v1347
      %v1527 = vunpack.c.l.b16 %v1357
      %v1528 = vunpack.c.l.b16 %v1371
      %v1529 = vunpack.c.l.b16 %v1381
      %v1530 = vunpack.c.l.b16 %v1395
      %v1531 = vunpack.c.l.b16 %v1405
      %v1532 = vunpack.c.l.b16 %v1419
      %v1533 = vunpack.c.l.b16 %v1429
      %v1534 = vunpack.c.l.b16 %v1443
      %v1535 = vunpack.c.l.b16 %v1453
      %v1536 = vunpack.c.l.b16 %v1467
      %v1537 = vunpack.c.l.b16 %v1477
      %v1538 = vunpack.c.l.b16 %v1491
      %v1539 = vunpack.c.l.b16 %v1501
      %v1540 = vunpack.c.l.b16 %v1515
      %v1541 = vunpack.c.l.b16 %v1525
      %v1542 = vpack.c.b16 %v1527, %v1526
      %v1543 = vpack.c.b16 %v1529, %v1528
      %v1544 = vpack.c.b16 %v1531, %v1530
      %v1545 = vpack.c.b16 %v1533, %v1532
      %v1546 = vpack.c.b16 %v1535, %v1534
      %v1547 = vpack.c.b16 %v1537, %v1536
      %v1548 = vpack.c.b16 %v1539, %v1538
      %v1549 = vpack.c.b16 %v1541, %v1540
      %1550 = vrot.lane.b32.xlu0 %v1542, 28
      %v1551 = vpop.permute.xlu0 %1550
      %1552 = vrot.lane.b32.xlu0 %v1543, 28
      %v1553 = vpop.permute.xlu0 %1552
      %1554 = vrot.lane.b32.xlu0 %v1544, 28
      %v1555 = vpop.permute.xlu0 %1554
      %1556 = vrot.lane.b32.xlu0 %v1545, 28
      %v1557 = vpop.permute.xlu0 %1556
      %1558 = vrot.lane.b32.xlu0 %v1546, 28
      %v1559 = vpop.permute.xlu0 %1558
      %1560 = vrot.lane.b32.xlu0 %v1547, 28
      %v1561 = vpop.permute.xlu0 %1560
      %1562 = vrot.lane.b32.xlu0 %v1548, 28
      %v1563 = vpop.permute.xlu0 %1562
      %1564 = vrot.lane.b32.xlu0 %v1549, 28
      %v1565 = vpop.permute.xlu0 %1564
      %vm1574 = vcmask 261344
      %1575 = vst.msk [vmem:[#allocation2] sm:$0xff] %vm1574, %v1551
      %1576 = vst.msk [vmem:[#allocation2 + $0x8] sm:$0xff] %vm1574, %v1553
      %1577 = vst.msk [vmem:[#allocation2 + $0x10] sm:$0xff] %vm1574, %v1555
      %1578 = vst.msk [vmem:[#allocation2 + $0x18] sm:$0xff] %vm1574, %v1557
      %1579 = vst.msk [vmem:[#allocation2 + $0x20] sm:$0xff] %vm1574, %v1559
      %1580 = vst.msk [vmem:[#allocation2 + $0x28] sm:$0xff] %vm1574, %v1561
      %1581 = vst.msk [vmem:[#allocation2 + $0x30] sm:$0xff] %vm1574, %v1563
      %1582 = vst.msk [vmem:[#allocation2 + $0x38] sm:$0xff] %vm1574, %v1565
      %v1583 = vld [vmem:[%s1220] sm:$0xe]
      %v1584 = vld [vmem:[%s1220 + $0x4] sm:$0xf]
      %v1585 = vld [vmem:[%s1220 + $0x8] sm:$0x1]
      %v1586 = vld [vmem:[%s1220 + $0xc] sm:$0xe]
      %v1587 = vld [vmem:[%s1220 + $0x10] sm:$0xf]
      %v1588 = vld [vmem:[%s1220 + $0x14] sm:$0x1]
      %v1589 = vld [vmem:[%s1220 + $0x18] sm:$0xe]
      %v1590 = vld [vmem:[%s1220 + $0x1c] sm:$0xf]
      %v1591 = vld [vmem:[%s1220 + $0x20] sm:$0x1]
      %v1592 = vld [vmem:[%s1220 + $0x24] sm:$0xe]
      %v1593 = vld [vmem:[%s1220 + $0x28] sm:$0xf]
      %v1594 = vld [vmem:[%s1220 + $0x2c] sm:$0x1]
      %v1595 = vld [vmem:[%s1220 + $0x30] sm:$0xe]
      %v1596 = vld [vmem:[%s1220 + $0x34] sm:$0xf]
      %v1597 = vld [vmem:[%s1220 + $0x38] sm:$0x1]
      %v1598 = vld [vmem:[%s1220 + $0x3c] sm:$0xe]
      %v1599 = vld [vmem:[%s1220 + $0x40] sm:$0xf]
      %v1600 = vld [vmem:[%s1220 + $0x44] sm:$0x1]
      %v1601 = vld [vmem:[%s1220 + $0x48] sm:$0xe]
      %v1602 = vld [vmem:[%s1220 + $0x4c] sm:$0xf]
      %v1603 = vld [vmem:[%s1220 + $0x50] sm:$0x1]
      %v1604 = vld [vmem:[%s1220 + $0x54] sm:$0xe]
      %v1605 = vld [vmem:[%s1220 + $0x58] sm:$0xf]
      %v1606 = vld [vmem:[%s1220 + $0x5c] sm:$0x1]
      %v1631 = vrot.slane %v1583, 5
      %v1632 = vrot.slane %v1631, 4
      %v1633 = vrot.slane %v1584, 5
      %v1634 = vsel %vm582, %v1632, %v1633
      %v1635 = vrot.slane %v1633, 4
      %v1636 = vrot.slane %v1585, 5
      %v1637 = vsel %vm582, %v1635, %v1636
      %v1638 = vrot.slane %v1586, 5
      %v1639 = vrot.slane %v1638, 4
      %v1640 = vrot.slane %v1587, 5
      %v1641 = vsel %vm582, %v1639, %v1640
      %v1642 = vrot.slane %v1640, 4
      %v1643 = vrot.slane %v1588, 5
      %v1644 = vsel %vm582, %v1642, %v1643
      %v1645 = vrot.slane %v1589, 5
      %v1646 = vrot.slane %v1645, 4
      %v1647 = vrot.slane %v1590, 5
      %v1648 = vsel %vm582, %v1646, %v1647
      %v1649 = vrot.slane %v1647, 4
      %v1650 = vrot.slane %v1591, 5
      %v1651 = vsel %vm582, %v1649, %v1650
      %v1652 = vrot.slane %v1592, 5
      %v1653 = vrot.slane %v1652, 4
      %v1654 = vrot.slane %v1593, 5
      %v1655 = vsel %vm582, %v1653, %v1654
      %v1656 = vrot.slane %v1654, 4
      %v1657 = vrot.slane %v1594, 5
      %v1658 = vsel %vm582, %v1656, %v1657
      %v1659 = vrot.slane %v1595, 5
      %v1660 = vrot.slane %v1659, 4
      %v1661 = vrot.slane %v1596, 5
      %v1662 = vsel %vm582, %v1660, %v1661
      %v1663 = vrot.slane %v1661, 4
      %v1664 = vrot.slane %v1597, 5
      %v1665 = vsel %vm582, %v1663, %v1664
      %v1666 = vrot.slane %v1598, 5
      %v1667 = vrot.slane %v1666, 4
      %v1668 = vrot.slane %v1599, 5
      %v1669 = vsel %vm582, %v1667, %v1668
      %v1670 = vrot.slane %v1668, 4
      %v1671 = vrot.slane %v1600, 5
      %v1672 = vsel %vm582, %v1670, %v1671
      %v1673 = vrot.slane %v1601, 5
      %v1674 = vrot.slane %v1673, 4
      %v1675 = vrot.slane %v1602, 5
      %v1676 = vsel %vm582, %v1674, %v1675
      %v1677 = vrot.slane %v1675, 4
      %v1678 = vrot.slane %v1603, 5
      %v1679 = vsel %vm582, %v1677, %v1678
      %v1680 = vrot.slane %v1604, 5
      %v1681 = vrot.slane %v1680, 4
      %v1682 = vrot.slane %v1605, 5
      %v1683 = vsel %vm582, %v1681, %v1682
      %v1684 = vrot.slane %v1682, 4
      %v1685 = vrot.slane %v1606, 5
      %v1686 = vsel %vm582, %v1684, %v1685
      %v1687 = vunpack.c.l.b16 %v1634
      %v1688 = vunpack.c.l.b16 %v1637
      %v1689 = vunpack.c.l.b16 %v1641
      %v1690 = vunpack.c.l.b16 %v1644
      %v1691 = vunpack.c.l.b16 %v1648
      %v1692 = vunpack.c.l.b16 %v1651
      %v1693 = vunpack.c.l.b16 %v1655
      %v1694 = vunpack.c.l.b16 %v1658
      %v1695 = vunpack.c.l.b16 %v1662
      %v1696 = vunpack.c.l.b16 %v1665
      %v1697 = vunpack.c.l.b16 %v1669
      %v1698 = vunpack.c.l.b16 %v1672
      %v1699 = vunpack.c.l.b16 %v1676
      %v1700 = vunpack.c.l.b16 %v1679
      %v1701 = vunpack.c.l.b16 %v1683
      %v1702 = vunpack.c.l.b16 %v1686
      %v1703 = vpack.c.b16 %v1688, %v1687
      %v1704 = vpack.c.b16 %v1690, %v1689
      %v1705 = vpack.c.b16 %v1692, %v1691
      %v1706 = vpack.c.b16 %v1694, %v1693
      %v1707 = vpack.c.b16 %v1696, %v1695
      %v1708 = vpack.c.b16 %v1698, %v1697
      %v1709 = vpack.c.b16 %v1700, %v1699
      %v1710 = vpack.c.b16 %v1702, %v1701
      %1711 = vrot.lane.b32.xlu0 %v1703, 32
      %v1712 = vpop.permute.xlu0 %1711
      %1713 = vrot.lane.b32.xlu0 %v1704, 32
      %v1714 = vpop.permute.xlu0 %1713
      %1715 = vrot.lane.b32.xlu0 %v1705, 32
      %v1716 = vpop.permute.xlu0 %1715
      %1717 = vrot.lane.b32.xlu0 %v1706, 32
      %v1718 = vpop.permute.xlu0 %1717
      %1719 = vrot.lane.b32.xlu0 %v1707, 32
      %v1720 = vpop.permute.xlu0 %1719
      %1721 = vrot.lane.b32.xlu0 %v1708, 32
      %v1722 = vpop.permute.xlu0 %1721
      %1723 = vrot.lane.b32.xlu0 %v1709, 32
      %v1724 = vpop.permute.xlu0 %1723
      %1725 = vrot.lane.b32.xlu0 %v1710, 32
      %v1726 = vpop.permute.xlu0 %1725
      %vm1735 = vcmask 294144
      %1736 = vst.msk [vmem:[#allocation2] sm:$0xff] %vm1735, %v1712
      %1737 = vst.msk [vmem:[#allocation2 + $0x8] sm:$0xff] %vm1735, %v1714
      %1738 = vst.msk [vmem:[#allocation2 + $0x10] sm:$0xff] %vm1735, %v1716
      %1739 = vst.msk [vmem:[#allocation2 + $0x18] sm:$0xff] %vm1735, %v1718
      %1740 = vst.msk [vmem:[#allocation2 + $0x20] sm:$0xff] %vm1735, %v1720
      %1741 = vst.msk [vmem:[#allocation2 + $0x28] sm:$0xff] %vm1735, %v1722
      %1742 = vst.msk [vmem:[#allocation2 + $0x30] sm:$0xff] %vm1735, %v1724
      %1743 = vst.msk [vmem:[#allocation2 + $0x38] sm:$0xff] %vm1735, %v1726
      %v1744 = vld [vmem:[#allocation2] sm:$0xff]
      %v1745 = vld [vmem:[#allocation2 + $0x8] sm:$0xff]
      %v1746 = vld [vmem:[#allocation2 + $0x10] sm:$0xff]
      %v1747 = vld [vmem:[#allocation2 + $0x18] sm:$0xff]
      %v1748 = vld [vmem:[#allocation2 + $0x20] sm:$0xff]
      %v1749 = vld [vmem:[#allocation2 + $0x28] sm:$0xff]
      %v1750 = vld [vmem:[#allocation2 + $0x30] sm:$0xff]
      %v1751 = vld [vmem:[#allocation2 + $0x38] sm:$0xff]
      %v1752 = vld [vmem:[%s1] sm:$0xf]
      %v1753 = vld [vmem:[%s1 + $0x4] sm:$0xf]
      %v1754 = vld [vmem:[%s1 + $0x8] sm:$0xf]
      %v1755 = vld [vmem:[%s1 + $0xc] sm:$0xf]
      %v1756 = vld [vmem:[%s1 + $0x10] sm:$0x3]
      %v1762 = vunpack.c.l.b16 %v1752
      %v1763 = vunpack.c.l.b16 %v1753
      %v1764 = vunpack.c.l.b16 %v1754
      %v1765 = vunpack.c.l.b16 %v1755
      %v1766 = vunpack.c.l.b16 %v1756
      %v1767 = vpack.c.b16 %v1763, %v1762
      %v1768 = vpack.c.b16 %v1765, %v1764
      %v1769 = vpack.c.b16 %v1766, %v1766
      %vm1772 = vcmask 293888
      %v1774 = vsel %vm1772, %v1744, 0
      %v1777 = vsel %vm1772, %v1745, 0
      %v1780 = vsel %vm1772, %v1746, 0
      %v1783 = vsel %vm1772, %v1747, 0
      %v1786 = vsel %vm1772, %v1748, 0
      %v1789 = vsel %vm1772, %v1749, 0
      %v1792 = vsel %vm1772, %v1750, 0
      %v1795 = vsel %vm1772, %v1751, 0
      %vm1797 = vcmask 1041408
      %v1799 = vsel %vm1797, %v1769, 0
      %1801 = vmatprep.subr.bf16.mxu0 0
      %1802 = vmatpush1.bf16.msra.mxu0 %v1767
      %1803 = vmatprep.subr.bf16.mxu0 0
      %1804 = vmatpush1.bf16.msra.mxu0 %v1768
      %1805 = vmatprep.subr.bf16.mxu0 0
      %1806 = vmatpush1.bf16.msra.mxu0 %v1799
      %1807 = vmatprep.subr.bf16.mxu0 0
      %1808 = vmatpush1.bf16.msra.mxu0 0
      %1809 = vmatprep.subr.bf16.mxu0 0
      %1810 = vmatpush1.bf16.msra.mxu0 0
      %1811 = vmatprep.subr.bf16.mxu0 0
      %1812 = vmatpush1.bf16.msra.mxu0 0
      %1813 = vmatprep.subr.bf16.mxu0 0
      %1814 = vmatpush1.bf16.msra.mxu0 0
      %1815 = vmatprep.subr.bf16.mxu0 0
      %1816 = vmatpush1.bf16.msra.mxu0 0
      %1817 = vmatprep.subr.bf16.mxu0 0
      %1818 = vmatpush1.bf16.msra.mxu0 0
      %1819 = vmatprep.subr.bf16.mxu0 0
      %1820 = vmatpush1.bf16.msra.mxu0 0
      %1821 = vmatprep.subr.bf16.mxu0 0
      %1822 = vmatpush1.bf16.msra.mxu0 0
      %1823 = vmatprep.subr.bf16.mxu0 0
      %1824 = vmatpush1.bf16.msra.mxu0 0
      %1825 = vmatprep.subr.bf16.mxu0 0
      %1826 = vmatpush1.bf16.msra.mxu0 0
      %1827 = vmatprep.subr.bf16.mxu0 0
      %1828 = vmatpush1.bf16.msra.mxu0 0
      %1829 = vmatprep.subr.bf16.mxu0 0
      %1830 = vmatpush1.bf16.msra.mxu0 0
      %1831 = vmatprep.subr.bf16.mxu0 0
      %1832 = vmatpush1.bf16.msra.mxu0 0
      %1833 = vmatprep.mubr.bf16.mxu0 0
      %1834 = vmatmul.mubr.bf16.gmra.mrb[0].mxu0 %v1774
      %v1835 = vpop.f32.mrb[0].mxu0
      %v1836 = vadd.f32 0.0, %v1835
      %v1837 = vpop.f32.mrb[0].mxu0
      %v1838 = vpop.f32.mrb[0].mxu0
      %v1839 = vadd.f32 0.0, %v1838
      %v1840 = vpop.f32.mrb[0].mxu0
      %1841 = vmatprep.mubr.bf16.mxu0 0
      %1842 = vmatmul.mubr.bf16.gmra.mrb[0].mxu0 %v1777
      %v1843 = vpop.f32.mrb[0].mxu0
      %v1844 = vadd.f32 0.0, %v1843
      %v1845 = vpop.f32.mrb[0].mxu0
      %v1846 = vpop.f32.mrb[0].mxu0
      %v1847 = vadd.f32 0.0, %v1846
      %v1848 = vpop.f32.mrb[0].mxu0
      %1849 = vmatprep.mubr.bf16.mxu0 0
      %1850 = vmatmul.mubr.bf16.gmra.mrb[0].mxu0 %v1780
      %v1851 = vpop.f32.mrb[0].mxu0
      %v1852 = vadd.f32 0.0, %v1851
      %v1853 = vpop.f32.mrb[0].mxu0
      %v1854 = vpop.f32.mrb[0].mxu0
      %v1855 = vadd.f32 0.0, %v1854
      %v1856 = vpop.f32.mrb[0].mxu0
      %1857 = vmatprep.mubr.bf16.mxu0 0
      %1858 = vmatmul.mubr.bf16.gmra.mrb[0].mxu0 %v1783
      %v1859 = vpop.f32.mrb[0].mxu0
      %v1860 = vadd.f32 0.0, %v1859
      %v1861 = vpop.f32.mrb[0].mxu0
      %v1862 = vpop.f32.mrb[0].mxu0
      %v1863 = vadd.f32 0.0, %v1862
      %v1864 = vpop.f32.mrb[0].mxu0
      %1865 = vmatprep.mubr.bf16.mxu0 0
      %1866 = vmatmul.mubr.bf16.gmra.mrb[0].mxu0 %v1786
      %v1867 = vpop.f32.mrb[0].mxu0
      %v1868 = vadd.f32 0.0, %v1867
      %v1869 = vpop.f32.mrb[0].mxu0
      %v1870 = vpop.f32.mrb[0].mxu0
      %v1871 = vadd.f32 0.0, %v1870
      %v1872 = vpop.f32.mrb[0].mxu0
      %1873 = vmatprep.mubr.bf16.mxu0 0
      %1874 = vmatmul.mubr.bf16.gmra.mrb[0].mxu0 %v1789
      %v1875 = vpop.f32.mrb[0].mxu0
      %v1876 = vadd.f32 0.0, %v1875
      %v1877 = vpop.f32.mrb[0].mxu0
      %v1878 = vpop.f32.mrb[0].mxu0
      %v1879 = vadd.f32 0.0, %v1878
      %v1880 = vpop.f32.mrb[0].mxu0
      %1881 = vmatprep.mubr.bf16.mxu0 0
      %1882 = vmatmul.mubr.bf16.gmra.mrb[0].mxu0 %v1792
      %v1883 = vpop.f32.mrb[0].mxu0
      %v1884 = vadd.f32 0.0, %v1883
      %v1885 = vpop.f32.mrb[0].mxu0
      %v1886 = vpop.f32.mrb[0].mxu0
      %v1887 = vadd.f32 0.0, %v1886
      %v1888 = vpop.f32.mrb[0].mxu0
      %1889 = vmatprep.mubr.bf16.mxu0 0
      %1890 = vmatmul.mubr.bf16.gmra.mrb[0].mxu0 %v1795
      %v1891 = vpop.f32.mrb[0].mxu0
      %v1892 = vadd.f32 0.0, %v1891
      %v1893 = vpop.f32.mrb[0].mxu0
      %v1894 = vpop.f32.mrb[0].mxu0
      %v1895 = vadd.f32 0.0, %v1894
      %v1896 = vpop.f32.mrb[0].mxu0
      %1897 = vdwg.mxu0
      %v1898 = vpack.c.bf16 %v1839, %v1836
      %v1899 = vpack.c.bf16 %v1847, %v1844
      %v1900 = vpack.c.bf16 %v1855, %v1852
      %v1901 = vpack.c.bf16 %v1863, %v1860
      %v1902 = vpack.c.bf16 %v1871, %v1868
      %v1903 = vpack.c.bf16 %v1879, %v1876
      %v1904 = vpack.c.bf16 %v1887, %v1884
      %v1905 = vpack.c.bf16 %v1895, %v1892
      %v1914 = vunpack.c.l.b16 %v1898
      %v1915 = vunpack.c.h.b16 %v1898
      %v1916 = vunpack.c.l.b16 %v1899
      %v1917 = vunpack.c.h.b16 %v1899
      %v1918 = vunpack.c.l.b16 %v1900
      %v1919 = vunpack.c.h.b16 %v1900
      %v1920 = vunpack.c.l.b16 %v1901
      %v1921 = vunpack.c.h.b16 %v1901
      %v1922 = vunpack.c.l.b16 %v1902
      %v1923 = vunpack.c.h.b16 %v1902
      %v1924 = vunpack.c.l.b16 %v1903
      %v1925 = vunpack.c.h.b16 %v1903
      %v1926 = vunpack.c.l.b16 %v1904
      %v1927 = vunpack.c.h.b16 %v1904
      %v1928 = vunpack.c.l.b16 %v1905
      %v1929 = vunpack.c.h.b16 %v1905
      %v1930 = vpack.c.b16 %v1914, %v1914
      %v1931 = vpack.c.b16 %v1915, %v1915
      %v1932 = vpack.c.b16 %v1916, %v1916
      %v1933 = vpack.c.b16 %v1917, %v1917
      %v1934 = vpack.c.b16 %v1918, %v1918
      %v1935 = vpack.c.b16 %v1919, %v1919
      %v1936 = vpack.c.b16 %v1920, %v1920
      %v1937 = vpack.c.b16 %v1921, %v1921
      %v1938 = vpack.c.b16 %v1922, %v1922
      %v1939 = vpack.c.b16 %v1923, %v1923
      %v1940 = vpack.c.b16 %v1924, %v1924
      %v1941 = vpack.c.b16 %v1925, %v1925
      %v1942 = vpack.c.b16 %v1926, %v1926
      %v1943 = vpack.c.b16 %v1927, %v1927
      %v1944 = vpack.c.b16 %v1928, %v1928
      %v1945 = vpack.c.b16 %v1929, %v1929
      %vm1962 = vcmask 60416
      %1963 = vst.msk [vmem:[%s177] sm:$0xf] %vm1962, %v1930
      %1964 = vst.msk [vmem:[%s177 + $0x4] sm:$0xf] %vm1962, %v1931
      %1965 = vst.msk [vmem:[%s177 + $0x8] sm:$0xf] %vm1962, %v1932
      %1966 = vst.msk [vmem:[%s177 + $0xc] sm:$0xf] %vm1962, %v1933
      %1967 = vst.msk [vmem:[%s177 + $0x10] sm:$0xf] %vm1962, %v1934
      %1968 = vst.msk [vmem:[%s177 + $0x14] sm:$0xf] %vm1962, %v1935
      %1969 = vst.msk [vmem:[%s177 + $0x18] sm:$0xf] %vm1962, %v1936
      %1970 = vst.msk [vmem:[%s177 + $0x1c] sm:$0xf] %vm1962, %v1937
      %1971 = vst.msk [vmem:[%s177 + $0x20] sm:$0xf] %vm1962, %v1938
      %1972 = vst.msk [vmem:[%s177 + $0x24] sm:$0xf] %vm1962, %v1939
      %1973 = vst.msk [vmem:[%s177 + $0x28] sm:$0xf] %vm1962, %v1940
      %1974 = vst.msk [vmem:[%s177 + $0x2c] sm:$0xf] %vm1962, %v1941
      %1975 = vst.msk [vmem:[%s177 + $0x30] sm:$0xf] %vm1962, %v1942
      %1976 = vst.msk [vmem:[%s177 + $0x34] sm:$0xf] %vm1962, %v1943
      %1977 = vst.msk [vmem:[%s177 + $0x38] sm:$0xf] %vm1962, %v1944
      %1978 = vst.msk [vmem:[%s177 + $0x3c] sm:$0xf] %vm1962, %v1945
      %vm1979 = vcmask 64512
      %v1980 = vsel %vm1979, %v1836, 0.0
      %v1981 = vsel %vm1979, %v1839, 0.0
      %v1982 = vadd.f32 %v1980, %v1981
      %v1983 = vsel %vm1979, %v1844, 0.0
      %v1984 = vadd.f32 %v1982, %v1983
      %v1985 = vsel %vm1979, %v1847, 0.0
      %v1986 = vadd.f32 %v1984, %v1985
      %v1987 = vsel %vm1979, %v1852, 0.0
      %v1988 = vadd.f32 %v1986, %v1987
      %v1989 = vsel %vm1979, %v1855, 0.0
      %v1990 = vadd.f32 %v1988, %v1989
      %v1991 = vsel %vm1979, %v1860, 0.0
      %v1992 = vadd.f32 %v1990, %v1991
      %v1993 = vsel %vm1979, %v1863, 0.0
      %v1994 = vadd.f32 %v1992, %v1993
      %v1995 = vsel %vm1979, %v1868, 0.0
      %v1996 = vadd.f32 %v1994, %v1995
      %v1997 = vsel %vm1979, %v1871, 0.0
      %v1998 = vadd.f32 %v1996, %v1997
      %v1999 = vsel %vm1979, %v1876, 0.0
      %v2000 = vadd.f32 %v1998, %v1999
      %v2001 = vsel %vm1979, %v1879, 0.0
      %v2002 = vadd.f32 %v2000, %v2001
      %v2003 = vsel %vm1979, %v1884, 0.0
      %v2004 = vadd.f32 %v2002, %v2003
      %v2005 = vsel %vm1979, %v1887, 0.0
      %v2006 = vadd.f32 %v2004, %v2005
      %v2007 = vsel %vm1979, %v1892, 0.0
      %v2008 = vadd.f32 %v2006, %v2007
      %v2009 = vsel %vm1979, %v1895, 0.0
      %v2010 = vadd.f32 %v2008, %v2009
      %v2011 = vrot.slane %v2010, 4
      %v2012 = vadd.f32 %v2010, %v2011
      %v2013 = vrot.slane %v2012, 2
      %v2014 = vadd.f32 %v2012, %v2013
      %v2015 = vrot.slane %v2014, 1
      %v2016 = vadd.f32 %v2014, %v2015
      %vm2017 = vcmask 57344
      %2018 = vst.msk [vmem:[%s181] sm:$0x1] %vm2017, %v2016
      %v2019 = vmul.f32 %v1836, %v1836
      %v2020 = vmul.f32 %v1839, %v1839
      %v2021 = vmul.f32 %v1844, %v1844
      %v2022 = vmul.f32 %v1847, %v1847
      %v2023 = vmul.f32 %v1852, %v1852
      %v2024 = vmul.f32 %v1855, %v1855
      %v2025 = vmul.f32 %v1860, %v1860
      %v2026 = vmul.f32 %v1863, %v1863
      %v2027 = vmul.f32 %v1868, %v1868
      %v2028 = vmul.f32 %v1871, %v1871
      %v2029 = vmul.f32 %v1876, %v1876
      %v2030 = vmul.f32 %v1879, %v1879
      %v2031 = vmul.f32 %v1884, %v1884
      %v2032 = vmul.f32 %v1887, %v1887
      %v2033 = vmul.f32 %v1892, %v1892
      %v2034 = vmul.f32 %v1895, %v1895
      %v2035 = vsel %vm1979, %v2019, 0.0
      %v2036 = vsel %vm1979, %v2020, 0.0
      %v2037 = vadd.f32 %v2035, %v2036
      %v2038 = vsel %vm1979, %v2021, 0.0
      %v2039 = vadd.f32 %v2037, %v2038
      %v2040 = vsel %vm1979, %v2022, 0.0
      %v2041 = vadd.f32 %v2039, %v2040
      %v2042 = vsel %vm1979, %v2023, 0.0
      %v2043 = vadd.f32 %v2041, %v2042
      %v2044 = vsel %vm1979, %v2024, 0.0
      %v2045 = vadd.f32 %v2043, %v2044
      %v2046 = vsel %vm1979, %v2025, 0.0
      %v2047 = vadd.f32 %v2045, %v2046
      %v2048 = vsel %vm1979, %v2026, 0.0
      %v2049 = vadd.f32 %v2047, %v2048
      %v2050 = vsel %vm1979, %v2027, 0.0
      %v2051 = vadd.f32 %v2049, %v2050
      %v2052 = vsel %vm1979, %v2028, 0.0
      %v2053 = vadd.f32 %v2051, %v2052
      %v2054 = vsel %vm1979, %v2029, 0.0
      %v2055 = vadd.f32 %v2053, %v2054
      %v2056 = vsel %vm1979, %v2030, 0.0
      %v2057 = vadd.f32 %v2055, %v2056
      %v2058 = vsel %vm1979, %v2031, 0.0
      %v2059 = vadd.f32 %v2057, %v2058
      %v2060 = vsel %vm1979, %v2032, 0.0
      %v2061 = vadd.f32 %v2059, %v2060
      %v2062 = vsel %vm1979, %v2033, 0.0
      %v2063 = vadd.f32 %v2061, %v2062
      %v2064 = vsel %vm1979, %v2034, 0.0
      %v2065 = vadd.f32 %v2063, %v2064
      %v2066 = vrot.slane %v2065, 4
      %v2067 = vadd.f32 %v2065, %v2066
      %v2068 = vrot.slane %v2067, 2
      %v2069 = vadd.f32 %v2067, %v2068
      %v2070 = vrot.slane %v2069, 1
      %v2071 = vadd.f32 %v2069, %v2070
      %2072 = vst.msk [vmem:[%s181 + $0x1] sm:$0x1] %vm2017, %v2071
      %p2073 = scmp.lt.s32.totalorder %s15, 3
      %s2074 = scalar_select %p2073, %s15, 3
      %s2075 = smul.addr %s2074, 16
      %s2076 = smul.addr %s2075, 4
      %s2077 = scalar_lea.vmem %s2, %s2076
      %p2078 = scmp.lt.s32.totalorder %s15, 3
      %s2079 = scalar_select %p2078, %s15, 3
      %s2080 = smul.addr %s2079, 2
      %s2081 = scalar_lea.vmem %s3, %s2080
      // Predicated region
      $region29: #{basic_block_ir.4} parent=27 // pred_check
        %p2082 = pneg %p80
      $region30: #{basic_block_ir.4} parent=27 // pred_check_branch
        %2084 = sbr.rel (%p2082) target = $region32
      $region31: #{basic_block_ir.4} parent=27 // pred_region
        _
      $region32: #{basic_block_ir.4} parent=27 // pred_fallthru
        _
      // Predicated region
      $region33: #{basic_block_ir.4} parent=27 // pred_check
        %p2085 = pneg %p106
      $region34: #{basic_block_ir.4} parent=27 // pred_check_branch
        %2087 = sbr.rel (%p2085) target = $region36
      $region35: #{basic_block_ir.4} parent=27 // pred_region
        _
      $region36: #{basic_block_ir.4} parent=27 // pred_fallthru
        _
    $region28: #{basic_block_ir.4} parent=5 // pred_fallthru
      _
    %p2088 = scmp.le.s32.totalorder 2, %s10
    // Predicated region
    $region37: #{basic_block_ir.4} parent=5 // pred_check
      %p2089 = pneg %p2088
    $region38: #{basic_block_ir.4} parent=5 // pred_check_branch
      %2091 = sbr.rel (%p2089) target = $region40
    $region39: #{basic_block_ir.4} parent=5 // pred_region
      %s2092 = ssub.s32 %s10, 2
      // Predicated region
      $region41: #{basic_block_ir.4} parent=39 // pred_check
        %p2093 = pneg %p86
      $region42: #{basic_block_ir.4} parent=39 // pred_check_branch
        %2095 = sbr.rel (%p2093) target = $region44
      $region43: #{basic_block_ir.4} parent=39 // pred_region
        %p2096 = scmp.lt.s32.totalorder %s16, 3
        %s2097 = scalar_select %p2096, %s16, 3
        %s2098 = smul.addr %s2097, 16
        %s2099 = smul.addr %s2098, 4
        %s2100 = scalar_lea.vmem %s2, %s2099
      $region44: #{basic_block_ir.4} parent=39 // pred_fallthru
        _
      // Predicated region
      $region45: #{basic_block_ir.4} parent=39 // pred_check
        %p2101 = pneg %p112
      $region46: #{basic_block_ir.4} parent=39 // pred_check_branch
        %2103 = sbr.rel (%p2101) target = $region48
      $region47: #{basic_block_ir.4} parent=39 // pred_region
        %p2104 = scmp.lt.s32.totalorder %s16, 3
        %s2105 = scalar_select %p2104, %s16, 3
        %s2106 = smul.addr %s2105, 2
        %s2107 = scalar_lea.vmem %s3, %s2106
      $region48: #{basic_block_ir.4} parent=39 // pred_fallthru
        _
    $region40: #{basic_block_ir.4} parent=5 // pred_fallthru
      _
  $region6: #{basic_block_ir.4} parent=0 // loop_footer
    %s14 = sadd.s32 1, %s10
  $region7: #{basic_block_ir.4} parent=0 // loop_footer_branch
    %9 = sbr.rel target = $region3
  $region8: #{basic_block_ir.4} parent=0 // loop_exit
    _

// kernel: basic_block_ir.6
$region0: #{basic_block_ir.6}
  #allocation0 [shape = 'u32[]', space=smem, size = 0x4, offset = 0x4, fixed_abs, tag = 'smem constant byte address 0x4 - core index']
  #allocation1 [shape = 'u32[144,128]{1,0:T(1,128)}', space=vmem, size = 0x12000, scoped, tag = 'internal scratch']
  %s0 = inlined_call_operand.vmem [shape: bf16[128,4], index: 0, kind: input, shape index: {}]
  %s1 = inlined_call_operand.vmem [shape: bf16[4,8], index: 1, kind: input, shape index: {}]
  %s2 = inlined_call_operand.vmem [shape: f32[128,8], index: 2, kind: output, shape index: {0}]
  %s3 = inlined_call_operand.vmem [shape: f32[2,2,8], index: 3, kind: output, shape index: {1}]
  %4 = xla_tuple %s2, %s3
  %s5 = sld [smem:[#allocation0]]
  $region49: #{basic_block_ir.6} parent=0
    _
  %s7 = ssub.s32 1, %s5
  %s8 = scalar_select 0, %s7, %s5
  loop: start=0, step=1, limit=4
  $region2: #{basic_block_ir.6} parent=0 // loop_pre_header
    _
  $region3: #{basic_block_ir.6} parent=0 // loop_header
    %s10 = sphi 0, %s14
    %p11 = scmp.ge.s32.totalorder %s10, 4
    %s20 = sphi 0, %s22
    %s23 = sphi 0, %s20
    %s24 = sphi 0, %s23
    %s40 = sphi 0, %s24
    %s44 = sphi 0, %s44
    %s46 = sphi 0, %s44
    %s47 = sphi 0, %s46
    %s61 = sphi 0, %s47
    %s67 = sphi 0, %s69
    %s70 = sphi 0, %s67
    %s71 = sphi 0, %s70
    %s87 = sphi 0, %s71
    %s93 = sphi 0, %s95
    %s96 = sphi 0, %s93
    %s97 = sphi 0, %s96
    %s113 = sphi 0, %s97
  $region4: #{basic_block_ir.6} parent=0 // loop_header_branch
    %13 = sbr.rel (%p11) target = $region8
  $region5: #{basic_block_ir.6} parent=0 // loop_body
    %s15 = ssub.s32 %s10, 1
    %s16 = ssub.s32 %s10, 2
    %s17 = sadd.s32 %s10, 1
    %s18 = ssub.s32 %s10, %s17
    %p19 = scmp.eq.s32.totalorder %s18, 0
    %s21 = sadd.s32 %s20, 1
    %s22 = scalar_select %p19, %s20, %s21
    %p25 = pneg %p19
    %p26 = scmp.eq.s32.totalorder %s10, 1
    %p27 = por %p25, %p26
    %p28 = scmp.ne.s32.totalorder %s20, %s23
    %p29 = scmp.eq.s32.totalorder %s10, 0
    %p30 = por %p28, %p29
    %p31 = scmp.ne.s32.totalorder %s20, %s23
    %p32 = scmp.eq.s32.totalorder %s15, 1
    %p33 = por %p31, %p32
    %p34 = scmp.ne.s32.totalorder %s23, %s24
    %p35 = scmp.eq.s32.totalorder %s15, 0
    %p36 = por %p34, %p35
    %p37 = scmp.ne.s32.totalorder %s23, %s24
    %p38 = scmp.eq.s32.totalorder %s16, 1
    %p39 = por %p37, %p38
    %p41 = scmp.ne.s32.totalorder %s24, %s40
    %p42 = scmp.eq.s32.totalorder %s16, 0
    %p43 = por %p41, %p42
    %s45 = sadd.s32 %s44, 1
    %p48 = scmp.eq.s32.totalorder %s10, 1
    %p49 = scmp.ne.s32.totalorder %s44, %s46
    %p50 = scmp.eq.s32.totalorder %s10, 0
    %p51 = por %p49, %p50
    %p52 = scmp.ne.s32.totalorder %s44, %s46
    %p53 = scmp.eq.s32.totalorder %s15, 1
    %p54 = por %p52, %p53
    %p55 = scmp.ne.s32.totalorder %s46, %s47
    %p56 = scmp.eq.s32.totalorder %s15, 0
    %p57 = por %p55, %p56
    %p58 = scmp.ne.s32.totalorder %s46, %s47
    %p59 = scmp.eq.s32.totalorder %s16, 1
    %p60 = por %p58, %p59
    %p62 = scmp.ne.s32.totalorder %s47, %s61
    %p63 = scmp.eq.s32.totalorder %s16, 0
    %p64 = por %p62, %p63
    %s65 = ssub.s32 %s10, %s17
    %p66 = scmp.eq.s32.totalorder %s65, 0
    %s68 = sadd.s32 %s67, 1
    %s69 = scalar_select %p66, %s67, %s68
    %p72 = pneg %p66
    %p73 = scmp.eq.s32.totalorder %s10, 1
    %p74 = por %p72, %p73
    %p75 = scmp.ne.s32.totalorder %s67, %s70
    %p76 = scmp.eq.s32.totalorder %s10, 0
    %p77 = por %p75, %p76
    %p78 = scmp.ne.s32.totalorder %s67, %s70
    %p79 = scmp.eq.s32.totalorder %s15, 1
    %p80 = por %p78, %p79
    %p81 = scmp.ne.s32.totalorder %s70, %s71
    %p82 = scmp.eq.s32.totalorder %s15, 0
    %p83 = por %p81, %p82
    %p84 = scmp.ne.s32.totalorder %s70, %s71
    %p85 = scmp.eq.s32.totalorder %s16, 1
    %p86 = por %p84, %p85
    %p88 = scmp.ne.s32.totalorder %s71, %s87
    %p89 = scmp.eq.s32.totalorder %s16, 0
    %p90 = por %p88, %p89
    %s91 = ssub.s32 %s10, %s17
    %p92 = scmp.eq.s32.totalorder %s91, 0
    %s94 = sadd.s32 %s93, 1
    %s95 = scalar_select %p92, %s93, %s94
    %p98 = pneg %p92
    %p99 = scmp.eq.s32.totalorder %s10, 1
    %p100 = por %p98, %p99
    %p101 = scmp.ne.s32.totalorder %s93, %s96
    %p102 = scmp.eq.s32.totalorder %s10, 0
    %p103 = por %p101, %p102
    %p104 = scmp.ne.s32.totalorder %s93, %s96
    %p105 = scmp.eq.s32.totalorder %s15, 1
    %p106 = por %p104, %p105
    %p107 = scmp.ne.s32.totalorder %s96, %s97
    %p108 = scmp.eq.s32.totalorder %s15, 0
    %p109 = por %p107, %p108
    %p110 = scmp.ne.s32.totalorder %s96, %s97
    %p111 = scmp.eq.s32.totalorder %s16, 1
    %p112 = por %p110, %p111
    %p114 = scmp.ne.s32.totalorder %s97, %s113
    %p115 = scmp.eq.s32.totalorder %s16, 0
    %p116 = por %p114, %p115
    %p117 = scmp.le.s32.totalorder 1, %s10
    %p118 = scmp.lt.s32.totalorder %s10, 3
    %p119 = pnand %p117, %p118
    %p120 = pneg %p119
    // Predicated region
    $region9: #{basic_block_ir.6} parent=5 // pred_check
      _
    $region10: #{basic_block_ir.6} parent=5 // pred_check_branch
      %122 = sbr.rel (%p119) target = $region12
    $region11: #{basic_block_ir.6} parent=5 // pred_region
      %s123 = ssub.s32 %s10, 1
      // Predicated region
      $region13: #{basic_block_ir.6} parent=11 // pred_check
        %p124 = pneg %p57
      $region14: #{basic_block_ir.6} parent=11 // pred_check_branch
        %126 = sbr.rel (%p124) target = $region16
      $region15: #{basic_block_ir.6} parent=11 // pred_region
        _
      $region16: #{basic_block_ir.6} parent=11 // pred_fallthru
        _
    $region12: #{basic_block_ir.6} parent=5 // pred_fallthru
      _
    %p127 = scmp.lt.s32.totalorder %s10, 2
    // Predicated region
    $region17: #{basic_block_ir.6} parent=5 // pred_check
      %p128 = pneg %p127
    $region18: #{basic_block_ir.6} parent=5 // pred_check_branch
      %130 = sbr.rel (%p128) target = $region20
    $region19: #{basic_block_ir.6} parent=5 // pred_region
      // Predicated region
      $region21: #{basic_block_ir.6} parent=19 // pred_check
        %p131 = pneg %p30
      $region22: #{basic_block_ir.6} parent=19 // pred_check_branch
        %133 = sbr.rel (%p131) target = $region24
      $region23: #{basic_block_ir.6} parent=19 // pred_region
        %s134 = smul.u32 8, %s10
        %p135 = scmp.lt.s32.totalorder %s134, 15
        %s136 = scalar_select %p135, %s134, 15
        %s137 = smul.addr %s136, 4
        %s138 = scalar_lea.vmem %s0, %s137
        %s139 = smul.u32 8, %s10
      $region24: #{basic_block_ir.6} parent=19 // pred_fallthru
        _
    $region20: #{basic_block_ir.6} parent=5 // pred_fallthru
      _
    %p140 = scmp.le.s32.totalorder 1, %s10
    %p141 = scmp.lt.s32.totalorder %s10, 3
    %p142 = pnand %p140, %p141
    %p143 = pneg %p142
    // Predicated region
    $region25: #{basic_block_ir.6} parent=5 // pred_check
      _
    $region26: #{basic_block_ir.6} parent=5 // pred_check_branch
      %145 = sbr.rel (%p142) target = $region28
    $region27: #{basic_block_ir.6} parent=5 // pred_region
      %s146 = ssub.s32 %s10, 1
      %s147 = smul.u32 8, %s15
      %p148 = scmp.lt.s32.totalorder %s147, 15
      %s149 = scalar_select %p148, %s147, 15
      %s150 = smul.addr %s149, 4
      %s151 = scalar_lea.vmem %s0, %s150
      %p152 = pneg %p36
      %p153 = pneg %p33
      %p154 = pneg %p57
      %p155 = pneg %p54
      %p156 = pneg %p83
      %p157 = pneg %p80
      %s158 = smul.u32 8, %s15
      %p159 = scmp.lt.s32.totalorder %s158, 15
      %s160 = scalar_select %p159, %s158, 15
      %s161 = smul.addr %s160, 8
      %s162 = scalar_lea.vmem %s2, %s161
      %p163 = pneg %p109
      %p164 = pneg %p106
      %p165 = scmp.lt.s32.totalorder %s15, 1
      %s166 = scalar_select %p165, %s15, 1
      %s167 = smul.addr %s166, 2
      %s168 = scalar_lea.vmem %s3, %s167
      %s169 = smul.u32 8, %s15
      %p170 = scmp.lt.s32.totalorder %s169, 15
      %s171 = scalar_select %p170, %s169, 15
      %s172 = smul.addr %s171, 4
      %s173 = scalar_lea.vmem %s0, %s172
      %s174 = smul.u32 8, %s15
      %s175 = smul.u32 8, %s15
      %p176 = scmp.lt.s32.totalorder %s175, 15
      %s177 = scalar_select %p176, %s175, 15
      %s178 = smul.addr %s177, 8
      %s179 = scalar_lea.vmem %s2, %s178
      %s180 = smul.u32 8, %s15
      %p181 = scmp.lt.s32.totalorder %s15, 1
      %s182 = scalar_select %p181, %s15, 1
      %s183 = smul.addr %s182, 2
      %s184 = scalar_lea.vmem %s3, %s183
      %v186 = vld [vmem:[%s173] sm:$0xf]
      %v187 = vld [vmem:[%s173 + $0x4] sm:$0xf]
      %v188 = vld [vmem:[%s173 + $0x8] sm:$0xf]
      %v189 = vld [vmem:[%s173 + $0xc] sm:$0xf]
      %v190 = vld [vmem:[%s173 + $0x10] sm:$0xf]
      %v191 = vld [vmem:[%s173 + $0x14] sm:$0xf]
      %v192 = vld [vmem:[%s173 + $0x18] sm:$0xf]
      %v193 = vld [vmem:[%s173 + $0x1c] sm:$0xf]
      %v194 = vld [vmem:[%s1] sm:$0x3]
      %v203 = vunpack.c.l.b16 %v186
      %v204 = vunpack.c.l.b16 %v187
      %v205 = vunpack.c.l.b16 %v188
      %v206 = vunpack.c.l.b16 %v189
      %v207 = vunpack.c.l.b16 %v190
      %v208 = vunpack.c.l.b16 %v191
      %v209 = vunpack.c.l.b16 %v192
      %v210 = vunpack.c.l.b16 %v193
      %v211 = vpack.c.b16 %v204, %v203
      %v212 = vpack.c.b16 %v206, %v205
      %v213 = vpack.c.b16 %v208, %v207
      %v214 = vpack.c.b16 %v210, %v209
      %vm215 = vcmask 31744
      %v217 = vsel %vm215, %v211, 0
      %v220 = vsel %vm215, %v212, 0
      %v223 = vsel %vm215, %v213, 0
      %v226 = vsel %vm215, %v214, 0
      %vm228 = vcmask 1041408
      %v230 = vsel %vm228, %v194, 0
      %232 = vmatprep.subr.bf16.mxu0 0
      %233 = vmatpush1.bf16.msra.mxu0 %v230
      %234 = vmatprep.subr.bf16.mxu0 0
      %235 = vmatpush1.bf16.msra.mxu0 0
      %236 = vmatprep.subr.bf16.mxu0 0
      %237 = vmatpush1.bf16.msra.mxu0 0
      %238 = vmatprep.subr.bf16.mxu0 0
      %239 = vmatpush1.bf16.msra.mxu0 0
      %240 = vmatprep.subr.bf16.mxu0 0
      %241 = vmatpush1.bf16.msra.mxu0 0
      %242 = vmatprep.subr.bf16.mxu0 0
      %243 = vmatpush1.bf16.msra.mxu0 0
      %244 = vmatprep.subr.bf16.mxu0 0
      %245 = vmatpush1.bf16.msra.mxu0 0
      %246 = vmatprep.subr.bf16.mxu0 0
      %247 = vmatpush1.bf16.msra.mxu0 0
      %248 = vmatprep.subr.bf16.mxu0 0
      %249 = vmatpush1.bf16.msra.mxu0 0
      %250 = vmatprep.subr.bf16.mxu0 0
      %251 = vmatpush1.bf16.msra.mxu0 0
      %252 = vmatprep.subr.bf16.mxu0 0
      %253 = vmatpush1.bf16.msra.mxu0 0
      %254 = vmatprep.subr.bf16.mxu0 0
      %255 = vmatpush1.bf16.msra.mxu0 0
      %256 = vmatprep.subr.bf16.mxu0 0
      %257 = vmatpush1.bf16.msra.mxu0 0
      %258 = vmatprep.subr.bf16.mxu0 0
      %259 = vmatpush1.bf16.msra.mxu0 0
      %260 = vmatprep.subr.bf16.mxu0 0
      %261 = vmatpush1.bf16.msra.mxu0 0
      %262 = vmatprep.subr.bf16.mxu0 0
      %263 = vmatpush1.bf16.msra.mxu0 0
      %264 = vmatprep.mubr.bf16.mxu0 0
      %265 = vmatmul.mubr.bf16.gmra.mrb[0].mxu0 %v217
      %v266 = vpop.f32.mrb[0].mxu0
      %v267 = vadd.f32 0.0, %v266
      %v268 = vpop.f32.mrb[0].mxu0
      %v269 = vpop.f32.mrb[0].mxu0
      %v270 = vadd.f32 0.0, %v269
      %v271 = vpop.f32.mrb[0].mxu0
      %272 = vmatprep.mubr.bf16.mxu0 0
      %273 = vmatmul.mubr.bf16.gmra.mrb[0].mxu0 %v220
      %v274 = vpop.f32.mrb[0].mxu0
      %v275 = vadd.f32 0.0, %v274
      %v276 = vpop.f32.mrb[0].mxu0
      %v277 = vpop.f32.mrb[0].mxu0
      %v278 = vadd.f32 0.0, %v277
      %v279 = vpop.f32.mrb[0].mxu0
      %280 = vmatprep.mubr.bf16.mxu0 0
      %281 = vmatmul.mubr.bf16.gmra.mrb[0].mxu0 %v223
      %v282 = vpop.f32.mrb[0].mxu0
      %v283 = vadd.f32 0.0, %v282
      %v284 = vpop.f32.mrb[0].mxu0
      %v285 = vpop.f32.mrb[0].mxu0
      %v286 = vadd.f32 0.0, %v285
      %v287 = vpop.f32.mrb[0].mxu0
      %288 = vmatprep.mubr.bf16.mxu0 0
      %289 = vmatmul.mubr.bf16.gmra.mrb[0].mxu0 %v226
      %v290 = vpop.f32.mrb[0].mxu0
      %v291 = vadd.f32 0.0, %v290
      %v292 = vpop.f32.mrb[0].mxu0
      %v293 = vpop.f32.mrb[0].mxu0
      %v294 = vadd.f32 0.0, %v293
      %v295 = vpop.f32.mrb[0].mxu0
      %296 = vdwg.mxu0
      %vm297 = vcmask 64512
      %298 = vst.msk [vmem:[%s179] sm:$0xff] %vm297, %v267
      %299 = vst.msk [vmem:[%s179 + $0x8] sm:$0xff] %vm297, %v270
      %300 = vst.msk [vmem:[%s179 + $0x10] sm:$0xff] %vm297, %v275
      %301 = vst.msk [vmem:[%s179 + $0x18] sm:$0xff] %vm297, %v278
      %302 = vst.msk [vmem:[%s179 + $0x20] sm:$0xff] %vm297, %v283
      %303 = vst.msk [vmem:[%s179 + $0x28] sm:$0xff] %vm297, %v286
      %304 = vst.msk [vmem:[%s179 + $0x30] sm:$0xff] %vm297, %v291
      %305 = vst.msk [vmem:[%s179 + $0x38] sm:$0xff] %vm297, %v294
      %v306 = vsel %vm297, %v267, 0.0
      %v307 = vsel %vm297, %v270, 0.0
      %v308 = vadd.f32 %v306, %v307
      %v309 = vsel %vm297, %v275, 0.0
      %v310 = vadd.f32 %v308, %v309
      %v311 = vsel %vm297, %v278, 0.0
      %v312 = vadd.f32 %v310, %v311
      %v313 = vsel %vm297, %v283, 0.0
      %v314 = vadd.f32 %v312, %v313
      %v315 = vsel %vm297, %v286, 0.0
      %v316 = vadd.f32 %v314, %v315
      %v317 = vsel %vm297, %v291, 0.0
      %v318 = vadd.f32 %v316, %v317
      %v319 = vsel %vm297, %v294, 0.0
      %v320 = vadd.f32 %v318, %v319
      %v321 = vrot.slane %v320, 4
      %v322 = vadd.f32 %v320, %v321
      %v323 = vrot.slane %v322, 2
      %v324 = vadd.f32 %v322, %v323
      %v325 = vrot.slane %v324, 1
      %v326 = vadd.f32 %v324, %v325
      %vm327 = vcmask 57344
      %328 = vst.msk [vmem:[%s184] sm:$0x1] %vm327, %v326
      %v329 = vmul.f32 %v267, %v267
      %v330 = vmul.f32 %v270, %v270
      %v331 = vmul.f32 %v275, %v275
      %v332 = vmul.f32 %v278, %v278
      %v333 = vmul.f32 %v283, %v283
      %v334 = vmul.f32 %v286, %v286
      %v335 = vmul.f32 %v291, %v291
      %v336 = vmul.f32 %v294, %v294
      %v337 = vsel %vm297, %v329, 0.0
      %v338 = vsel %vm297, %v330, 0.0
      %v339 = vadd.f32 %v337, %v338
      %v340 = vsel %vm297, %v331, 0.0
      %v341 = vadd.f32 %v339, %v340
      %v342 = vsel %vm297, %v332, 0.0
      %v343 = vadd.f32 %v341, %v342
      %v344 = vsel %vm297, %v333, 0.0
      %v345 = vadd.f32 %v343, %v344
      %v346 = vsel %vm297, %v334, 0.0
      %v347 = vadd.f32 %v345, %v346
      %v348 = vsel %vm297, %v335, 0.0
      %v349 = vadd.f32 %v347, %v348
      %v350 = vsel %vm297, %v336, 0.0
      %v351 = vadd.f32 %v349, %v350
      %v352 = vrot.slane %v351, 4
      %v353 = vadd.f32 %v351, %v352
      %v354 = vrot.slane %v353, 2
      %v355 = vadd.f32 %v353, %v354
      %v356 = vrot.slane %v355, 1
      %v357 = vadd.f32 %v355, %v356
      %358 = vst.msk [vmem:[%s184 + $0x1] sm:$0x1] %vm327, %v357
      %s359 = smul.u32 8, %s15
      %p360 = scmp.lt.s32.totalorder %s359, 15
      %s361 = scalar_select %p360, %s359, 15
      %s362 = smul.addr %s361, 8
      %s363 = scalar_lea.vmem %s2, %s362
      %p364 = scmp.lt.s32.totalorder %s15, 1
      %s365 = scalar_select %p364, %s15, 1
      %s366 = smul.addr %s365, 2
      %s367 = scalar_lea.vmem %s3, %s366
      // Predicated region
      $region29: #{basic_block_ir.6} parent=27 // pred_check
        %p368 = pneg %p80
      $region30: #{basic_block_ir.6} parent=27 // pred_check_branch
        %370 = sbr.rel (%p368) target = $region32
      $region31: #{basic_block_ir.6} parent=27 // pred_region
        %s371 = smul.u32 8, %s15
      $region32: #{basic_block_ir.6} parent=27 // pred_fallthru
        _
      // Predicated region
      $region33: #{basic_block_ir.6} parent=27 // pred_check
        %p372 = pneg %p106
      $region34: #{basic_block_ir.6} parent=27 // pred_check_branch
        %374 = sbr.rel (%p372) target = $region36
      $region35: #{basic_block_ir.6} parent=27 // pred_region
        _
      $region36: #{basic_block_ir.6} parent=27 // pred_fallthru
        _
    $region28: #{basic_block_ir.6} parent=5 // pred_fallthru
      _
    %p375 = scmp.le.s32.totalorder 2, %s10
    // Predicated region
    $region37: #{basic_block_ir.6} parent=5 // pred_check
      %p376 = pneg %p375
    $region38: #{basic_block_ir.6} parent=5 // pred_check_branch
      %378 = sbr.rel (%p376) target = $region40
    $region39: #{basic_block_ir.6} parent=5 // pred_region
      %s379 = ssub.s32 %s10, 2
      // Predicated region
      $region41: #{basic_block_ir.6} parent=39 // pred_check
        %p380 = pneg %p86
      $region42: #{basic_block_ir.6} parent=39 // pred_check_branch
        %382 = sbr.rel (%p380) target = $region44
      $region43: #{basic_block_ir.6} parent=39 // pred_region
        %s383 = smul.u32 8, %s16
        %p384 = scmp.lt.s32.totalorder %s383, 15
        %s385 = scalar_select %p384, %s383, 15
        %s386 = smul.addr %s385, 8
        %s387 = scalar_lea.vmem %s2, %s386
      $region44: #{basic_block_ir.6} parent=39 // pred_fallthru
        _
      // Predicated region
      $region45: #{basic_block_ir.6} parent=39 // pred_check
        %p388 = pneg %p112
      $region46: #{basic_block_ir.6} parent=39 // pred_check_branch
        %390 = sbr.rel (%p388) target = $region48
      $region47: #{basic_block_ir.6} parent=39 // pred_region
        %p391 = scmp.lt.s32.totalorder %s16, 1
        %s392 = scalar_select %p391, %s16, 1
        %s393 = smul.addr %s392, 2
        %s394 = scalar_lea.vmem %s3, %s393
      $region48: #{basic_block_ir.6} parent=39 // pred_fallthru
        _
    $region40: #{basic_block_ir.6} parent=5 // pred_fallthru
      _
  $region6: #{basic_block_ir.6} parent=0 // loop_footer
    %s14 = sadd.s32 1, %s10
  $region7: #{basic_block_ir.6} parent=0 // loop_footer_branch
    %9 = sbr.rel target = $region3
  $region8: #{basic_block_ir.6} parent=0 // loop_exit
    _

// kernel: basic_block_ir.7
$region0: #{basic_block_ir.7}
  #allocation0 [shape = 'u32[]', space=smem, size = 0x4, offset = 0x4, fixed_abs, tag = 'smem constant byte address 0x4 - core index']
  #allocation1 [shape = 'u32[144,128]{1,0:T(1,128)}', space=vmem, size = 0x12000, scoped, tag = 'internal scratch']
  %s0 = inlined_call_operand.vmem [shape: f32[128,8], index: 0, kind: input, shape index: {}]
  %s1 = inlined_call_operand.vmem [shape: f32[128,8], index: 1, kind: input, shape index: {}]
  %s2 = inlined_call_operand.vmem [shape: f32[4,8], index: 2, kind: input, shape index: {}]
  %s3 = inlined_call_operand.vmem [shape: f32[128,8], index: 3, kind: output, shape index: {}]
  %s4 = sld [smem:[#allocation0]]
  $region45: #{basic_block_ir.7} parent=0
    _
  %s6 = ssub.s32 1, %s4
  %s7 = scalar_select 0, %s6, %s4
  loop: start=0, step=1, limit=4
  $region2: #{basic_block_ir.7} parent=0 // loop_pre_header
    _
  $region3: #{basic_block_ir.7} parent=0 // loop_header
    %s9 = sphi 0, %s13
    %p10 = scmp.ge.s32.totalorder %s9, 4
    %s19 = sphi 0, %s21
    %s22 = sphi 0, %s19
    %s23 = sphi 0, %s22
    %s39 = sphi 0, %s23
    %s45 = sphi 0, %s47
    %s48 = sphi 0, %s45
    %s49 = sphi 0, %s48
    %s65 = sphi 0, %s49
    %s69 = sphi 0, %s69
    %s71 = sphi 0, %s69
    %s72 = sphi 0, %s71
    %s86 = sphi 0, %s72
    %s92 = sphi 0, %s94
    %s95 = sphi 0, %s92
    %s96 = sphi 0, %s95
    %s112 = sphi 0, %s96
  $region4: #{basic_block_ir.7} parent=0 // loop_header_branch
    %12 = sbr.rel (%p10) target = $region8
  $region5: #{basic_block_ir.7} parent=0 // loop_body
    %s14 = ssub.s32 %s9, 1
    %s15 = ssub.s32 %s9, 2
    %s16 = sadd.s32 %s9, 1
    %s17 = ssub.s32 %s9, %s16
    %p18 = scmp.eq.s32.totalorder %s17, 0
    %s20 = sadd.s32 %s19, 1
    %s21 = scalar_select %p18, %s19, %s20
    %p24 = pneg %p18
    %p25 = scmp.eq.s32.totalorder %s9, 1
    %p26 = por %p24, %p25
    %p27 = scmp.ne.s32.totalorder %s19, %s22
    %p28 = scmp.eq.s32.totalorder %s9, 0
    %p29 = por %p27, %p28
    %p30 = scmp.ne.s32.totalorder %s19, %s22
    %p31 = scmp.eq.s32.totalorder %s14, 1
    %p32 = por %p30, %p31
    %p33 = scmp.ne.s32.totalorder %s22, %s23
    %p34 = scmp.eq.s32.totalorder %s14, 0
    %p35 = por %p33, %p34
    %p36 = scmp.ne.s32.totalorder %s22, %s23
    %p37 = scmp.eq.s32.totalorder %s15, 1
    %p38 = por %p36, %p37
    %p40 = scmp.ne.s32.totalorder %s23, %s39
    %p41 = scmp.eq.s32.totalorder %s15, 0
    %p42 = por %p40, %p41
    %s43 = ssub.s32 %s9, %s16
    %p44 = scmp.eq.s32.totalorder %s43, 0
    %s46 = sadd.s32 %s45, 1
    %s47 = scalar_select %p44, %s45, %s46
    %p50 = pneg %p44
    %p51 = scmp.eq.s32.totalorder %s9, 1
    %p52 = por %p50, %p51
    %p53 = scmp.ne.s32.totalorder %s45, %s48
    %p54 = scmp.eq.s32.totalorder %s9, 0
    %p55 = por %p53, %p54
    %p56 = scmp.ne.s32.totalorder %s45, %s48
    %p57 = scmp.eq.s32.totalorder %s14, 1
    %p58 = por %p56, %p57
    %p59 = scmp.ne.s32.totalorder %s48, %s49
    %p60 = scmp.eq.s32.totalorder %s14, 0
    %p61 = por %p59, %p60
    %p62 = scmp.ne.s32.totalorder %s48, %s49
    %p63 = scmp.eq.s32.totalorder %s15, 1
    %p64 = por %p62, %p63
    %p66 = scmp.ne.s32.totalorder %s49, %s65
    %p67 = scmp.eq.s32.totalorder %s15, 0
    %p68 = por %p66, %p67
    %s70 = sadd.s32 %s69, 1
    %p73 = scmp.eq.s32.totalorder %s9, 1
    %p74 = scmp.ne.s32.totalorder %s69, %s71
    %p75 = scmp.eq.s32.totalorder %s9, 0
    %p76 = por %p74, %p75
    %p77 = scmp.ne.s32.totalorder %s69, %s71
    %p78 = scmp.eq.s32.totalorder %s14, 1
    %p79 = por %p77, %p78
    %p80 = scmp.ne.s32.totalorder %s71, %s72
    %p81 = scmp.eq.s32.totalorder %s14, 0
    %p82 = por %p80, %p81
    %p83 = scmp.ne.s32.totalorder %s71, %s72
    %p84 = scmp.eq.s32.totalorder %s15, 1
    %p85 = por %p83, %p84
    %p87 = scmp.ne.s32.totalorder %s72, %s86
    %p88 = scmp.eq.s32.totalorder %s15, 0
    %p89 = por %p87, %p88
    %s90 = ssub.s32 %s9, %s16
    %p91 = scmp.eq.s32.totalorder %s90, 0
    %s93 = sadd.s32 %s92, 1
    %s94 = scalar_select %p91, %s92, %s93
    %p97 = pneg %p91
    %p98 = scmp.eq.s32.totalorder %s9, 1
    %p99 = por %p97, %p98
    %p100 = scmp.ne.s32.totalorder %s92, %s95
    %p101 = scmp.eq.s32.totalorder %s9, 0
    %p102 = por %p100, %p101
    %p103 = scmp.ne.s32.totalorder %s92, %s95
    %p104 = scmp.eq.s32.totalorder %s14, 1
    %p105 = por %p103, %p104
    %p106 = scmp.ne.s32.totalorder %s95, %s96
    %p107 = scmp.eq.s32.totalorder %s14, 0
    %p108 = por %p106, %p107
    %p109 = scmp.ne.s32.totalorder %s95, %s96
    %p110 = scmp.eq.s32.totalorder %s15, 1
    %p111 = por %p109, %p110
    %p113 = scmp.ne.s32.totalorder %s96, %s112
    %p114 = scmp.eq.s32.totalorder %s15, 0
    %p115 = por %p113, %p114
    %p116 = scmp.le.s32.totalorder 1, %s9
    %p117 = scmp.lt.s32.totalorder %s9, 3
    %p118 = pnand %p116, %p117
    %p119 = pneg %p118
    // Predicated region
    $region9: #{basic_block_ir.7} parent=5 // pred_check
      _
    $region10: #{basic_block_ir.7} parent=5 // pred_check_branch
      %121 = sbr.rel (%p118) target = $region12
    $region11: #{basic_block_ir.7} parent=5 // pred_region
      %s122 = ssub.s32 %s9, 1
      // Predicated region
      $region13: #{basic_block_ir.7} parent=11 // pred_check
        %p123 = pneg %p82
      $region14: #{basic_block_ir.7} parent=11 // pred_check_branch
        %125 = sbr.rel (%p123) target = $region16
      $region15: #{basic_block_ir.7} parent=11 // pred_region
        _
      $region16: #{basic_block_ir.7} parent=11 // pred_fallthru
        _
    $region12: #{basic_block_ir.7} parent=5 // pred_fallthru
      _
    %p126 = scmp.lt.s32.totalorder %s9, 2
    // Predicated region
    $region17: #{basic_block_ir.7} parent=5 // pred_check
      %p127 = pneg %p126
    $region18: #{basic_block_ir.7} parent=5 // pred_check_branch
      %129 = sbr.rel (%p127) target = $region20
    $region19: #{basic_block_ir.7} parent=5 // pred_region
      // Predicated region
      $region21: #{basic_block_ir.7} parent=19 // pred_check
        %p130 = pneg %p29
      $region22: #{basic_block_ir.7} parent=19 // pred_check_branch
        %132 = sbr.rel (%p130) target = $region24
      $region23: #{basic_block_ir.7} parent=19 // pred_region
        %s133 = smul.u32 8, %s9
        %p134 = scmp.lt.s32.totalorder %s133, 15
        %s135 = scalar_select %p134, %s133, 15
        %s136 = smul.addr %s135, 8
        %s137 = scalar_lea.vmem %s0, %s136
        %s138 = smul.u32 8, %s9
      $region24: #{basic_block_ir.7} parent=19 // pred_fallthru
        _
      // Predicated region
      $region25: #{basic_block_ir.7} parent=19 // pred_check
        %p139 = pneg %p55
      $region26: #{basic_block_ir.7} parent=19 // pred_check_branch
        %141 = sbr.rel (%p139) target = $region28
      $region27: #{basic_block_ir.7} parent=19 // pred_region
        %s142 = smul.u32 8, %s9
        %p143 = scmp.lt.s32.totalorder %s142, 15
        %s144 = scalar_select %p143, %s142, 15
        %s145 = smul.addr %s144, 8
        %s146 = scalar_lea.vmem %s1, %s145
        %s147 = smul.u32 8, %s9
      $region28: #{basic_block_ir.7} parent=19 // pred_fallthru
        _
    $region20: #{basic_block_ir.7} parent=5 // pred_fallthru
      _
    %p148 = scmp.le.s32.totalorder 1, %s9
    %p149 = scmp.lt.s32.totalorder %s9, 3
    %p150 = pnand %p148, %p149
    %p151 = pneg %p150
    // Predicated region
    $region29: #{basic_block_ir.7} parent=5 // pred_check
      _
    $region30: #{basic_block_ir.7} parent=5 // pred_check_branch
      %153 = sbr.rel (%p150) target = $region32
    $region31: #{basic_block_ir.7} parent=5 // pred_region
      %s154 = ssub.s32 %s9, 1
      %s155 = smul.u32 8, %s14
      %p156 = scmp.lt.s32.totalorder %s155, 15
      %s157 = scalar_select %p156, %s155, 15
      %s158 = smul.addr %s157, 8
      %s159 = scalar_lea.vmem %s0, %s158
      %p160 = pneg %p35
      %p161 = pneg %p32
      %s162 = smul.u32 8, %s14
      %p163 = scmp.lt.s32.totalorder %s162, 15
      %s164 = scalar_select %p163, %s162, 15
      %s165 = smul.addr %s164, 8
      %s166 = scalar_lea.vmem %s1, %s165
      %p167 = pneg %p61
      %p168 = pneg %p58
      %p169 = pneg %p82
      %p170 = pneg %p79
      %p171 = pneg %p108
      %p172 = pneg %p105
      %s173 = smul.u32 8, %s14
      %p174 = scmp.lt.s32.totalorder %s173, 15
      %s175 = scalar_select %p174, %s173, 15
      %s176 = smul.addr %s175, 8
      %s177 = scalar_lea.vmem %s3, %s176
      %s178 = smul.u32 8, %s14
      %p179 = scmp.lt.s32.totalorder %s178, 15
      %s180 = scalar_select %p179, %s178, 15
      %s181 = smul.addr %s180, 8
      %s182 = scalar_lea.vmem %s0, %s181
      %s183 = smul.u32 8, %s14
      %s184 = smul.u32 8, %s14
      %p185 = scmp.lt.s32.totalorder %s184, 15
      %s186 = scalar_select %p185, %s184, 15
      %s187 = smul.addr %s186, 8
      %s188 = scalar_lea.vmem %s1, %s187
      %s189 = smul.u32 8, %s14
      %s190 = smul.u32 8, %s14
      %p191 = scmp.lt.s32.totalorder %s190, 15
      %s192 = scalar_select %p191, %s190, 15
      %s193 = smul.addr %s192, 8
      %s194 = scalar_lea.vmem %s3, %s193
      %s195 = smul.u32 8, %s14
      %v196 = vld [vmem:[%s182] sm:$0xff]
      %v197 = vld [vmem:[%s182 + $0x8] sm:$0xff]
      %v198 = vld [vmem:[%s182 + $0x10] sm:$0xff]
      %v199 = vld [vmem:[%s182 + $0x18] sm:$0xff]
      %v200 = vld [vmem:[%s182 + $0x20] sm:$0xff]
      %v201 = vld [vmem:[%s182 + $0x28] sm:$0xff]
      %v202 = vld [vmem:[%s182 + $0x30] sm:$0xff]
      %v203 = vld [vmem:[%s182 + $0x38] sm:$0xff]
      %v204 = vld [vmem:[%s2] sm:$0x1]
      %v205 = vlaneseq
      %v206 = vshrl.u32 %v205, 7
      %v207 = vsub.s32 0, %v206
      %v208 = vrot.slane %v204, %v207
      %v209 = vmul.f32 %v196, %v208
      %v210 = vmul.f32 %v197, %v208
      %v211 = vmul.f32 %v198, %v208
      %v212 = vmul.f32 %v199, %v208
      %v213 = vmul.f32 %v200, %v208
      %v214 = vmul.f32 %v201, %v208
      %v215 = vmul.f32 %v202, %v208
      %v216 = vmul.f32 %v203, %v208
      %v217 = vld [vmem:[%s2 + $0x1] sm:$0x1]
      %v218 = vlaneseq
      %v219 = vshrl.u32 %v218, 7
      %v220 = vsub.s32 0, %v219
      %v221 = vrot.slane %v217, %v220
      %v222 = vadd.f32 %v209, %v221
      %v223 = vadd.f32 %v210, %v221
      %v224 = vadd.f32 %v211, %v221
      %v225 = vadd.f32 %v212, %v221
      %v226 = vadd.f32 %v213, %v221
      %v227 = vadd.f32 %v214, %v221
      %v228 = vadd.f32 %v215, %v221
      %v229 = vadd.f32 %v216, %v221
      %v230 = vld [vmem:[%s188] sm:$0xff]
      %v231 = vld [vmem:[%s188 + $0x8] sm:$0xff]
      %v232 = vld [vmem:[%s188 + $0x10] sm:$0xff]
      %v233 = vld [vmem:[%s188 + $0x18] sm:$0xff]
      %v234 = vld [vmem:[%s188 + $0x20] sm:$0xff]
      %v235 = vld [vmem:[%s188 + $0x28] sm:$0xff]
      %v236 = vld [vmem:[%s188 + $0x30] sm:$0xff]
      %v237 = vld [vmem:[%s188 + $0x38] sm:$0xff]
      %v238 = vld [vmem:[%s2 + $0x2] sm:$0x1]
      %v239 = vlaneseq
      %v240 = vshrl.u32 %v239, 7
      %v241 = vsub.s32 0, %v240
      %v242 = vrot.slane %v238, %v241
      %v243 = vmul.f32 %v230, %v242
      %v244 = vmul.f32 %v231, %v242
      %v245 = vmul.f32 %v232, %v242
      %v246 = vmul.f32 %v233, %v242
      %v247 = vmul.f32 %v234, %v242
      %v248 = vmul.f32 %v235, %v242
      %v249 = vmul.f32 %v236, %v242
      %v250 = vmul.f32 %v237, %v242
      %v251 = vadd.f32 %v222, %v243
      %v252 = vadd.f32 %v223, %v244
      %v253 = vadd.f32 %v224, %v245
      %v254 = vadd.f32 %v225, %v246
      %v255 = vadd.f32 %v226, %v247
      %v256 = vadd.f32 %v227, %v248
      %v257 = vadd.f32 %v228, %v249
      %v258 = vadd.f32 %v229, %v250
      %v259 = vld [vmem:[%s2 + $0x3] sm:$0x1]
      %v260 = vlaneseq
      %v261 = vshrl.u32 %v260, 7
      %v262 = vsub.s32 0, %v261
      %v263 = vrot.slane %v259, %v262
      %v264 = vadd.f32 %v251, %v263
      %v265 = vadd.f32 %v252, %v263
      %v266 = vadd.f32 %v253, %v263
      %v267 = vadd.f32 %v254, %v263
      %v268 = vadd.f32 %v255, %v263
      %v269 = vadd.f32 %v256, %v263
      %v270 = vadd.f32 %v257, %v263
      %v271 = vadd.f32 %v258, %v263
      %vm272 = vcmask 64512
      %273 = vst.msk [vmem:[%s194] sm:$0xff] %vm272, %v264
      %274 = vst.msk [vmem:[%s194 + $0x8] sm:$0xff] %vm272, %v265
      %275 = vst.msk [vmem:[%s194 + $0x10] sm:$0xff] %vm272, %v266
      %276 = vst.msk [vmem:[%s194 + $0x18] sm:$0xff] %vm272, %v267
      %277 = vst.msk [vmem:[%s194 + $0x20] sm:$0xff] %vm272, %v268
      %278 = vst.msk [vmem:[%s194 + $0x28] sm:$0xff] %vm272, %v269
      %279 = vst.msk [vmem:[%s194 + $0x30] sm:$0xff] %vm272, %v270
      %280 = vst.msk [vmem:[%s194 + $0x38] sm:$0xff] %vm272, %v271
      %s281 = smul.u32 8, %s14
      %p282 = scmp.lt.s32.totalorder %s281, 15
      %s283 = scalar_select %p282, %s281, 15
      %s284 = smul.addr %s283, 8
      %s285 = scalar_lea.vmem %s3, %s284
      // Predicated region
      $region33: #{basic_block_ir.7} parent=31 // pred_check
        %p286 = pneg %p105
      $region34: #{basic_block_ir.7} parent=31 // pred_check_branch
        %288 = sbr.rel (%p286) target = $region36
      $region35: #{basic_block_ir.7} parent=31 // pred_region
        %s289 = smul.u32 8, %s14
      $region36: #{basic_block_ir.7} parent=31 // pred_fallthru
        _
    $region32: #{basic_block_ir.7} parent=5 // pred_fallthru
      _
    %p290 = scmp.le.s32.totalorder 2, %s9
    // Predicated region
    $region37: #{basic_block_ir.7} parent=5 // pred_check
      %p291 = pneg %p290
    $region38: #{basic_block_ir.7} parent=5 // pred_check_branch
      %293 = sbr.rel (%p291) target = $region40
    $region39: #{basic_block_ir.7} parent=5 // pred_region
      %s294 = ssub.s32 %s9, 2
      // Predicated region
      $region41: #{basic_block_ir.7} parent=39 // pred_check
        %p295 = pneg %p111
      $region42: #{basic_block_ir.7} parent=39 // pred_check_branch
        %297 = sbr.rel (%p295) target = $region44
      $region43: #{basic_block_ir.7} parent=39 // pred_region
        %s298 = smul.u32 8, %s15
        %p299 = scmp.lt.s32.totalorder %s298, 15
        %s300 = scalar_select %p299, %s298, 15
        %s301 = smul.addr %s300, 8
        %s302 = scalar_lea.vmem %s3, %s301
      $region44: #{basic_block_ir.7} parent=39 // pred_fallthru
        _
    $region40: #{basic_block_ir.7} parent=5 // pred_fallthru
      _
  $region6: #{basic_block_ir.7} parent=0 // loop_footer
    %s13 = sadd.s32 1, %s9
  $region7: #{basic_block_ir.7} parent=0 // loop_footer_branch
    %8 = sbr.rel target = $region3
  $region8: #{basic_block_ir.7} parent=0 // loop_exit
    _

</llo_original>
